<compile_context>
chip_gen: v7x
topology: tpu7x:2x2x1
jax: 0.10.0
libtpu: 0.0.40
codegen_flags: <defaults>
</compile_context>

<pallas_src>
import jax
import jax.numpy as jnp
from jax import lax
from jax.experimental import pallas as pl
from jax.experimental.pallas import tpu as pltpu

NUM_LAYERS = 4
IN_DIM = 11
EMB_DIM = 64
EDGE_DIM = 4
OUT_DIM = 1
BN_EPS = 1e-5


# ---------------------------------------------------------------------------
# Pallas kernel: the whole forward pass runs inside one kernel.
# ---------------------------------------------------------------------------
def _mpnn_kernel(x_ref, dst_col_ref, srcn_col_ref, dst_row_ref, batch_row_ref,
                 ea_ref, inv_cnt_ref,
                 win_ref, bin_ref,
                 wm1a_ref, wm1b_ref, wm1c_ref, bm1_ref, wm2_ref, bm2_ref,
                 wu1a_ref, wu1b_ref, bu1_ref, wu2_ref, bu2_ref,
                 wp_ref, bp_ref,
                 out_ref):
    n = x_ref.shape[0]
    e = ea_ref.shape[0]
    g = out_ref.shape[0]
    f32 = jnp.float32
    bf16 = jnp.bfloat16

    def mm(a, b):
        return jnp.dot(a, b, preferred_element_type=f32)

    # h = lin_in(x)                                                (N, emb) f32
    h = mm(x_ref[...], win_ref[...]) + bin_ref[...]

    # One-hot selection matrices (built once, VPU compares, bf16 = exact 0/1).
    # Fused gather one-hot (E, 2N): left half selects h_i (dst), right half
    # selects h_j (src, column index pre-offset by N in the wrapper).
    e2n_iota = lax.broadcasted_iota(jnp.int32, (e, 2 * n), 1)
    gather_oh = ((e2n_iota == dst_col_ref[...])
                 | (e2n_iota == srcn_col_ref[...])).astype(bf16)   # (E, 2N)
    # Scatter-add one-hot, pre-transposed (N, E): MXU-native orientation.
    ne_iota = lax.broadcasted_iota(jnp.int32, (n, e), 0)
    scatter_oh = (ne_iota == dst_row_ref[...]).astype(bf16)        # (N, E)
    # Mean-pool one-hot, pre-transposed (G, N).
    gn_iota = lax.broadcasted_iota(jnp.int32, (g, n), 0)
    pool_oh = (gn_iota == batch_row_ref[...]).astype(bf16)         # (G, N)

    ea = ea_ref[...]                                               # (E, d_e) f32

    for l in range(NUM_LAYERS):
        h_bf = h.astype(bf16)

        # message() stage 1, reassociated: per-node Linears (N rows, bf16 MXU),
        # cast AFTER the Linear, then one fused K=2N gather matmul
        #   dst_oh @ (h@Wa)  +  src_oh @ (h@Wb).
        t_a = mm(h_bf, wm1a_ref[l])                                # (N, emb) f32
        t_b = mm(h_bf, wm1b_ref[l])                                # (N, emb) f32
        t_ab = jnp.concatenate([t_a, t_b], axis=0).astype(bf16)    # (2N, emb)

        # edge-attr contribution + bias on the VPU (a K=4 matmul would waste a
        # full MXU pass on the saturated unit).
        wm1c_l = wm1c_ref[l]                                       # (d_e, emb) f32
        ea_term = bm1_ref[l]                                       # (1, emb)
        for k in range(EDGE_DIM):
            ea_term = ea_term + ea[:, k:k + 1] * wm1c_l[k:k + 1, :]

        m = jnp.maximum(mm(gather_oh, t_ab) + ea_term, 0.0)        # (E, emb)
        m = jnp.maximum(mm(m.astype(bf16), wm2_ref[l]) + bm2_ref[l], 0.0)

        # aggregate(): scatter_add over destination index.
        aggr = mm(scatter_oh, m.astype(bf16))                      # (N, emb) f32

        # update(): split matmul == Lin([h, aggr]) without the lane concat.
        u = jnp.maximum(mm(h_bf, wu1a_ref[l])
                        + mm(aggr.astype(bf16), wu1b_ref[l])
                        + bu1_ref[l], 0.0)
        u = jnp.maximum(mm(u.astype(bf16), wu2_ref[l]) + bu2_ref[l], 0.0)

        # residual from MPNNModel.forward: h = h + conv(h, ...)
        h = h + u

    # global_mean_pool: sums via pre-transposed bf16 one-hot, counts precomputed.
    sums = mm(pool_oh, h.astype(bf16))                             # (G, emb)
    h_graph = sums * inv_cnt_ref[...]                              # (G,1) bcast

    # lin_pred -> (G, 1)
    out_ref[...] = mm(h_graph, wp_ref[...]) + bp_ref[...]


# ---------------------------------------------------------------------------
# Wrapper: BN folding done at param build time; index prep, weight splitting /
# bf16 casting, VMEM-budget selection, pallas_call plumbing here.
# ---------------------------------------------------------------------------
def _fold_linear_bn(W, b, gamma, beta, mean, var, eps=BN_EPS):
    """Fold eval-mode BatchNorm1d into the preceding Linear layer."""
    s = gamma / jnp.sqrt(var + eps)
    return W * s[None, :], b * s + beta - mean * s


def coord_mpnn_forward(x, edge_index, edge_attr, batch, params, num_graphs):
    n = x.shape[0]
    e = edge_index.shape[1]
    src = edge_index[0].astype(jnp.int32)     # source nodes j
    dst = edge_index[1].astype(jnp.int32)     # destination nodes i
    batch = batch.astype(jnp.int32)
    bf16 = jnp.bfloat16

    # Mean-pool reciprocal counts: data-independent given `batch`, so compute
    # outside the kernel (guarded against empty graphs).
    counts = jax.ops.segment_sum(jnp.ones((n,), jnp.float32), batch,
                                 num_segments=num_graphs)
    inv_counts = jnp.where(counts > 0, 1.0 / counts, 0.0).reshape(num_graphs, 1)

    # Split the concat-weights; cast MXU weights to bf16 (f32 accumulation in
    # the kernel).  The K=4 edge-attr slab stays f32 (VPU path).
    wm1a = params["wm1"][:, :EMB_DIM, :].astype(bf16)            # acts on h_i
    wm1b = params["wm1"][:, EMB_DIM:2 * EMB_DIM, :].astype(bf16)  # acts on h_j
    wm1c = params["wm1"][:, 2 * EMB_DIM:, :]                      # acts on edge_attr
    wm2 = params["wm2"].astype(bf16)
    wu1a = params["wu1"][:, :EMB_DIM, :].astype(bf16)            # acts on h
    wu1b = params["wu1"][:, EMB_DIM:, :].astype(bf16)            # acts on aggr
    wu2 = params["wu2"].astype(bf16)

    args = (
        x.astype(jnp.float32),
        dst.reshape(e, 1),                   # gather one-hot, left half (h_i)
        (src + n).reshape(e, 1),             # gather one-hot, right half (h_j), pre-offset by N
        dst.reshape(1, e),                   # lane-dense row (scatter one-hot)
        batch.reshape(1, n),                 # lane-dense row (pool one-hot)
        edge_attr.astype(jnp.float32), inv_counts,
        params["win"], params["bin"],
        wm1a, wm1b, wm1c, params["bm1"], wm2, params["bm2"],
        wu1a, wu1b, params["bu1"], wu2, params["bu2"],
        params["wp"], params["bp"],
    )

    # VMEM budget per generation: leave ~8 MiB headroom for compiler scratch,
    # cap at 112 MiB on 128 MiB parts (v5e/v6e); stays <= ~56 MiB on v7x.
    try:
        vmem_cap = int(pltpu.get_tpu_info().vmem_capacity_bytes)
    except Exception:
        vmem_cap = 64 * 1024 * 1024          # conservative: v7x per-TC size
    vmem_limit = min(vmem_cap - 8 * 1024 * 1024, 112 * 1024 * 1024)

    d = EMB_DIM
    per_layer = (
        2 * 2 * n * d * d                    # per-node Linears t_a, t_b
        + 2 * e * (2 * n) * d                # fused K=2N gather
        + 2 * e * EDGE_DIM * d               # edge-attr projection (VPU)
        + 2 * e * d * d                      # msg stage 2
        + 2 * n * e * d                      # scatter-add
        + 2 * 2 * n * d * d                  # upd stage 1 (split)
        + 2 * n * d * d)                     # upd stage 2
    flops = (2 * n * IN_DIM * d
             + NUM_LAYERS * per_layer
             + 2 * num_graphs * n * d        # mean pool
             + 2 * num_graphs * d * OUT_DIM)  # lin_pred
    bytes_accessed = sum(int(a.size) * a.dtype.itemsize for a in args) \
        + num_graphs * OUT_DIM * 4

    vmem = pl.BlockSpec(memory_space=pltpu.MemorySpace.VMEM)
    out = pl.pallas_call(
        _mpnn_kernel,
        out_shape=jax.ShapeDtypeStruct((num_graphs, OUT_DIM), jnp.float32),
        in_specs=[vmem] * len(args),
        out_specs=vmem,
        compiler_params=pltpu.CompilerParams(vmem_limit_bytes=int(vmem_limit)),
        cost_estimate=pl.CostEstimate(flops=int(flops), transcendentals=0,
                                      bytes_accessed=int(bytes_accessed)),
    )(*args)
    return out.reshape(-1)


# ---------------------------------------------------------------------------
# Deterministic parameter construction (synthetic weights, no checkpoint).
# ---------------------------------------------------------------------------
def make_params(key):
    keys = iter(jax.random.split(key, 128))

    def lin(k_in, k_out):
        return (0.1 * jax.random.normal(next(keys), (k_in, k_out), jnp.float32),
                0.1 * jax.random.normal(next(keys), (k_out,), jnp.float32))

    def bn(k):
        gamma = 1.0 + 0.1 * jax.random.normal(next(keys), (k,), jnp.float32)
        beta = 0.1 * jax.random.normal(next(keys), (k,), jnp.float32)
        mean = 0.1 * jax.random.normal(next(keys), (k,), jnp.float32)
        var = 0.5 + jax.random.uniform(next(keys), (k,), jnp.float32)
        return gamma, beta, mean, var

    win, bin_ = lin(IN_DIM, EMB_DIM)

    def layer_stage(k_in):
        W, b = lin(k_in, EMB_DIM)
        return _fold_linear_bn(W, b, *bn(EMB_DIM))

    wm1, bm1, wm2, bm2, wu1, bu1, wu2, bu2 = [], [], [], [], [], [], [], []
    for _ in range(NUM_LAYERS):
        W, b = layer_stage(2 * EMB_DIM + EDGE_DIM); wm1.append(W); bm1.append(b)
        W, b = layer_stage(EMB_DIM);                wm2.append(W); bm2.append(b)
        W, b = layer_stage(2 * EMB_DIM);            wu1.append(W); bu1.append(b)
        W, b = layer_stage(EMB_DIM);                wu2.append(W); bu2.append(b)

    wp, bp = lin(EMB_DIM, OUT_DIM)

    stack = lambda xs: jnp.stack(xs, axis=0)
    row = lambda xs: jnp.stack([v.reshape(1, -1) for v in xs], axis=0)
    return {
        "win": win, "bin": bin_.reshape(1, -1),
        "wm1": stack(wm1), "bm1": row(bm1),
        "wm2": stack(wm2), "bm2": row(bm2),
        "wu1": stack(wu1), "bu1": row(bu1),
        "wu2": stack(wu2), "bu2": row(bu2),
        "wp": wp, "bp": bp.reshape(1, -1),
    }


# ---------------------------------------------------------------------------
# Pure-JAX f32 reference for correctness checking.
# ---------------------------------------------------------------------------
def ref_forward(x, edge_index, edge_attr, batch, params, num_graphs):
    src, dst = edge_index[0], edge_index[1]
    n = x.shape[0]
    h = x @ params["win"] + params["bin"]
    for l in range(NUM_LAYERS):
        m = jnp.concatenate([h[dst], h[src], edge_attr], axis=-1)
        m = jax.nn.relu(m @ params["wm1"][l] + params["bm1"][l])
        m = jax.nn.relu(m @ params["wm2"][l] + params["bm2"][l])
        aggr = jax.ops.segment_sum(m, dst, num_segments=n)
        u = jnp.concatenate([h, aggr], axis=-1)
        u = jax.nn.relu(u @ params["wu1"][l] + params["bu1"][l])
        u = jax.nn.relu(u @ params["wu2"][l] + params["bu2"][l])
        h = h + u
    sums = jax.ops.segment_sum(h, batch, num_segments=num_graphs)
    counts = jax.ops.segment_sum(jnp.ones((n,), jnp.float32), batch,
                                 num_segments=num_graphs)
    h_graph = sums / counts[:, None]
    return (h_graph @ params["wp"] + params["bp"]).reshape(-1)


if __name__ == "__main__":
    key = jax.random.PRNGKey(0)
    k_x, k_e, k_a, k_p = jax.random.split(key, 4)

    N, E, G = 16, 32, 2                       # nodes, edges, graphs (small)
    x = jax.random.normal(k_x, (N, IN_DIM), jnp.float32)
    edge_index = jax.random.randint(k_e, (2, E), 0, N, jnp.int32)
    edge_attr = jax.random.normal(k_a, (E, EDGE_DIM), jnp.float32)
    batch = jnp.concatenate([jnp.zeros((N // 2,), jnp.int32),
                             jnp.ones((N - N // 2,), jnp.int32)])

    params = make_params(k_p)

    out = coord_mpnn_forward(x, edge_index, edge_attr, batch, params, G)
    out = jax.block_until_ready(out)

    ref = ref_forward(x, edge_index, edge_attr, batch, params, G)
    assert out.shape == (G,)
    # Tolerance reflects the deliberate bf16 routing of the layer-loop matmul
    # operands on the MXU (one-hots exact in bf16; weights/activations rounded
    # to bf16 after each f32-accumulated Linear).
    assert jnp.allclose(out, ref, atol=3e-2, rtol=3e-2), (out, ref)

    print("KERNEL_OK")
</pallas_src>

<mosaic_0001>
module attributes {stable_mosaic.version = 11 : i64} {
  func.func @_mpnn_kernel(%arg0: memref<16x11xf32, #tpu.memory_space<vmem>>, %arg1: memref<32x1xi32, #tpu.memory_space<vmem>>, %arg2: memref<32x1xi32, #tpu.memory_space<vmem>>, %arg3: memref<1x32xi32, #tpu.memory_space<vmem>>, %arg4: memref<1x16xi32, #tpu.memory_space<vmem>>, %arg5: memref<32x4xf32, #tpu.memory_space<vmem>>, %arg6: memref<2x1xf32, #tpu.memory_space<vmem>>, %arg7: memref<11x64xf32, #tpu.memory_space<vmem>>, %arg8: memref<1x64xf32, #tpu.memory_space<vmem>>, %arg9: memref<4x64x64xbf16, #tpu.memory_space<vmem>>, %arg10: memref<4x64x64xbf16, #tpu.memory_space<vmem>>, %arg11: memref<4x4x64xf32, #tpu.memory_space<vmem>>, %arg12: memref<4x1x64xf32, #tpu.memory_space<vmem>>, %arg13: memref<4x64x64xbf16, #tpu.memory_space<vmem>>, %arg14: memref<4x1x64xf32, #tpu.memory_space<vmem>>, %arg15: memref<4x64x64xbf16, #tpu.memory_space<vmem>>, %arg16: memref<4x64x64xbf16, #tpu.memory_space<vmem>>, %arg17: memref<4x1x64xf32, #tpu.memory_space<vmem>>, %arg18: memref<4x64x64xbf16, #tpu.memory_space<vmem>>, %arg19: memref<4x1x64xf32, #tpu.memory_space<vmem>>, %arg20: memref<64x1xf32, #tpu.memory_space<vmem>>, %arg21: memref<1x1xf32, #tpu.memory_space<vmem>>, %arg22: memref<2x1xf32, #tpu.memory_space<vmem>>) attributes {dimension_semantics = [], scalar_prefetch = 0 : i64, scratch_operands = 0 : i64, tpu.core_type = #tpu.core_type<tc>} {
    %c0 = arith.constant 0 : index
    %c0_0 = arith.constant 0 : index
    %0 = vector.load %arg0[%c0, %c0_0] : memref<16x11xf32, #tpu.memory_space<vmem>>, vector<16x11xf32>
    %c0_1 = arith.constant 0 : index
    %c0_2 = arith.constant 0 : index
    %1 = vector.load %arg7[%c0_1, %c0_2] : memref<11x64xf32, #tpu.memory_space<vmem>>, vector<11x64xf32>
    %cst = arith.constant dense<0.000000e+00> : vector<16x64xf32>
    %2 = tpu.matmul %0, %1, %cst {dimension_numbers = #tpu.dot_dimension_numbers<[1], [0], [0], [1], [0, 0, 1, 1], [], []>} : vector<16x11xf32>, vector<11x64xf32>, vector<16x64xf32> -> vector<16x64xf32>
    %c0_3 = arith.constant 0 : index
    %c0_4 = arith.constant 0 : index
    %3 = vector.load %arg8[%c0_3, %c0_4] : memref<1x64xf32, #tpu.memory_space<vmem>>, vector<1x64xf32>
    %4 = vector.broadcast %3 : vector<1x64xf32> to vector<16x64xf32>
    %5 = arith.addf %2, %4 : vector<16x64xf32>
    %6 = tpu.iota {dimensions = array<i32: 1>} : vector<32x32xi32>
    %c0_5 = arith.constant 0 : index
    %c0_6 = arith.constant 0 : index
    %7 = vector.load %arg1[%c0_5, %c0_6] : memref<32x1xi32, #tpu.memory_space<vmem>>, vector<32x1xi32>
    %8 = vector.broadcast %7 : vector<32x1xi32> to vector<32x32xi32>
    %9 = arith.cmpi eq, %6, %8 : vector<32x32xi32>
    %c0_7 = arith.constant 0 : index
    %c0_8 = arith.constant 0 : index
    %10 = vector.load %arg2[%c0_7, %c0_8] : memref<32x1xi32, #tpu.memory_space<vmem>>, vector<32x1xi32>
    %11 = vector.broadcast %10 : vector<32x1xi32> to vector<32x32xi32>
    %12 = arith.cmpi eq, %6, %11 : vector<32x32xi32>
    %13 = arith.ori %9, %12 : vector<32x32xi1>
    %14 = arith.extui %13 : vector<32x32xi1> to vector<32x32xi32>
    %15 = arith.sitofp %14 : vector<32x32xi32> to vector<32x32xf32>
    %16 = arith.truncf %15 : vector<32x32xf32> to vector<32x32xbf16>
    %17 = tpu.iota {dimensions = array<i32: 0>} : vector<16x32xi32>
    %c0_9 = arith.constant 0 : index
    %c0_10 = arith.constant 0 : index
    %18 = vector.load %arg3[%c0_9, %c0_10] : memref<1x32xi32, #tpu.memory_space<vmem>>, vector<1x32xi32>
    %19 = vector.broadcast %18 : vector<1x32xi32> to vector<16x32xi32>
    %20 = arith.cmpi eq, %17, %19 : vector<16x32xi32>
    %21 = arith.extui %20 : vector<16x32xi1> to vector<16x32xi32>
    %22 = arith.sitofp %21 : vector<16x32xi32> to vector<16x32xf32>
    %23 = arith.truncf %22 : vector<16x32xf32> to vector<16x32xbf16>
    %24 = tpu.iota {dimensions = array<i32: 0>} : vector<2x16xi32>
    %c0_11 = arith.constant 0 : index
    %c0_12 = arith.constant 0 : index
    %25 = vector.load %arg4[%c0_11, %c0_12] : memref<1x16xi32, #tpu.memory_space<vmem>>, vector<1x16xi32>
    %26 = vector.broadcast %25 : vector<1x16xi32> to vector<2x16xi32>
    %27 = arith.cmpi eq, %24, %26 : vector<2x16xi32>
    %28 = arith.extui %27 : vector<2x16xi1> to vector<2x16xi32>
    %29 = arith.sitofp %28 : vector<2x16xi32> to vector<2x16xf32>
    %30 = arith.truncf %29 : vector<2x16xf32> to vector<2x16xbf16>
    %c0_13 = arith.constant 0 : index
    %c0_14 = arith.constant 0 : index
    %31 = vector.load %arg5[%c0_13, %c0_14] : memref<32x4xf32, #tpu.memory_space<vmem>>, vector<32x4xf32>
    %32 = arith.truncf %5 : vector<16x64xf32> to vector<16x64xbf16>
    %c0_15 = arith.constant 0 : index
    %c0_16 = arith.constant 0 : index
    %c0_17 = arith.constant 0 : index
    %33 = vector.load %arg9[%c0_15, %c0_16, %c0_17] : memref<4x64x64xbf16, #tpu.memory_space<vmem>>, vector<1x64x64xbf16>
    %34 = vector.shape_cast %33 : vector<1x64x64xbf16> to vector<64x64xbf16>
    %cst_18 = arith.constant dense<0.000000e+00> : vector<16x64xf32>
    %35 = tpu.matmul %32, %34, %cst_18 {dimension_numbers = #tpu.dot_dimension_numbers<[1], [0], [0], [1], [0, 0, 1, 1], [], []>} : vector<16x64xbf16>, vector<64x64xbf16>, vector<16x64xf32> -> vector<16x64xf32>
    %c0_19 = arith.constant 0 : index
    %c0_20 = arith.constant 0 : index
    %c0_21 = arith.constant 0 : index
    %36 = vector.load %arg10[%c0_19, %c0_20, %c0_21] : memref<4x64x64xbf16, #tpu.memory_space<vmem>>, vector<1x64x64xbf16>
    %37 = vector.shape_cast %36 : vector<1x64x64xbf16> to vector<64x64xbf16>
    %cst_22 = arith.constant dense<0.000000e+00> : vector<16x64xf32>
    %38 = tpu.matmul %32, %37, %cst_22 {dimension_numbers = #tpu.dot_dimension_numbers<[1], [0], [0], [1], [0, 0, 1, 1], [], []>} : vector<16x64xbf16>, vector<64x64xbf16>, vector<16x64xf32> -> vector<16x64xf32>
    %39 = tpu.concatenate %35, %38 in 0 : vector<16x64xf32>, vector<16x64xf32> -> vector<32x64xf32>
    %40 = arith.truncf %39 : vector<32x64xf32> to vector<32x64xbf16>
    %c0_23 = arith.constant 0 : index
    %c0_24 = arith.constant 0 : index
    %c0_25 = arith.constant 0 : index
    %41 = vector.load %arg11[%c0_23, %c0_24, %c0_25] : memref<4x4x64xf32, #tpu.memory_space<vmem>>, vector<1x4x64xf32>
    %42 = vector.shape_cast %41 : vector<1x4x64xf32> to vector<4x64xf32>
    %c0_26 = arith.constant 0 : index
    %c0_27 = arith.constant 0 : index
    %c0_28 = arith.constant 0 : index
    %43 = vector.load %arg12[%c0_26, %c0_27, %c0_28] : memref<4x1x64xf32, #tpu.memory_space<vmem>>, vector<1x1x64xf32>
    %44 = vector.shape_cast %43 : vector<1x1x64xf32> to vector<1x64xf32>
    %45 = vector.extract_strided_slice %31 {offsets = [0, 0], sizes = [32, 1], strides = [1, 1]} : vector<32x4xf32> to vector<32x1xf32>
    %46 = vector.extract_strided_slice %42 {offsets = [0, 0], sizes = [1, 64], strides = [1, 1]} : vector<4x64xf32> to vector<1x64xf32>
    %47 = vector.broadcast %45 : vector<32x1xf32> to vector<32x64xf32>
    %48 = vector.broadcast %46 : vector<1x64xf32> to vector<32x64xf32>
    %49 = arith.mulf %47, %48 : vector<32x64xf32>
    %50 = vector.broadcast %44 : vector<1x64xf32> to vector<32x64xf32>
    %51 = arith.addf %50, %49 : vector<32x64xf32>
    %52 = vector.extract_strided_slice %31 {offsets = [0, 1], sizes = [32, 1], strides = [1, 1]} : vector<32x4xf32> to vector<32x1xf32>
    %53 = vector.extract_strided_slice %42 {offsets = [1, 0], sizes = [1, 64], strides = [1, 1]} : vector<4x64xf32> to vector<1x64xf32>
    %54 = vector.broadcast %52 : vector<32x1xf32> to vector<32x64xf32>
    %55 = vector.broadcast %53 : vector<1x64xf32> to vector<32x64xf32>
    %56 = arith.mulf %54, %55 : vector<32x64xf32>
    %57 = arith.addf %51, %56 : vector<32x64xf32>
    %58 = vector.extract_strided_slice %31 {offsets = [0, 2], sizes = [32, 1], strides = [1, 1]} : vector<32x4xf32> to vector<32x1xf32>
    %59 = vector.extract_strided_slice %42 {offsets = [2, 0], sizes = [1, 64], strides = [1, 1]} : vector<4x64xf32> to vector<1x64xf32>
    %60 = vector.broadcast %58 : vector<32x1xf32> to vector<32x64xf32>
    %61 = vector.broadcast %59 : vector<1x64xf32> to vector<32x64xf32>
    %62 = arith.mulf %60, %61 : vector<32x64xf32>
    %63 = arith.addf %57, %62 : vector<32x64xf32>
    %64 = vector.extract_strided_slice %31 {offsets = [0, 3], sizes = [32, 1], strides = [1, 1]} : vector<32x4xf32> to vector<32x1xf32>
    %65 = vector.extract_strided_slice %42 {offsets = [3, 0], sizes = [1, 64], strides = [1, 1]} : vector<4x64xf32> to vector<1x64xf32>
    %66 = vector.broadcast %64 : vector<32x1xf32> to vector<32x64xf32>
    %67 = vector.broadcast %65 : vector<1x64xf32> to vector<32x64xf32>
    %68 = arith.mulf %66, %67 : vector<32x64xf32>
    %69 = arith.addf %63, %68 : vector<32x64xf32>
    %cst_29 = arith.constant dense<0.000000e+00> : vector<32x64xf32>
    %70 = tpu.matmul %16, %40, %cst_29 {dimension_numbers = #tpu.dot_dimension_numbers<[1], [0], [0], [1], [0, 0, 1, 1], [], []>} : vector<32x32xbf16>, vector<32x64xbf16>, vector<32x64xf32> -> vector<32x64xf32>
    %71 = arith.addf %70, %69 : vector<32x64xf32>
    %cst_30 = arith.constant 0.000000e+00 : f32
    %72 = vector.broadcast %cst_30 : f32 to vector<32x64xf32>
    %73 = arith.maximumf %71, %72 : vector<32x64xf32>
    %74 = arith.truncf %73 : vector<32x64xf32> to vector<32x64xbf16>
    %c0_31 = arith.constant 0 : index
    %c0_32 = arith.constant 0 : index
    %c0_33 = arith.constant 0 : index
    %75 = vector.load %arg13[%c0_31, %c0_32, %c0_33] : memref<4x64x64xbf16, #tpu.memory_space<vmem>>, vector<1x64x64xbf16>
    %76 = vector.shape_cast %75 : vector<1x64x64xbf16> to vector<64x64xbf16>
    %cst_34 = arith.constant dense<0.000000e+00> : vector<32x64xf32>
    %77 = tpu.matmul %74, %76, %cst_34 {dimension_numbers = #tpu.dot_dimension_numbers<[1], [0], [0], [1], [0, 0, 1, 1], [], []>} : vector<32x64xbf16>, vector<64x64xbf16>, vector<32x64xf32> -> vector<32x64xf32>
    %c0_35 = arith.constant 0 : index
    %c0_36 = arith.constant 0 : index
    %c0_37 = arith.constant 0 : index
    %78 = vector.load %arg14[%c0_35, %c0_36, %c0_37] : memref<4x1x64xf32, #tpu.memory_space<vmem>>, vector<1x1x64xf32>
    %79 = vector.shape_cast %78 : vector<1x1x64xf32> to vector<1x64xf32>
    %80 = vector.broadcast %79 : vector<1x64xf32> to vector<32x64xf32>
    %81 = arith.addf %77, %80 : vector<32x64xf32>
    %cst_38 = arith.constant 0.000000e+00 : f32
    %82 = vector.broadcast %cst_38 : f32 to vector<32x64xf32>
    %83 = arith.maximumf %81, %82 : vector<32x64xf32>
    %84 = arith.truncf %83 : vector<32x64xf32> to vector<32x64xbf16>
    %cst_39 = arith.constant dense<0.000000e+00> : vector<16x64xf32>
    %85 = tpu.matmul %23, %84, %cst_39 {dimension_numbers = #tpu.dot_dimension_numbers<[1], [0], [0], [1], [0, 0, 1, 1], [], []>} : vector<16x32xbf16>, vector<32x64xbf16>, vector<16x64xf32> -> vector<16x64xf32>
    %c0_40 = arith.constant 0 : index
    %c0_41 = arith.constant 0 : index
    %c0_42 = arith.constant 0 : index
    %86 = vector.load %arg15[%c0_40, %c0_41, %c0_42] : memref<4x64x64xbf16, #tpu.memory_space<vmem>>, vector<1x64x64xbf16>
    %87 = vector.shape_cast %86 : vector<1x64x64xbf16> to vector<64x64xbf16>
    %cst_43 = arith.constant dense<0.000000e+00> : vector<16x64xf32>
    %88 = tpu.matmul %32, %87, %cst_43 {dimension_numbers = #tpu.dot_dimension_numbers<[1], [0], [0], [1], [0, 0, 1, 1], [], []>} : vector<16x64xbf16>, vector<64x64xbf16>, vector<16x64xf32> -> vector<16x64xf32>
    %89 = arith.truncf %85 : vector<16x64xf32> to vector<16x64xbf16>
    %c0_44 = arith.constant 0 : index
    %c0_45 = arith.constant 0 : index
    %c0_46 = arith.constant 0 : index
    %90 = vector.load %arg16[%c0_44, %c0_45, %c0_46] : memref<4x64x64xbf16, #tpu.memory_space<vmem>>, vector<1x64x64xbf16>
    %91 = vector.shape_cast %90 : vector<1x64x64xbf16> to vector<64x64xbf16>
    %cst_47 = arith.constant dense<0.000000e+00> : vector<16x64xf32>
    %92 = tpu.matmul %89, %91, %cst_47 {dimension_numbers = #tpu.dot_dimension_numbers<[1], [0], [0], [1], [0, 0, 1, 1], [], []>} : vector<16x64xbf16>, vector<64x64xbf16>, vector<16x64xf32> -> vector<16x64xf32>
    %93 = arith.addf %88, %92 : vector<16x64xf32>
    %c0_48 = arith.constant 0 : index
    %c0_49 = arith.constant 0 : index
    %c0_50 = arith.constant 0 : index
    %94 = vector.load %arg17[%c0_48, %c0_49, %c0_50] : memref<4x1x64xf32, #tpu.memory_space<vmem>>, vector<1x1x64xf32>
    %95 = vector.shape_cast %94 : vector<1x1x64xf32> to vector<1x64xf32>
    %96 = vector.broadcast %95 : vector<1x64xf32> to vector<16x64xf32>
    %97 = arith.addf %93, %96 : vector<16x64xf32>
    %cst_51 = arith.constant 0.000000e+00 : f32
    %98 = vector.broadcast %cst_51 : f32 to vector<16x64xf32>
    %99 = arith.maximumf %97, %98 : vector<16x64xf32>
    %100 = arith.truncf %99 : vector<16x64xf32> to vector<16x64xbf16>
    %c0_52 = arith.constant 0 : index
    %c0_53 = arith.constant 0 : index
    %c0_54 = arith.constant 0 : index
    %101 = vector.load %arg18[%c0_52, %c0_53, %c0_54] : memref<4x64x64xbf16, #tpu.memory_space<vmem>>, vector<1x64x64xbf16>
    %102 = vector.shape_cast %101 : vector<1x64x64xbf16> to vector<64x64xbf16>
    %cst_55 = arith.constant dense<0.000000e+00> : vector<16x64xf32>
    %103 = tpu.matmul %100, %102, %cst_55 {dimension_numbers = #tpu.dot_dimension_numbers<[1], [0], [0], [1], [0, 0, 1, 1], [], []>} : vector<16x64xbf16>, vector<64x64xbf16>, vector<16x64xf32> -> vector<16x64xf32>
    %c0_56 = arith.constant 0 : index
    %c0_57 = arith.constant 0 : index
    %c0_58 = arith.constant 0 : index
    %104 = vector.load %arg19[%c0_56, %c0_57, %c0_58] : memref<4x1x64xf32, #tpu.memory_space<vmem>>, vector<1x1x64xf32>
    %105 = vector.shape_cast %104 : vector<1x1x64xf32> to vector<1x64xf32>
    %106 = vector.broadcast %105 : vector<1x64xf32> to vector<16x64xf32>
    %107 = arith.addf %103, %106 : vector<16x64xf32>
    %cst_59 = arith.constant 0.000000e+00 : f32
    %108 = vector.broadcast %cst_59 : f32 to vector<16x64xf32>
    %109 = arith.maximumf %107, %108 : vector<16x64xf32>
    %110 = arith.addf %5, %109 : vector<16x64xf32>
    %111 = arith.truncf %110 : vector<16x64xf32> to vector<16x64xbf16>
    %c1 = arith.constant 1 : index
    %c0_60 = arith.constant 0 : index
    %c0_61 = arith.constant 0 : index
    %112 = vector.load %arg9[%c1, %c0_60, %c0_61] : memref<4x64x64xbf16, #tpu.memory_space<vmem>>, vector<1x64x64xbf16>
    %113 = vector.shape_cast %112 : vector<1x64x64xbf16> to vector<64x64xbf16>
    %cst_62 = arith.constant dense<0.000000e+00> : vector<16x64xf32>
    %114 = tpu.matmul %111, %113, %cst_62 {dimension_numbers = #tpu.dot_dimension_numbers<[1], [0], [0], [1], [0, 0, 1, 1], [], []>} : vector<16x64xbf16>, vector<64x64xbf16>, vector<16x64xf32> -> vector<16x64xf32>
    %c1_63 = arith.constant 1 : index
    %c0_64 = arith.constant 0 : index
    %c0_65 = arith.constant 0 : index
    %115 = vector.load %arg10[%c1_63, %c0_64, %c0_65] : memref<4x64x64xbf16, #tpu.memory_space<vmem>>, vector<1x64x64xbf16>
    %116 = vector.shape_cast %115 : vector<1x64x64xbf16> to vector<64x64xbf16>
    %cst_66 = arith.constant dense<0.000000e+00> : vector<16x64xf32>
    %117 = tpu.matmul %111, %116, %cst_66 {dimension_numbers = #tpu.dot_dimension_numbers<[1], [0], [0], [1], [0, 0, 1, 1], [], []>} : vector<16x64xbf16>, vector<64x64xbf16>, vector<16x64xf32> -> vector<16x64xf32>
    %118 = tpu.concatenate %114, %117 in 0 : vector<16x64xf32>, vector<16x64xf32> -> vector<32x64xf32>
    %119 = arith.truncf %118 : vector<32x64xf32> to vector<32x64xbf16>
    %c1_67 = arith.constant 1 : index
    %c0_68 = arith.constant 0 : index
    %c0_69 = arith.constant 0 : index
    %120 = vector.load %arg11[%c1_67, %c0_68, %c0_69] : memref<4x4x64xf32, #tpu.memory_space<vmem>>, vector<1x4x64xf32>
    %121 = vector.shape_cast %120 : vector<1x4x64xf32> to vector<4x64xf32>
    %c1_70 = arith.constant 1 : index
    %c0_71 = arith.constant 0 : index
    %c0_72 = arith.constant 0 : index
    %122 = vector.load %arg12[%c1_70, %c0_71, %c0_72] : memref<4x1x64xf32, #tpu.memory_space<vmem>>, vector<1x1x64xf32>
    %123 = vector.shape_cast %122 : vector<1x1x64xf32> to vector<1x64xf32>
    %124 = vector.extract_strided_slice %31 {offsets = [0, 0], sizes = [32, 1], strides = [1, 1]} : vector<32x4xf32> to vector<32x1xf32>
    %125 = vector.extract_strided_slice %121 {offsets = [0, 0], sizes = [1, 64], strides = [1, 1]} : vector<4x64xf32> to vector<1x64xf32>
    %126 = vector.broadcast %124 : vector<32x1xf32> to vector<32x64xf32>
    %127 = vector.broadcast %125 : vector<1x64xf32> to vector<32x64xf32>
    %128 = arith.mulf %126, %127 : vector<32x64xf32>
    %129 = vector.broadcast %123 : vector<1x64xf32> to vector<32x64xf32>
    %130 = arith.addf %129, %128 : vector<32x64xf32>
    %131 = vector.extract_strided_slice %31 {offsets = [0, 1], sizes = [32, 1], strides = [1, 1]} : vector<32x4xf32> to vector<32x1xf32>
    %132 = vector.extract_strided_slice %121 {offsets = [1, 0], sizes = [1, 64], strides = [1, 1]} : vector<4x64xf32> to vector<1x64xf32>
    %133 = vector.broadcast %131 : vector<32x1xf32> to vector<32x64xf32>
    %134 = vector.broadcast %132 : vector<1x64xf32> to vector<32x64xf32>
    %135 = arith.mulf %133, %134 : vector<32x64xf32>
    %136 = arith.addf %130, %135 : vector<32x64xf32>
    %137 = vector.extract_strided_slice %31 {offsets = [0, 2], sizes = [32, 1], strides = [1, 1]} : vector<32x4xf32> to vector<32x1xf32>
    %138 = vector.extract_strided_slice %121 {offsets = [2, 0], sizes = [1, 64], strides = [1, 1]} : vector<4x64xf32> to vector<1x64xf32>
    %139 = vector.broadcast %137 : vector<32x1xf32> to vector<32x64xf32>
    %140 = vector.broadcast %138 : vector<1x64xf32> to vector<32x64xf32>
    %141 = arith.mulf %139, %140 : vector<32x64xf32>
    %142 = arith.addf %136, %141 : vector<32x64xf32>
    %143 = vector.extract_strided_slice %31 {offsets = [0, 3], sizes = [32, 1], strides = [1, 1]} : vector<32x4xf32> to vector<32x1xf32>
    %144 = vector.extract_strided_slice %121 {offsets = [3, 0], sizes = [1, 64], strides = [1, 1]} : vector<4x64xf32> to vector<1x64xf32>
    %145 = vector.broadcast %143 : vector<32x1xf32> to vector<32x64xf32>
    %146 = vector.broadcast %144 : vector<1x64xf32> to vector<32x64xf32>
    %147 = arith.mulf %145, %146 : vector<32x64xf32>
    %148 = arith.addf %142, %147 : vector<32x64xf32>
    %cst_73 = arith.constant dense<0.000000e+00> : vector<32x64xf32>
    %149 = tpu.matmul %16, %119, %cst_73 {dimension_numbers = #tpu.dot_dimension_numbers<[1], [0], [0], [1], [0, 0, 1, 1], [], []>} : vector<32x32xbf16>, vector<32x64xbf16>, vector<32x64xf32> -> vector<32x64xf32>
    %150 = arith.addf %149, %148 : vector<32x64xf32>
    %cst_74 = arith.constant 0.000000e+00 : f32
    %151 = vector.broadcast %cst_74 : f32 to vector<32x64xf32>
    %152 = arith.maximumf %150, %151 : vector<32x64xf32>
    %153 = arith.truncf %152 : vector<32x64xf32> to vector<32x64xbf16>
    %c1_75 = arith.constant 1 : index
    %c0_76 = arith.constant 0 : index
    %c0_77 = arith.constant 0 : index
    %154 = vector.load %arg13[%c1_75, %c0_76, %c0_77] : memref<4x64x64xbf16, #tpu.memory_space<vmem>>, vector<1x64x64xbf16>
    %155 = vector.shape_cast %154 : vector<1x64x64xbf16> to vector<64x64xbf16>
    %cst_78 = arith.constant dense<0.000000e+00> : vector<32x64xf32>
    %156 = tpu.matmul %153, %155, %cst_78 {dimension_numbers = #tpu.dot_dimension_numbers<[1], [0], [0], [1], [0, 0, 1, 1], [], []>} : vector<32x64xbf16>, vector<64x64xbf16>, vector<32x64xf32> -> vector<32x64xf32>
    %c1_79 = arith.constant 1 : index
    %c0_80 = arith.constant 0 : index
    %c0_81 = arith.constant 0 : index
    %157 = vector.load %arg14[%c1_79, %c0_80, %c0_81] : memref<4x1x64xf32, #tpu.memory_space<vmem>>, vector<1x1x64xf32>
    %158 = vector.shape_cast %157 : vector<1x1x64xf32> to vector<1x64xf32>
    %159 = vector.broadcast %158 : vector<1x64xf32> to vector<32x64xf32>
    %160 = arith.addf %156, %159 : vector<32x64xf32>
    %cst_82 = arith.constant 0.000000e+00 : f32
    %161 = vector.broadcast %cst_82 : f32 to vector<32x64xf32>
    %162 = arith.maximumf %160, %161 : vector<32x64xf32>
    %163 = arith.truncf %162 : vector<32x64xf32> to vector<32x64xbf16>
    %cst_83 = arith.constant dense<0.000000e+00> : vector<16x64xf32>
    %164 = tpu.matmul %23, %163, %cst_83 {dimension_numbers = #tpu.dot_dimension_numbers<[1], [0], [0], [1], [0, 0, 1, 1], [], []>} : vector<16x32xbf16>, vector<32x64xbf16>, vector<16x64xf32> -> vector<16x64xf32>
    %c1_84 = arith.constant 1 : index
    %c0_85 = arith.constant 0 : index
    %c0_86 = arith.constant 0 : index
    %165 = vector.load %arg15[%c1_84, %c0_85, %c0_86] : memref<4x64x64xbf16, #tpu.memory_space<vmem>>, vector<1x64x64xbf16>
    %166 = vector.shape_cast %165 : vector<1x64x64xbf16> to vector<64x64xbf16>
    %cst_87 = arith.constant dense<0.000000e+00> : vector<16x64xf32>
    %167 = tpu.matmul %111, %166, %cst_87 {dimension_numbers = #tpu.dot_dimension_numbers<[1], [0], [0], [1], [0, 0, 1, 1], [], []>} : vector<16x64xbf16>, vector<64x64xbf16>, vector<16x64xf32> -> vector<16x64xf32>
    %168 = arith.truncf %164 : vector<16x64xf32> to vector<16x64xbf16>
    %c1_88 = arith.constant 1 : index
    %c0_89 = arith.constant 0 : index
    %c0_90 = arith.constant 0 : index
    %169 = vector.load %arg16[%c1_88, %c0_89, %c0_90] : memref<4x64x64xbf16, #tpu.memory_space<vmem>>, vector<1x64x64xbf16>
    %170 = vector.shape_cast %169 : vector<1x64x64xbf16> to vector<64x64xbf16>
    %cst_91 = arith.constant dense<0.000000e+00> : vector<16x64xf32>
    %171 = tpu.matmul %168, %170, %cst_91 {dimension_numbers = #tpu.dot_dimension_numbers<[1], [0], [0], [1], [0, 0, 1, 1], [], []>} : vector<16x64xbf16>, vector<64x64xbf16>, vector<16x64xf32> -> vector<16x64xf32>
    %172 = arith.addf %167, %171 : vector<16x64xf32>
    %c1_92 = arith.constant 1 : index
    %c0_93 = arith.constant 0 : index
    %c0_94 = arith.constant 0 : index
    %173 = vector.load %arg17[%c1_92, %c0_93, %c0_94] : memref<4x1x64xf32, #tpu.memory_space<vmem>>, vector<1x1x64xf32>
    %174 = vector.shape_cast %173 : vector<1x1x64xf32> to vector<1x64xf32>
    %175 = vector.broadcast %174 : vector<1x64xf32> to vector<16x64xf32>
    %176 = arith.addf %172, %175 : vector<16x64xf32>
    %cst_95 = arith.constant 0.000000e+00 : f32
    %177 = vector.broadcast %cst_95 : f32 to vector<16x64xf32>
    %178 = arith.maximumf %176, %177 : vector<16x64xf32>
    %179 = arith.truncf %178 : vector<16x64xf32> to vector<16x64xbf16>
    %c1_96 = arith.constant 1 : index
    %c0_97 = arith.constant 0 : index
    %c0_98 = arith.constant 0 : index
    %180 = vector.load %arg18[%c1_96, %c0_97, %c0_98] : memref<4x64x64xbf16, #tpu.memory_space<vmem>>, vector<1x64x64xbf16>
    %181 = vector.shape_cast %180 : vector<1x64x64xbf16> to vector<64x64xbf16>
    %cst_99 = arith.constant dense<0.000000e+00> : vector<16x64xf32>
    %182 = tpu.matmul %179, %181, %cst_99 {dimension_numbers = #tpu.dot_dimension_numbers<[1], [0], [0], [1], [0, 0, 1, 1], [], []>} : vector<16x64xbf16>, vector<64x64xbf16>, vector<16x64xf32> -> vector<16x64xf32>
    %c1_100 = arith.constant 1 : index
    %c0_101 = arith.constant 0 : index
    %c0_102 = arith.constant 0 : index
    %183 = vector.load %arg19[%c1_100, %c0_101, %c0_102] : memref<4x1x64xf32, #tpu.memory_space<vmem>>, vector<1x1x64xf32>
    %184 = vector.shape_cast %183 : vector<1x1x64xf32> to vector<1x64xf32>
    %185 = vector.broadcast %184 : vector<1x64xf32> to vector<16x64xf32>
    %186 = arith.addf %182, %185 : vector<16x64xf32>
    %cst_103 = arith.constant 0.000000e+00 : f32
    %187 = vector.broadcast %cst_103 : f32 to vector<16x64xf32>
    %188 = arith.maximumf %186, %187 : vector<16x64xf32>
    %189 = arith.addf %110, %188 : vector<16x64xf32>
    %190 = arith.truncf %189 : vector<16x64xf32> to vector<16x64xbf16>
    %c2 = arith.constant 2 : index
    %c0_104 = arith.constant 0 : index
    %c0_105 = arith.constant 0 : index
    %191 = vector.load %arg9[%c2, %c0_104, %c0_105] : memref<4x64x64xbf16, #tpu.memory_space<vmem>>, vector<1x64x64xbf16>
    %192 = vector.shape_cast %191 : vector<1x64x64xbf16> to vector<64x64xbf16>
    %cst_106 = arith.constant dense<0.000000e+00> : vector<16x64xf32>
    %193 = tpu.matmul %190, %192, %cst_106 {dimension_numbers = #tpu.dot_dimension_numbers<[1], [0], [0], [1], [0, 0, 1, 1], [], []>} : vector<16x64xbf16>, vector<64x64xbf16>, vector<16x64xf32> -> vector<16x64xf32>
    %c2_107 = arith.constant 2 : index
    %c0_108 = arith.constant 0 : index
    %c0_109 = arith.constant 0 : index
    %194 = vector.load %arg10[%c2_107, %c0_108, %c0_109] : memref<4x64x64xbf16, #tpu.memory_space<vmem>>, vector<1x64x64xbf16>
    %195 = vector.shape_cast %194 : vector<1x64x64xbf16> to vector<64x64xbf16>
    %cst_110 = arith.constant dense<0.000000e+00> : vector<16x64xf32>
    %196 = tpu.matmul %190, %195, %cst_110 {dimension_numbers = #tpu.dot_dimension_numbers<[1], [0], [0], [1], [0, 0, 1, 1], [], []>} : vector<16x64xbf16>, vector<64x64xbf16>, vector<16x64xf32> -> vector<16x64xf32>
    %197 = tpu.concatenate %193, %196 in 0 : vector<16x64xf32>, vector<16x64xf32> -> vector<32x64xf32>
    %198 = arith.truncf %197 : vector<32x64xf32> to vector<32x64xbf16>
    %c2_111 = arith.constant 2 : index
    %c0_112 = arith.constant 0 : index
    %c0_113 = arith.constant 0 : index
    %199 = vector.load %arg11[%c2_111, %c0_112, %c0_113] : memref<4x4x64xf32, #tpu.memory_space<vmem>>, vector<1x4x64xf32>
    %200 = vector.shape_cast %199 : vector<1x4x64xf32> to vector<4x64xf32>
    %c2_114 = arith.constant 2 : index
    %c0_115 = arith.constant 0 : index
    %c0_116 = arith.constant 0 : index
    %201 = vector.load %arg12[%c2_114, %c0_115, %c0_116] : memref<4x1x64xf32, #tpu.memory_space<vmem>>, vector<1x1x64xf32>
    %202 = vector.shape_cast %201 : vector<1x1x64xf32> to vector<1x64xf32>
    %203 = vector.extract_strided_slice %31 {offsets = [0, 0], sizes = [32, 1], strides = [1, 1]} : vector<32x4xf32> to vector<32x1xf32>
    %204 = vector.extract_strided_slice %200 {offsets = [0, 0], sizes = [1, 64], strides = [1, 1]} : vector<4x64xf32> to vector<1x64xf32>
    %205 = vector.broadcast %203 : vector<32x1xf32> to vector<32x64xf32>
    %206 = vector.broadcast %204 : vector<1x64xf32> to vector<32x64xf32>
    %207 = arith.mulf %205, %206 : vector<32x64xf32>
    %208 = vector.broadcast %202 : vector<1x64xf32> to vector<32x64xf32>
    %209 = arith.addf %208, %207 : vector<32x64xf32>
    %210 = vector.extract_strided_slice %31 {offsets = [0, 1], sizes = [32, 1], strides = [1, 1]} : vector<32x4xf32> to vector<32x1xf32>
    %211 = vector.extract_strided_slice %200 {offsets = [1, 0], sizes = [1, 64], strides = [1, 1]} : vector<4x64xf32> to vector<1x64xf32>
    %212 = vector.broadcast %210 : vector<32x1xf32> to vector<32x64xf32>
    %213 = vector.broadcast %211 : vector<1x64xf32> to vector<32x64xf32>
    %214 = arith.mulf %212, %213 : vector<32x64xf32>
    %215 = arith.addf %209, %214 : vector<32x64xf32>
    %216 = vector.extract_strided_slice %31 {offsets = [0, 2], sizes = [32, 1], strides = [1, 1]} : vector<32x4xf32> to vector<32x1xf32>
    %217 = vector.extract_strided_slice %200 {offsets = [2, 0], sizes = [1, 64], strides = [1, 1]} : vector<4x64xf32> to vector<1x64xf32>
    %218 = vector.broadcast %216 : vector<32x1xf32> to vector<32x64xf32>
    %219 = vector.broadcast %217 : vector<1x64xf32> to vector<32x64xf32>
    %220 = arith.mulf %218, %219 : vector<32x64xf32>
    %221 = arith.addf %215, %220 : vector<32x64xf32>
    %222 = vector.extract_strided_slice %31 {offsets = [0, 3], sizes = [32, 1], strides = [1, 1]} : vector<32x4xf32> to vector<32x1xf32>
    %223 = vector.extract_strided_slice %200 {offsets = [3, 0], sizes = [1, 64], strides = [1, 1]} : vector<4x64xf32> to vector<1x64xf32>
    %224 = vector.broadcast %222 : vector<32x1xf32> to vector<32x64xf32>
    %225 = vector.broadcast %223 : vector<1x64xf32> to vector<32x64xf32>
    %226 = arith.mulf %224, %225 : vector<32x64xf32>
    %227 = arith.addf %221, %226 : vector<32x64xf32>
    %cst_117 = arith.constant dense<0.000000e+00> : vector<32x64xf32>
    %228 = tpu.matmul %16, %198, %cst_117 {dimension_numbers = #tpu.dot_dimension_numbers<[1], [0], [0], [1], [0, 0, 1, 1], [], []>} : vector<32x32xbf16>, vector<32x64xbf16>, vector<32x64xf32> -> vector<32x64xf32>
    %229 = arith.addf %228, %227 : vector<32x64xf32>
    %cst_118 = arith.constant 0.000000e+00 : f32
    %230 = vector.broadcast %cst_118 : f32 to vector<32x64xf32>
    %231 = arith.maximumf %229, %230 : vector<32x64xf32>
    %232 = arith.truncf %231 : vector<32x64xf32> to vector<32x64xbf16>
    %c2_119 = arith.constant 2 : index
    %c0_120 = arith.constant 0 : index
    %c0_121 = arith.constant 0 : index
    %233 = vector.load %arg13[%c2_119, %c0_120, %c0_121] : memref<4x64x64xbf16, #tpu.memory_space<vmem>>, vector<1x64x64xbf16>
    %234 = vector.shape_cast %233 : vector<1x64x64xbf16> to vector<64x64xbf16>
    %cst_122 = arith.constant dense<0.000000e+00> : vector<32x64xf32>
    %235 = tpu.matmul %232, %234, %cst_122 {dimension_numbers = #tpu.dot_dimension_numbers<[1], [0], [0], [1], [0, 0, 1, 1], [], []>} : vector<32x64xbf16>, vector<64x64xbf16>, vector<32x64xf32> -> vector<32x64xf32>
    %c2_123 = arith.constant 2 : index
    %c0_124 = arith.constant 0 : index
    %c0_125 = arith.constant 0 : index
    %236 = vector.load %arg14[%c2_123, %c0_124, %c0_125] : memref<4x1x64xf32, #tpu.memory_space<vmem>>, vector<1x1x64xf32>
    %237 = vector.shape_cast %236 : vector<1x1x64xf32> to vector<1x64xf32>
    %238 = vector.broadcast %237 : vector<1x64xf32> to vector<32x64xf32>
    %239 = arith.addf %235, %238 : vector<32x64xf32>
    %cst_126 = arith.constant 0.000000e+00 : f32
    %240 = vector.broadcast %cst_126 : f32 to vector<32x64xf32>
    %241 = arith.maximumf %239, %240 : vector<32x64xf32>
    %242 = arith.truncf %241 : vector<32x64xf32> to vector<32x64xbf16>
    %cst_127 = arith.constant dense<0.000000e+00> : vector<16x64xf32>
    %243 = tpu.matmul %23, %242, %cst_127 {dimension_numbers = #tpu.dot_dimension_numbers<[1], [0], [0], [1], [0, 0, 1, 1], [], []>} : vector<16x32xbf16>, vector<32x64xbf16>, vector<16x64xf32> -> vector<16x64xf32>
    %c2_128 = arith.constant 2 : index
    %c0_129 = arith.constant 0 : index
    %c0_130 = arith.constant 0 : index
    %244 = vector.load %arg15[%c2_128, %c0_129, %c0_130] : memref<4x64x64xbf16, #tpu.memory_space<vmem>>, vector<1x64x64xbf16>
    %245 = vector.shape_cast %244 : vector<1x64x64xbf16> to vector<64x64xbf16>
    %cst_131 = arith.constant dense<0.000000e+00> : vector<16x64xf32>
    %246 = tpu.matmul %190, %245, %cst_131 {dimension_numbers = #tpu.dot_dimension_numbers<[1], [0], [0], [1], [0, 0, 1, 1], [], []>} : vector<16x64xbf16>, vector<64x64xbf16>, vector<16x64xf32> -> vector<16x64xf32>
    %247 = arith.truncf %243 : vector<16x64xf32> to vector<16x64xbf16>
    %c2_132 = arith.constant 2 : index
    %c0_133 = arith.constant 0 : index
    %c0_134 = arith.constant 0 : index
    %248 = vector.load %arg16[%c2_132, %c0_133, %c0_134] : memref<4x64x64xbf16, #tpu.memory_space<vmem>>, vector<1x64x64xbf16>
    %249 = vector.shape_cast %248 : vector<1x64x64xbf16> to vector<64x64xbf16>
    %cst_135 = arith.constant dense<0.000000e+00> : vector<16x64xf32>
    %250 = tpu.matmul %247, %249, %cst_135 {dimension_numbers = #tpu.dot_dimension_numbers<[1], [0], [0], [1], [0, 0, 1, 1], [], []>} : vector<16x64xbf16>, vector<64x64xbf16>, vector<16x64xf32> -> vector<16x64xf32>
    %251 = arith.addf %246, %250 : vector<16x64xf32>
    %c2_136 = arith.constant 2 : index
    %c0_137 = arith.constant 0 : index
    %c0_138 = arith.constant 0 : index
    %252 = vector.load %arg17[%c2_136, %c0_137, %c0_138] : memref<4x1x64xf32, #tpu.memory_space<vmem>>, vector<1x1x64xf32>
    %253 = vector.shape_cast %252 : vector<1x1x64xf32> to vector<1x64xf32>
    %254 = vector.broadcast %253 : vector<1x64xf32> to vector<16x64xf32>
    %255 = arith.addf %251, %254 : vector<16x64xf32>
    %cst_139 = arith.constant 0.000000e+00 : f32
    %256 = vector.broadcast %cst_139 : f32 to vector<16x64xf32>
    %257 = arith.maximumf %255, %256 : vector<16x64xf32>
    %258 = arith.truncf %257 : vector<16x64xf32> to vector<16x64xbf16>
    %c2_140 = arith.constant 2 : index
    %c0_141 = arith.constant 0 : index
    %c0_142 = arith.constant 0 : index
    %259 = vector.load %arg18[%c2_140, %c0_141, %c0_142] : memref<4x64x64xbf16, #tpu.memory_space<vmem>>, vector<1x64x64xbf16>
    %260 = vector.shape_cast %259 : vector<1x64x64xbf16> to vector<64x64xbf16>
    %cst_143 = arith.constant dense<0.000000e+00> : vector<16x64xf32>
    %261 = tpu.matmul %258, %260, %cst_143 {dimension_numbers = #tpu.dot_dimension_numbers<[1], [0], [0], [1], [0, 0, 1, 1], [], []>} : vector<16x64xbf16>, vector<64x64xbf16>, vector<16x64xf32> -> vector<16x64xf32>
    %c2_144 = arith.constant 2 : index
    %c0_145 = arith.constant 0 : index
    %c0_146 = arith.constant 0 : index
    %262 = vector.load %arg19[%c2_144, %c0_145, %c0_146] : memref<4x1x64xf32, #tpu.memory_space<vmem>>, vector<1x1x64xf32>
    %263 = vector.shape_cast %262 : vector<1x1x64xf32> to vector<1x64xf32>
    %264 = vector.broadcast %263 : vector<1x64xf32> to vector<16x64xf32>
    %265 = arith.addf %261, %264 : vector<16x64xf32>
    %cst_147 = arith.constant 0.000000e+00 : f32
    %266 = vector.broadcast %cst_147 : f32 to vector<16x64xf32>
    %267 = arith.maximumf %265, %266 : vector<16x64xf32>
    %268 = arith.addf %189, %267 : vector<16x64xf32>
    %269 = arith.truncf %268 : vector<16x64xf32> to vector<16x64xbf16>
    %c3 = arith.constant 3 : index
    %c0_148 = arith.constant 0 : index
    %c0_149 = arith.constant 0 : index
    %270 = vector.load %arg9[%c3, %c0_148, %c0_149] : memref<4x64x64xbf16, #tpu.memory_space<vmem>>, vector<1x64x64xbf16>
    %271 = vector.shape_cast %270 : vector<1x64x64xbf16> to vector<64x64xbf16>
    %cst_150 = arith.constant dense<0.000000e+00> : vector<16x64xf32>
    %272 = tpu.matmul %269, %271, %cst_150 {dimension_numbers = #tpu.dot_dimension_numbers<[1], [0], [0], [1], [0, 0, 1, 1], [], []>} : vector<16x64xbf16>, vector<64x64xbf16>, vector<16x64xf32> -> vector<16x64xf32>
    %c3_151 = arith.constant 3 : index
    %c0_152 = arith.constant 0 : index
    %c0_153 = arith.constant 0 : index
    %273 = vector.load %arg10[%c3_151, %c0_152, %c0_153] : memref<4x64x64xbf16, #tpu.memory_space<vmem>>, vector<1x64x64xbf16>
    %274 = vector.shape_cast %273 : vector<1x64x64xbf16> to vector<64x64xbf16>
    %cst_154 = arith.constant dense<0.000000e+00> : vector<16x64xf32>
    %275 = tpu.matmul %269, %274, %cst_154 {dimension_numbers = #tpu.dot_dimension_numbers<[1], [0], [0], [1], [0, 0, 1, 1], [], []>} : vector<16x64xbf16>, vector<64x64xbf16>, vector<16x64xf32> -> vector<16x64xf32>
    %276 = tpu.concatenate %272, %275 in 0 : vector<16x64xf32>, vector<16x64xf32> -> vector<32x64xf32>
    %277 = arith.truncf %276 : vector<32x64xf32> to vector<32x64xbf16>
    %c3_155 = arith.constant 3 : index
    %c0_156 = arith.constant 0 : index
    %c0_157 = arith.constant 0 : index
    %278 = vector.load %arg11[%c3_155, %c0_156, %c0_157] : memref<4x4x64xf32, #tpu.memory_space<vmem>>, vector<1x4x64xf32>
    %279 = vector.shape_cast %278 : vector<1x4x64xf32> to vector<4x64xf32>
    %c3_158 = arith.constant 3 : index
    %c0_159 = arith.constant 0 : index
    %c0_160 = arith.constant 0 : index
    %280 = vector.load %arg12[%c3_158, %c0_159, %c0_160] : memref<4x1x64xf32, #tpu.memory_space<vmem>>, vector<1x1x64xf32>
    %281 = vector.shape_cast %280 : vector<1x1x64xf32> to vector<1x64xf32>
    %282 = vector.extract_strided_slice %31 {offsets = [0, 0], sizes = [32, 1], strides = [1, 1]} : vector<32x4xf32> to vector<32x1xf32>
    %283 = vector.extract_strided_slice %279 {offsets = [0, 0], sizes = [1, 64], strides = [1, 1]} : vector<4x64xf32> to vector<1x64xf32>
    %284 = vector.broadcast %282 : vector<32x1xf32> to vector<32x64xf32>
    %285 = vector.broadcast %283 : vector<1x64xf32> to vector<32x64xf32>
    %286 = arith.mulf %284, %285 : vector<32x64xf32>
    %287 = vector.broadcast %281 : vector<1x64xf32> to vector<32x64xf32>
    %288 = arith.addf %287, %286 : vector<32x64xf32>
    %289 = vector.extract_strided_slice %31 {offsets = [0, 1], sizes = [32, 1], strides = [1, 1]} : vector<32x4xf32> to vector<32x1xf32>
    %290 = vector.extract_strided_slice %279 {offsets = [1, 0], sizes = [1, 64], strides = [1, 1]} : vector<4x64xf32> to vector<1x64xf32>
    %291 = vector.broadcast %289 : vector<32x1xf32> to vector<32x64xf32>
    %292 = vector.broadcast %290 : vector<1x64xf32> to vector<32x64xf32>
    %293 = arith.mulf %291, %292 : vector<32x64xf32>
    %294 = arith.addf %288, %293 : vector<32x64xf32>
    %295 = vector.extract_strided_slice %31 {offsets = [0, 2], sizes = [32, 1], strides = [1, 1]} : vector<32x4xf32> to vector<32x1xf32>
    %296 = vector.extract_strided_slice %279 {offsets = [2, 0], sizes = [1, 64], strides = [1, 1]} : vector<4x64xf32> to vector<1x64xf32>
    %297 = vector.broadcast %295 : vector<32x1xf32> to vector<32x64xf32>
    %298 = vector.broadcast %296 : vector<1x64xf32> to vector<32x64xf32>
    %299 = arith.mulf %297, %298 : vector<32x64xf32>
    %300 = arith.addf %294, %299 : vector<32x64xf32>
    %301 = vector.extract_strided_slice %31 {offsets = [0, 3], sizes = [32, 1], strides = [1, 1]} : vector<32x4xf32> to vector<32x1xf32>
    %302 = vector.extract_strided_slice %279 {offsets = [3, 0], sizes = [1, 64], strides = [1, 1]} : vector<4x64xf32> to vector<1x64xf32>
    %303 = vector.broadcast %301 : vector<32x1xf32> to vector<32x64xf32>
    %304 = vector.broadcast %302 : vector<1x64xf32> to vector<32x64xf32>
    %305 = arith.mulf %303, %304 : vector<32x64xf32>
    %306 = arith.addf %300, %305 : vector<32x64xf32>
    %cst_161 = arith.constant dense<0.000000e+00> : vector<32x64xf32>
    %307 = tpu.matmul %16, %277, %cst_161 {dimension_numbers = #tpu.dot_dimension_numbers<[1], [0], [0], [1], [0, 0, 1, 1], [], []>} : vector<32x32xbf16>, vector<32x64xbf16>, vector<32x64xf32> -> vector<32x64xf32>
    %308 = arith.addf %307, %306 : vector<32x64xf32>
    %cst_162 = arith.constant 0.000000e+00 : f32
    %309 = vector.broadcast %cst_162 : f32 to vector<32x64xf32>
    %310 = arith.maximumf %308, %309 : vector<32x64xf32>
    %311 = arith.truncf %310 : vector<32x64xf32> to vector<32x64xbf16>
    %c3_163 = arith.constant 3 : index
    %c0_164 = arith.constant 0 : index
    %c0_165 = arith.constant 0 : index
    %312 = vector.load %arg13[%c3_163, %c0_164, %c0_165] : memref<4x64x64xbf16, #tpu.memory_space<vmem>>, vector<1x64x64xbf16>
    %313 = vector.shape_cast %312 : vector<1x64x64xbf16> to vector<64x64xbf16>
    %cst_166 = arith.constant dense<0.000000e+00> : vector<32x64xf32>
    %314 = tpu.matmul %311, %313, %cst_166 {dimension_numbers = #tpu.dot_dimension_numbers<[1], [0], [0], [1], [0, 0, 1, 1], [], []>} : vector<32x64xbf16>, vector<64x64xbf16>, vector<32x64xf32> -> vector<32x64xf32>
    %c3_167 = arith.constant 3 : index
    %c0_168 = arith.constant 0 : index
    %c0_169 = arith.constant 0 : index
    %315 = vector.load %arg14[%c3_167, %c0_168, %c0_169] : memref<4x1x64xf32, #tpu.memory_space<vmem>>, vector<1x1x64xf32>
    %316 = vector.shape_cast %315 : vector<1x1x64xf32> to vector<1x64xf32>
    %317 = vector.broadcast %316 : vector<1x64xf32> to vector<32x64xf32>
    %318 = arith.addf %314, %317 : vector<32x64xf32>
    %cst_170 = arith.constant 0.000000e+00 : f32
    %319 = vector.broadcast %cst_170 : f32 to vector<32x64xf32>
    %320 = arith.maximumf %318, %319 : vector<32x64xf32>
    %321 = arith.truncf %320 : vector<32x64xf32> to vector<32x64xbf16>
    %cst_171 = arith.constant dense<0.000000e+00> : vector<16x64xf32>
    %322 = tpu.matmul %23, %321, %cst_171 {dimension_numbers = #tpu.dot_dimension_numbers<[1], [0], [0], [1], [0, 0, 1, 1], [], []>} : vector<16x32xbf16>, vector<32x64xbf16>, vector<16x64xf32> -> vector<16x64xf32>
    %c3_172 = arith.constant 3 : index
    %c0_173 = arith.constant 0 : index
    %c0_174 = arith.constant 0 : index
    %323 = vector.load %arg15[%c3_172, %c0_173, %c0_174] : memref<4x64x64xbf16, #tpu.memory_space<vmem>>, vector<1x64x64xbf16>
    %324 = vector.shape_cast %323 : vector<1x64x64xbf16> to vector<64x64xbf16>
    %cst_175 = arith.constant dense<0.000000e+00> : vector<16x64xf32>
    %325 = tpu.matmul %269, %324, %cst_175 {dimension_numbers = #tpu.dot_dimension_numbers<[1], [0], [0], [1], [0, 0, 1, 1], [], []>} : vector<16x64xbf16>, vector<64x64xbf16>, vector<16x64xf32> -> vector<16x64xf32>
    %326 = arith.truncf %322 : vector<16x64xf32> to vector<16x64xbf16>
    %c3_176 = arith.constant 3 : index
    %c0_177 = arith.constant 0 : index
    %c0_178 = arith.constant 0 : index
    %327 = vector.load %arg16[%c3_176, %c0_177, %c0_178] : memref<4x64x64xbf16, #tpu.memory_space<vmem>>, vector<1x64x64xbf16>
    %328 = vector.shape_cast %327 : vector<1x64x64xbf16> to vector<64x64xbf16>
    %cst_179 = arith.constant dense<0.000000e+00> : vector<16x64xf32>
    %329 = tpu.matmul %326, %328, %cst_179 {dimension_numbers = #tpu.dot_dimension_numbers<[1], [0], [0], [1], [0, 0, 1, 1], [], []>} : vector<16x64xbf16>, vector<64x64xbf16>, vector<16x64xf32> -> vector<16x64xf32>
    %330 = arith.addf %325, %329 : vector<16x64xf32>
    %c3_180 = arith.constant 3 : index
    %c0_181 = arith.constant 0 : index
    %c0_182 = arith.constant 0 : index
    %331 = vector.load %arg17[%c3_180, %c0_181, %c0_182] : memref<4x1x64xf32, #tpu.memory_space<vmem>>, vector<1x1x64xf32>
    %332 = vector.shape_cast %331 : vector<1x1x64xf32> to vector<1x64xf32>
    %333 = vector.broadcast %332 : vector<1x64xf32> to vector<16x64xf32>
    %334 = arith.addf %330, %333 : vector<16x64xf32>
    %cst_183 = arith.constant 0.000000e+00 : f32
    %335 = vector.broadcast %cst_183 : f32 to vector<16x64xf32>
    %336 = arith.maximumf %334, %335 : vector<16x64xf32>
    %337 = arith.truncf %336 : vector<16x64xf32> to vector<16x64xbf16>
    %c3_184 = arith.constant 3 : index
    %c0_185 = arith.constant 0 : index
    %c0_186 = arith.constant 0 : index
    %338 = vector.load %arg18[%c3_184, %c0_185, %c0_186] : memref<4x64x64xbf16, #tpu.memory_space<vmem>>, vector<1x64x64xbf16>
    %339 = vector.shape_cast %338 : vector<1x64x64xbf16> to vector<64x64xbf16>
    %cst_187 = arith.constant dense<0.000000e+00> : vector<16x64xf32>
    %340 = tpu.matmul %337, %339, %cst_187 {dimension_numbers = #tpu.dot_dimension_numbers<[1], [0], [0], [1], [0, 0, 1, 1], [], []>} : vector<16x64xbf16>, vector<64x64xbf16>, vector<16x64xf32> -> vector<16x64xf32>
    %c3_188 = arith.constant 3 : index
    %c0_189 = arith.constant 0 : index
    %c0_190 = arith.constant 0 : index
    %341 = vector.load %arg19[%c3_188, %c0_189, %c0_190] : memref<4x1x64xf32, #tpu.memory_space<vmem>>, vector<1x1x64xf32>
    %342 = vector.shape_cast %341 : vector<1x1x64xf32> to vector<1x64xf32>
    %343 = vector.broadcast %342 : vector<1x64xf32> to vector<16x64xf32>
    %344 = arith.addf %340, %343 : vector<16x64xf32>
    %cst_191 = arith.constant 0.000000e+00 : f32
    %345 = vector.broadcast %cst_191 : f32 to vector<16x64xf32>
    %346 = arith.maximumf %344, %345 : vector<16x64xf32>
    %347 = arith.addf %268, %346 : vector<16x64xf32>
    %348 = arith.truncf %347 : vector<16x64xf32> to vector<16x64xbf16>
    %cst_192 = arith.constant dense<0.000000e+00> : vector<2x64xf32>
    %349 = tpu.matmul %30, %348, %cst_192 {dimension_numbers = #tpu.dot_dimension_numbers<[1], [0], [0], [1], [0, 0, 1, 1], [], []>} : vector<2x16xbf16>, vector<16x64xbf16>, vector<2x64xf32> -> vector<2x64xf32>
    %c0_193 = arith.constant 0 : index
    %c0_194 = arith.constant 0 : index
    %350 = vector.load %arg6[%c0_193, %c0_194] : memref<2x1xf32, #tpu.memory_space<vmem>>, vector<2x1xf32>
    %351 = vector.broadcast %350 : vector<2x1xf32> to vector<2x64xf32>
    %352 = arith.mulf %349, %351 : vector<2x64xf32>
    %c0_195 = arith.constant 0 : index
    %c0_196 = arith.constant 0 : index
    %353 = vector.load %arg20[%c0_195, %c0_196] : memref<64x1xf32, #tpu.memory_space<vmem>>, vector<64x1xf32>
    %cst_197 = arith.constant dense<0.000000e+00> : vector<2x1xf32>
    %354 = tpu.matmul %352, %353, %cst_197 {dimension_numbers = #tpu.dot_dimension_numbers<[1], [0], [0], [1], [0, 0, 1, 1], [], []>} : vector<2x64xf32>, vector<64x1xf32>, vector<2x1xf32> -> vector<2x1xf32>
    %c0_198 = arith.constant 0 : index
    %c0_199 = arith.constant 0 : index
    %355 = vector.load %arg21[%c0_198, %c0_199] : memref<1x1xf32, #tpu.memory_space<vmem>>, vector<1x1xf32>
    %356 = vector.broadcast %355 : vector<1x1xf32> to vector<2x1xf32>
    %357 = arith.addf %354, %356 : vector<2x1xf32>
    %c0_200 = arith.constant 0 : index
    %c0_201 = arith.constant 0 : index
    %358 = vector.load %arg22[%c0_200, %c0_201] : memref<2x1xf32, #tpu.memory_space<vmem>>, vector<2x1xf32>
    tpu.vector_store %arg22[%c0_200, %c0_201], %357 {strides = array<i32>} : memref<2x1xf32, #tpu.memory_space<vmem>>, vector<2x1xf32>,
    return
  }
}

</mosaic_0001>

<llo_original>
// kernel: tpu_custom_call.1
$region0: #{tpu_custom_call.1}
  #allocation0 [shape = 'u32[]', space=smem, size = 0x4, offset = 0x4, fixed_abs, tag = 'smem constant byte address 0x4 - core index']
  #allocation1 [shape = 'u32[144,128]{1,0:T(1,128)}', space=vmem, size = 0x12000, scoped, tag = 'internal scratch']
  #allocation2 [shape = 'f32[1,1]{1,0:T(1,128)S(1)}', space=vmem, size = 0x200, scoped, tag = 'scoped memory for tpu_custom_call.1']
  %s0 = inlined_call_operand.vmem [shape: f32[16,11], index: 0, kind: input, shape index: {}]
  %s1 = inlined_call_operand.vmem [shape: s32[32,1], index: 1, kind: input, shape index: {}]
  %s2 = inlined_call_operand.vmem [shape: s32[32,1], index: 2, kind: input, shape index: {}]
  %s3 = inlined_call_operand.vmem [shape: s32[1,32], index: 3, kind: input, shape index: {}]
  %s4 = inlined_call_operand.vmem [shape: s32[1,16], index: 4, kind: input, shape index: {}]
  %s5 = inlined_call_operand.vmem [shape: f32[32,4], index: 5, kind: input, shape index: {}]
  %s6 = inlined_call_operand.vmem [shape: f32[2,1], index: 6, kind: input, shape index: {}]
  %s7 = inlined_call_operand.vmem [shape: f32[11,64], index: 7, kind: input, shape index: {}]
  %s8 = inlined_call_operand.vmem [shape: f32[1,64], index: 8, kind: input, shape index: {}]
  %s9 = inlined_call_operand.vmem [shape: bf16[4,64,64], index: 9, kind: input, shape index: {}]
  %s10 = inlined_call_operand.hbm [shape: bf16[4,64,64], index: 10, kind: input, shape index: {}]
  %s11 = inlined_call_operand.vmem [shape: f32[4,4,64], index: 11, kind: input, shape index: {}]
  %s12 = inlined_call_operand.vmem [shape: f32[4,1,64], index: 12, kind: input, shape index: {}]
  %s13 = inlined_call_operand.hbm [shape: bf16[4,64,64], index: 13, kind: input, shape index: {}]
  %s14 = inlined_call_operand.vmem [shape: f32[4,1,64], index: 14, kind: input, shape index: {}]
  %s15 = inlined_call_operand.hbm [shape: bf16[4,64,64], index: 15, kind: input, shape index: {}]
  %s16 = inlined_call_operand.hbm [shape: bf16[4,64,64], index: 16, kind: input, shape index: {}]
  %s17 = inlined_call_operand.vmem [shape: f32[4,1,64], index: 17, kind: input, shape index: {}]
  %s18 = inlined_call_operand.hbm [shape: bf16[4,64,64], index: 18, kind: input, shape index: {}]
  %s19 = inlined_call_operand.vmem [shape: f32[4,1,64], index: 19, kind: input, shape index: {}]
  %s20 = inlined_call_operand.vmem [shape: f32[64,1], index: 20, kind: input, shape index: {}]
  %s21 = inlined_call_operand.<no memory space> [shape: f32[1,1], index: 21, kind: input, shape index: {}]
  %s22 = inlined_call_operand.vmem [shape: f32[2,1], index: 22, kind: output, shape index: {}]
  %s23 = sld [smem:[#allocation0]]
  $region118: #{tpu_custom_call.1} parent=0
    _
  %s25 = ssub.s32 1, %s23
  %s26 = scalar_select 0, %s25, %s23
  %v27 = vstv %s21
  %28 = vst [vmem:[#allocation2] sm:$0x1] %v27
  $region1: #{tpu_custom_call.1} parent=0
    #allocation3 [shape = 'u8[65536]{0}', space=vmem, size = 0x10000, scoped, tag = 'input window, operand 10, single buffered']
    #allocation4 [shape = 's32[1]{0}', space=sflag, size = 0x4, scoped, tag = 'scoped memory for tpu_custom_call.1']
    #allocation5 [shape = 'u8[65536]{0}', space=vmem, size = 0x10000, scoped, tag = 'input window, operand 13, single buffered']
    #allocation6 [shape = 's32[1]{0}', space=sflag, size = 0x4, scoped, tag = 'scoped memory for tpu_custom_call.1']
    #allocation7 [shape = 'u8[65536]{0}', space=vmem, size = 0x10000, scoped, tag = 'input window, operand 15, single buffered']
    #allocation8 [shape = 'u8[65536]{0}', space=vmem, size = 0x10000, scoped, tag = 'input window, operand 16, single buffered']
    #allocation9 [shape = 's32[1]{0}', space=sflag, size = 0x4, scoped, tag = 'scoped memory for tpu_custom_call.1']
    #allocation10 [shape = 'u8[65536]{0}', space=vmem, size = 0x10000, scoped, tag = 'input window, operand 18, single buffered']
    %29 = vsyncpa [#allocation4], 0
    %30 = vsyncpa [#allocation6], 0
    %31 = vsyncpa [#allocation9], 0
    // Predicated region
    $region2: #{tpu_custom_call.1} parent=1 // pred_check
      _
    $region3: #{tpu_custom_call.1} parent=1 // pred_check_branch
      %33 = sbr.rel (0) target = $region5
    $region4: #{tpu_custom_call.1} parent=1 // pred_region
      _
    $region5: #{tpu_custom_call.1} parent=1 // pred_fallthru
      _
    // Predicated region
    $region6: #{tpu_custom_call.1} parent=1 // pred_check
      _
    $region7: #{tpu_custom_call.1} parent=1 // pred_check_branch
      %35 = sbr.rel (0) target = $region9
    $region8: #{tpu_custom_call.1} parent=1 // pred_region
      _
    $region9: #{tpu_custom_call.1} parent=1 // pred_fallthru
      _
    // Predicated region
    $region10: #{tpu_custom_call.1} parent=1 // pred_check
      _
    $region11: #{tpu_custom_call.1} parent=1 // pred_check_branch
      %37 = sbr.rel (0) target = $region13
    $region12: #{tpu_custom_call.1} parent=1 // pred_region
      _
    $region13: #{tpu_custom_call.1} parent=1 // pred_fallthru
      _
    // Predicated region
    $region14: #{tpu_custom_call.1} parent=1 // pred_check
      _
    $region15: #{tpu_custom_call.1} parent=1 // pred_check_branch
      %39 = sbr.rel (0) target = $region17
    $region16: #{tpu_custom_call.1} parent=1 // pred_region
      _
    $region17: #{tpu_custom_call.1} parent=1 // pred_fallthru
      _
    // Predicated region
    $region18: #{tpu_custom_call.1} parent=1 // pred_check
      _
    $region19: #{tpu_custom_call.1} parent=1 // pred_check_branch
      %41 = sbr.rel (0) target = $region21
    $region20: #{tpu_custom_call.1} parent=1 // pred_region
      _
    $region21: #{tpu_custom_call.1} parent=1 // pred_fallthru
      _
    // Predicated region
    $region22: #{tpu_custom_call.1} parent=1 // pred_check
      _
    $region23: #{tpu_custom_call.1} parent=1 // pred_check_branch
      %43 = sbr.rel (0) target = $region25
    $region24: #{tpu_custom_call.1} parent=1 // pred_region
      _
    $region25: #{tpu_custom_call.1} parent=1 // pred_fallthru
      _
    // Predicated region
    $region26: #{tpu_custom_call.1} parent=1 // pred_check
      _
    $region27: #{tpu_custom_call.1} parent=1 // pred_check_branch
      %45 = sbr.rel (0) target = $region29
    $region28: #{tpu_custom_call.1} parent=1 // pred_region
      _
    $region29: #{tpu_custom_call.1} parent=1 // pred_fallthru
      _
    // Predicated region
    $region30: #{tpu_custom_call.1} parent=1 // pred_check
      _
    $region31: #{tpu_custom_call.1} parent=1 // pred_check_branch
      %47 = sbr.rel (0) target = $region33
    $region32: #{tpu_custom_call.1} parent=1 // pred_region
      _
    $region33: #{tpu_custom_call.1} parent=1 // pred_fallthru
      _
    // Predicated region
    $region34: #{tpu_custom_call.1} parent=1 // pred_check
      _
    $region35: #{tpu_custom_call.1} parent=1 // pred_check_branch
      %49 = sbr.rel (0) target = $region37
    $region36: #{tpu_custom_call.1} parent=1 // pred_region
      _
    $region37: #{tpu_custom_call.1} parent=1 // pred_fallthru
      _
    // Predicated region
    $region38: #{tpu_custom_call.1} parent=1 // pred_check
      _
    $region39: #{tpu_custom_call.1} parent=1 // pred_check_branch
      %51 = sbr.rel (0) target = $region41
    $region40: #{tpu_custom_call.1} parent=1 // pred_region
      _
    $region41: #{tpu_custom_call.1} parent=1 // pred_fallthru
      _
    // Predicated region
    $region42: #{tpu_custom_call.1} parent=1 // pred_check
      _
    $region43: #{tpu_custom_call.1} parent=1 // pred_check_branch
      %53 = sbr.rel (0) target = $region45
    $region44: #{tpu_custom_call.1} parent=1 // pred_region
      %s55 = ssub.s32 2048, 2048
      %56 = vsyncadd [#allocation4], %s55
      %s57 = sshll.u32 [#allocation3], 4
      %s58 = int_to_ptr.vmem [resolvable:$true] %s57
      %63 = dma.hbm_to_vmem [thread:$0]  %s10, 2048, %s58, [#allocation4], 64, 64, 4
    $region45: #{tpu_custom_call.1} parent=1 // pred_fallthru
      _
    // Predicated region
    $region46: #{tpu_custom_call.1} parent=1 // pred_check
      _
    $region47: #{tpu_custom_call.1} parent=1 // pred_check_branch
      %65 = sbr.rel (0) target = $region49
    $region48: #{tpu_custom_call.1} parent=1 // pred_region
      _
    $region49: #{tpu_custom_call.1} parent=1 // pred_fallthru
      _
    // Predicated region
    $region50: #{tpu_custom_call.1} parent=1 // pred_check
      _
    $region51: #{tpu_custom_call.1} parent=1 // pred_check_branch
      %67 = sbr.rel (0) target = $region53
    $region52: #{tpu_custom_call.1} parent=1 // pred_region
      _
    $region53: #{tpu_custom_call.1} parent=1 // pred_fallthru
      _
    // Predicated region
    $region54: #{tpu_custom_call.1} parent=1 // pred_check
      _
    $region55: #{tpu_custom_call.1} parent=1 // pred_check_branch
      %69 = sbr.rel (0) target = $region57
    $region56: #{tpu_custom_call.1} parent=1 // pred_region
      %s71 = ssub.s32 2048, 2048
      %72 = vsyncadd [#allocation6], %s71
      %s73 = sshll.u32 [#allocation5], 4
      %s74 = int_to_ptr.vmem [resolvable:$true] %s73
      %79 = dma.hbm_to_vmem [thread:$0]  %s13, 2048, %s74, [#allocation6], 64, 64, 4
    $region57: #{tpu_custom_call.1} parent=1 // pred_fallthru
      _
    // Predicated region
    $region58: #{tpu_custom_call.1} parent=1 // pred_check
      _
    $region59: #{tpu_custom_call.1} parent=1 // pred_check_branch
      %81 = sbr.rel (0) target = $region61
    $region60: #{tpu_custom_call.1} parent=1 // pred_region
      _
    $region61: #{tpu_custom_call.1} parent=1 // pred_fallthru
      _
    // Predicated region
    $region62: #{tpu_custom_call.1} parent=1 // pred_check
      _
    $region63: #{tpu_custom_call.1} parent=1 // pred_check_branch
      %83 = sbr.rel (0) target = $region65
    $region64: #{tpu_custom_call.1} parent=1 // pred_region
      %s85 = ssub.s32 2048, 2048
      %86 = vsyncadd [#allocation6], %s85
      %s87 = sshll.u32 [#allocation7], 4
      %s88 = int_to_ptr.vmem [resolvable:$true] %s87
      %93 = dma.hbm_to_vmem [thread:$0]  %s15, 2048, %s88, [#allocation6], 64, 64, 4
    $region65: #{tpu_custom_call.1} parent=1 // pred_fallthru
      _
    // Predicated region
    $region66: #{tpu_custom_call.1} parent=1 // pred_check
      _
    $region67: #{tpu_custom_call.1} parent=1 // pred_check_branch
      %95 = sbr.rel (0) target = $region69
    $region68: #{tpu_custom_call.1} parent=1 // pred_region
      %s97 = ssub.s32 2048, 2048
      %98 = vsyncadd [#allocation9], %s97
      %s99 = sshll.u32 [#allocation8], 4
      %s100 = int_to_ptr.vmem [resolvable:$true] %s99
      %105 = dma.hbm_to_vmem [thread:$0]  %s16, 2048, %s100, [#allocation9], 64, 64, 4
    $region69: #{tpu_custom_call.1} parent=1 // pred_fallthru
      _
    // Predicated region
    $region70: #{tpu_custom_call.1} parent=1 // pred_check
      _
    $region71: #{tpu_custom_call.1} parent=1 // pred_check_branch
      %107 = sbr.rel (0) target = $region73
    $region72: #{tpu_custom_call.1} parent=1 // pred_region
      _
    $region73: #{tpu_custom_call.1} parent=1 // pred_fallthru
      _
    // Predicated region
    $region74: #{tpu_custom_call.1} parent=1 // pred_check
      _
    $region75: #{tpu_custom_call.1} parent=1 // pred_check_branch
      %109 = sbr.rel (0) target = $region77
    $region76: #{tpu_custom_call.1} parent=1 // pred_region
      %s111 = ssub.s32 2048, 2048
      %112 = vsyncadd [#allocation9], %s111
      %s113 = sshll.u32 [#allocation10], 4
      %s114 = int_to_ptr.vmem [resolvable:$true] %s113
      %119 = dma.hbm_to_vmem [thread:$0]  %s18, 2048, %s114, [#allocation9], 64, 64, 4
    $region77: #{tpu_custom_call.1} parent=1 // pred_fallthru
      _
    // Predicated region
    $region78: #{tpu_custom_call.1} parent=1 // pred_check
      _
    $region79: #{tpu_custom_call.1} parent=1 // pred_check_branch
      %121 = sbr.rel (0) target = $region81
    $region80: #{tpu_custom_call.1} parent=1 // pred_region
      _
    $region81: #{tpu_custom_call.1} parent=1 // pred_fallthru
      _
    // Predicated region
    $region82: #{tpu_custom_call.1} parent=1 // pred_check
      _
    $region83: #{tpu_custom_call.1} parent=1 // pred_check_branch
      %123 = sbr.rel (0) target = $region85
    $region84: #{tpu_custom_call.1} parent=1 // pred_region
      _
    $region85: #{tpu_custom_call.1} parent=1 // pred_fallthru
      _
    // Predicated region
    $region86: #{tpu_custom_call.1} parent=1 // pred_check
      _
    $region87: #{tpu_custom_call.1} parent=1 // pred_check_branch
      %125 = sbr.rel (0) target = $region89
    $region88: #{tpu_custom_call.1} parent=1 // pred_region
      _
    $region89: #{tpu_custom_call.1} parent=1 // pred_fallthru
      _
    // Predicated region
    $region90: #{tpu_custom_call.1} parent=1 // pred_check
      _
    $region91: #{tpu_custom_call.1} parent=1 // pred_check_branch
      %127 = sbr.rel (0) target = $region93
    $region92: #{tpu_custom_call.1} parent=1 // pred_region
      %128 = dma.done [#allocation4], 2048
    $region93: #{tpu_custom_call.1} parent=1 // pred_fallthru
      _
    // Predicated region
    $region94: #{tpu_custom_call.1} parent=1 // pred_check
      _
    $region95: #{tpu_custom_call.1} parent=1 // pred_check_branch
      %130 = sbr.rel (0) target = $region97
    $region96: #{tpu_custom_call.1} parent=1 // pred_region
      %131 = dma.done [#allocation6], 2048
    $region97: #{tpu_custom_call.1} parent=1 // pred_fallthru
      _
    // Predicated region
    $region98: #{tpu_custom_call.1} parent=1 // pred_check
      _
    $region99: #{tpu_custom_call.1} parent=1 // pred_check_branch
      %133 = sbr.rel (0) target = $region101
    $region100: #{tpu_custom_call.1} parent=1 // pred_region
      %134 = dma.done [#allocation6], 2048
    $region101: #{tpu_custom_call.1} parent=1 // pred_fallthru
      _
    // Predicated region
    $region102: #{tpu_custom_call.1} parent=1 // pred_check
      _
    $region103: #{tpu_custom_call.1} parent=1 // pred_check_branch
      %136 = sbr.rel (0) target = $region105
    $region104: #{tpu_custom_call.1} parent=1 // pred_region
      %137 = dma.done [#allocation9], 2048
    $region105: #{tpu_custom_call.1} parent=1 // pred_fallthru
      _
    // Predicated region
    $region106: #{tpu_custom_call.1} parent=1 // pred_check
      _
    $region107: #{tpu_custom_call.1} parent=1 // pred_check_branch
      %139 = sbr.rel (0) target = $region109
    $region108: #{tpu_custom_call.1} parent=1 // pred_region
      %140 = dma.done [#allocation9], 2048
    $region109: #{tpu_custom_call.1} parent=1 // pred_fallthru
      _
    %v142 = vld [vmem:[%s0] sm:$0xff]
    %v143 = vld [vmem:[%s0 + $0x8] sm:$0xff]
    %v144 = vld [vmem:[%s7] sm:$0xff]
    %v145 = vld [vmem:[%s7 + $0x8] sm:$0x7]
    %v146 = vld [vmem:[%s8] sm:$0x1]
    %v148 = vlaneseq
    %v149 = vshrl.u32 %v148, 7
    %v150 = vsub.s32 0, %v149
    %v151 = vrot.slane %v146, %v150
    %vm153 = vcmask 89088
    %v155 = vsel %vm153, %v142, 0
    %v158 = vsel %vm153, %v143, 0
    %vm160 = vcmask 1042432
    %v162 = vsel %vm160, %v145, 0
    %164 = vmatprep.subr.mxu0 0.0
    %165 = vmatpush1.msra.mxu0 %v144
    %166 = vmatprep.subr.mxu0 0.0
    %167 = vmatpush1.msra.mxu0 %v162
    %168 = vmatprep.subr.mxu0 0.0
    %169 = vmatpush1.msra.mxu0 0.0
    %170 = vmatprep.subr.mxu0 0.0
    %171 = vmatpush1.msra.mxu0 0.0
    %172 = vmatprep.subr.mxu0 0.0
    %173 = vmatpush1.msra.mxu0 0.0
    %174 = vmatprep.subr.mxu0 0.0
    %175 = vmatpush1.msra.mxu0 0.0
    %176 = vmatprep.subr.mxu0 0.0
    %177 = vmatpush1.msra.mxu0 0.0
    %178 = vmatprep.subr.mxu0 0.0
    %179 = vmatpush1.msra.mxu0 0.0
    %180 = vmatprep.subr.mxu0 0.0
    %181 = vmatpush1.msra.mxu0 0.0
    %182 = vmatprep.subr.mxu0 0.0
    %183 = vmatpush1.msra.mxu0 0.0
    %184 = vmatprep.subr.mxu0 0.0
    %185 = vmatpush1.msra.mxu0 0.0
    %186 = vmatprep.subr.mxu0 0.0
    %187 = vmatpush1.msra.mxu0 0.0
    %188 = vmatprep.subr.mxu0 0.0
    %189 = vmatpush1.msra.mxu0 0.0
    %190 = vmatprep.subr.mxu0 0.0
    %191 = vmatpush1.msra.mxu0 0.0
    %192 = vmatprep.subr.mxu0 0.0
    %193 = vmatpush1.msra.mxu0 0.0
    %194 = vmatprep.subr.mxu0 0.0
    %195 = vmatpush1.msra.mxu0 0.0
    %196 = vmatprep.subr.mxu0 0.0
    %197 = vmatpush1.msra.mxu0 0.0
    %198 = vmatprep.subr.mxu0 0.0
    %199 = vmatpush1.msra.mxu0 0.0
    %200 = vmatprep.subr.mxu0 0.0
    %201 = vmatpush1.msra.mxu0 0.0
    %202 = vmatprep.subr.mxu0 0.0
    %203 = vmatpush1.msra.mxu0 0.0
    %204 = vmatprep.subr.mxu0 0.0
    %205 = vmatpush1.msra.mxu0 0.0
    %206 = vmatprep.subr.mxu0 0.0
    %207 = vmatpush1.msra.mxu0 0.0
    %208 = vmatprep.subr.mxu0 0.0
    %209 = vmatpush1.msra.mxu0 0.0
    %210 = vmatprep.subr.mxu0 0.0
    %211 = vmatpush1.msra.mxu0 0.0
    %212 = vmatprep.subr.mxu0 0.0
    %213 = vmatpush1.msra.mxu0 0.0
    %214 = vmatprep.subr.mxu0 0.0
    %215 = vmatpush1.msra.mxu0 0.0
    %216 = vmatprep.subr.mxu0 0.0
    %217 = vmatpush1.msra.mxu0 0.0
    %218 = vmatprep.subr.mxu0 0.0
    %219 = vmatpush1.msra.mxu0 0.0
    %220 = vmatprep.subr.mxu0 0.0
    %221 = vmatpush1.msra.mxu0 0.0
    %222 = vmatprep.subr.mxu0 0.0
    %223 = vmatpush1.msra.mxu0 0.0
    %224 = vmatprep.subr.mxu0 0.0
    %225 = vmatpush1.msra.mxu0 0.0
    %226 = vmatprep.subr.mxu0 0.0
    %227 = vmatpush1.msra.mxu0 0.0
    %228 = vmatprep.mubr.f32.mxu0 0.0
    %229 = vmatmul.mubr.f32.gmra.mrb[0].mxu0 %v155
    %v230 = vpop.f32.mrb[0].mxu0
    %v231 = vadd.f32 %v151, %v230
    %v232 = vpop.f32.mrb[0].mxu0
    %233 = vmatprep.mubr.f32.mxu0 0.0
    %234 = vmatmul.mubr.f32.gmra.mrb[0].mxu0 %v158
    %v235 = vpop.f32.mrb[0].mxu0
    %v236 = vadd.f32 %v151, %v235
    %v237 = vpop.f32.mrb[0].mxu0
    %238 = vdwg.mxu0
    %v239 = vlaneseq
    %v240 = vand.u32 %v239, 127
    %v241 = vld [vmem:[%s1] sm:$0xff]
    %v242 = vld [vmem:[%s1 + $0x8] sm:$0xff]
    %v243 = vld [vmem:[%s1 + $0x10] sm:$0xff]
    %v244 = vld [vmem:[%s1 + $0x18] sm:$0xff]
    %245 = vset.pattern.permute.xlu0 0
    %246 = vperm.xlu0 %245, %v241
    %v247 = vpop.permute.xlu0 %246
    %248 = vset.pattern.permute.xlu0 0
    %249 = vperm.xlu0 %248, %v242
    %v250 = vpop.permute.xlu0 %249
    %251 = vset.pattern.permute.xlu0 0
    %252 = vperm.xlu0 %251, %v243
    %v253 = vpop.permute.xlu0 %252
    %254 = vset.pattern.permute.xlu0 0
    %255 = vperm.xlu0 %254, %v244
    %v256 = vpop.permute.xlu0 %255
    %vm257 = vcmp.eq.s32.totalorder %v240, %v247
    %vm258 = vcmp.eq.s32.totalorder %v240, %v250
    %vm259 = vcmp.eq.s32.totalorder %v240, %v253
    %vm260 = vcmp.eq.s32.totalorder %v240, %v256
    %v261 = vld [vmem:[%s2] sm:$0xff]
    %v262 = vld [vmem:[%s2 + $0x8] sm:$0xff]
    %v263 = vld [vmem:[%s2 + $0x10] sm:$0xff]
    %v264 = vld [vmem:[%s2 + $0x18] sm:$0xff]
    %265 = vset.pattern.permute.xlu0 0
    %266 = vperm.xlu0 %265, %v261
    %v267 = vpop.permute.xlu0 %266
    %268 = vset.pattern.permute.xlu0 0
    %269 = vperm.xlu0 %268, %v262
    %v270 = vpop.permute.xlu0 %269
    %271 = vset.pattern.permute.xlu0 0
    %272 = vperm.xlu0 %271, %v263
    %v273 = vpop.permute.xlu0 %272
    %274 = vset.pattern.permute.xlu0 0
    %275 = vperm.xlu0 %274, %v264
    %v276 = vpop.permute.xlu0 %275
    %vm277 = vcmp.eq.s32.totalorder %v240, %v267
    %vm278 = vcmp.eq.s32.totalorder %v240, %v270
    %vm279 = vcmp.eq.s32.totalorder %v240, %v273
    %vm280 = vcmp.eq.s32.totalorder %v240, %v276
    %vm281 = vmor %vm257, %vm277
    %vm282 = vmor %vm258, %vm278
    %vm283 = vmor %vm259, %vm279
    %vm284 = vmor %vm260, %vm280
    %v285 = vsel %vm281, 1, 0
    %v286 = vsel %vm282, 1, 0
    %v287 = vsel %vm283, 1, 0
    %v288 = vsel %vm284, 1, 0
    %v289 = vcvt.s32.f32 %v285
    %v290 = vcvt.s32.f32 %v286
    %v291 = vcvt.s32.f32 %v287
    %v292 = vcvt.s32.f32 %v288
    %v293 = vpack.c.bf16 %v290, %v289
    %v294 = vpack.c.bf16 %v292, %v291
    %v295 = vlaneseq
    %v296 = vshrl.u32 %v295, 7
    %v297 = vadd.s32 %v296, 8
    %v298 = vld [vmem:[%s3] sm:$0x1]
    %v299 = vlaneseq
    %v300 = vshrl.u32 %v299, 7
    %v301 = vsub.s32 0, %v300
    %v302 = vrot.slane %v298, %v301
    %vm303 = vcmp.eq.s32.totalorder %v296, %v302
    %vm304 = vcmp.eq.s32.totalorder %v297, %v302
    %v305 = vsel %vm303, 1, 0
    %v306 = vsel %vm304, 1, 0
    %v307 = vcvt.s32.f32 %v305
    %v308 = vcvt.s32.f32 %v306
    %v309 = vpack.c.bf16 %v308, %v307
    %v310 = vld [vmem:[%s4] sm:$0x1]
    %v311 = vlaneseq
    %v312 = vshrl.u32 %v311, 7
    %v313 = vsub.s32 0, %v312
    %v314 = vrot.slane %v310, %v313
    %vm315 = vcmp.eq.s32.totalorder %v296, %v314
    %v316 = vsel %vm315, 1, 0
    %v317 = vcvt.s32.f32 %v316
    %v318 = vpack.c.bf16 %v317, %v317
    %v319 = vld [vmem:[%s5] sm:$0xff]
    %v320 = vld [vmem:[%s5 + $0x8] sm:$0xff]
    %v321 = vld [vmem:[%s5 + $0x10] sm:$0xff]
    %v322 = vld [vmem:[%s5 + $0x18] sm:$0xff]
    %v323 = vpack.c.bf16 %v236, %v231
    %v324 = vld [vmem:[%s9] sm:$0xf]
    %v325 = vld [vmem:[%s9 + $0x4] sm:$0xf]
    %v326 = vld [vmem:[%s9 + $0x8] sm:$0xf]
    %v327 = vld [vmem:[%s9 + $0xc] sm:$0xf]
    %v328 = vld [vmem:[%s9 + $0x10] sm:$0xf]
    %v329 = vld [vmem:[%s9 + $0x14] sm:$0xf]
    %v330 = vld [vmem:[%s9 + $0x18] sm:$0xf]
    %v331 = vld [vmem:[%s9 + $0x1c] sm:$0xf]
    %v340 = vunpack.c.l.b16 %v324
    %v341 = vunpack.c.l.b16 %v325
    %v342 = vunpack.c.l.b16 %v326
    %v343 = vunpack.c.l.b16 %v327
    %v344 = vunpack.c.l.b16 %v328
    %v345 = vunpack.c.l.b16 %v329
    %v346 = vunpack.c.l.b16 %v330
    %v347 = vunpack.c.l.b16 %v331
    %v348 = vpack.c.b16 %v341, %v340
    %v349 = vpack.c.b16 %v343, %v342
    %v350 = vpack.c.b16 %v345, %v344
    %v351 = vpack.c.b16 %v347, %v346
    %vm356 = vcmask 523264
    %v358 = vsel %vm356, %v323, 0
    %360 = vmatprep.subr.bf16.mxu0 0
    %361 = vmatpush1.bf16.msra.mxu0 %v348
    %362 = vmatprep.subr.bf16.mxu0 0
    %363 = vmatpush1.bf16.msra.mxu0 %v349
    %364 = vmatprep.subr.bf16.mxu0 0
    %365 = vmatpush1.bf16.msra.mxu0 %v350
    %366 = vmatprep.subr.bf16.mxu0 0
    %367 = vmatpush1.bf16.msra.mxu0 %v351
    %368 = vmatprep.subr.bf16.mxu0 0
    %369 = vmatpush1.bf16.msra.mxu0 0
    %370 = vmatprep.subr.bf16.mxu0 0
    %371 = vmatpush1.bf16.msra.mxu0 0
    %372 = vmatprep.subr.bf16.mxu0 0
    %373 = vmatpush1.bf16.msra.mxu0 0
    %374 = vmatprep.subr.bf16.mxu0 0
    %375 = vmatpush1.bf16.msra.mxu0 0
    %376 = vmatprep.subr.bf16.mxu0 0
    %377 = vmatpush1.bf16.msra.mxu0 0
    %378 = vmatprep.subr.bf16.mxu0 0
    %379 = vmatpush1.bf16.msra.mxu0 0
    %380 = vmatprep.subr.bf16.mxu0 0
    %381 = vmatpush1.bf16.msra.mxu0 0
    %382 = vmatprep.subr.bf16.mxu0 0
    %383 = vmatpush1.bf16.msra.mxu0 0
    %384 = vmatprep.subr.bf16.mxu0 0
    %385 = vmatpush1.bf16.msra.mxu0 0
    %386 = vmatprep.subr.bf16.mxu0 0
    %387 = vmatpush1.bf16.msra.mxu0 0
    %388 = vmatprep.subr.bf16.mxu0 0
    %389 = vmatpush1.bf16.msra.mxu0 0
    %390 = vmatprep.subr.bf16.mxu0 0
    %391 = vmatpush1.bf16.msra.mxu0 0
    %392 = vmatprep.mubr.bf16.mxu0 0
    %393 = vmatmul.mubr.bf16.gmra.mrb[0].mxu0 %v358
    %v394 = vpop.f32.mrb[0].mxu0
    %v395 = vadd.f32 0.0, %v394
    %v396 = vpop.f32.mrb[0].mxu0
    %v397 = vpop.f32.mrb[0].mxu0
    %v398 = vadd.f32 0.0, %v397
    %v399 = vpop.f32.mrb[0].mxu0
    %400 = vdwg.mxu0
    %v401 = vld [vmem:[#allocation3] sm:$0xf]
    %v402 = vld [vmem:[#allocation3 + $0x4] sm:$0xf]
    %v403 = vld [vmem:[#allocation3 + $0x8] sm:$0xf]
    %v404 = vld [vmem:[#allocation3 + $0xc] sm:$0xf]
    %v405 = vld [vmem:[#allocation3 + $0x10] sm:$0xf]
    %v406 = vld [vmem:[#allocation3 + $0x14] sm:$0xf]
    %v407 = vld [vmem:[#allocation3 + $0x18] sm:$0xf]
    %v408 = vld [vmem:[#allocation3 + $0x1c] sm:$0xf]
    %v417 = vunpack.c.l.b16 %v401
    %v418 = vunpack.c.l.b16 %v402
    %v419 = vunpack.c.l.b16 %v403
    %v420 = vunpack.c.l.b16 %v404
    %v421 = vunpack.c.l.b16 %v405
    %v422 = vunpack.c.l.b16 %v406
    %v423 = vunpack.c.l.b16 %v407
    %v424 = vunpack.c.l.b16 %v408
    %v425 = vpack.c.b16 %v418, %v417
    %v426 = vpack.c.b16 %v420, %v419
    %v427 = vpack.c.b16 %v422, %v421
    %v428 = vpack.c.b16 %v424, %v423
    %433 = vmatprep.subr.bf16.mxu0 0
    %434 = vmatpush1.bf16.msra.mxu0 %v425
    %435 = vmatprep.subr.bf16.mxu0 0
    %436 = vmatpush1.bf16.msra.mxu0 %v426
    %437 = vmatprep.subr.bf16.mxu0 0
    %438 = vmatpush1.bf16.msra.mxu0 %v427
    %439 = vmatprep.subr.bf16.mxu0 0
    %440 = vmatpush1.bf16.msra.mxu0 %v428
    %441 = vmatprep.subr.bf16.mxu0 0
    %442 = vmatpush1.bf16.msra.mxu0 0
    %443 = vmatprep.subr.bf16.mxu0 0
    %444 = vmatpush1.bf16.msra.mxu0 0
    %445 = vmatprep.subr.bf16.mxu0 0
    %446 = vmatpush1.bf16.msra.mxu0 0
    %447 = vmatprep.subr.bf16.mxu0 0
    %448 = vmatpush1.bf16.msra.mxu0 0
    %449 = vmatprep.subr.bf16.mxu0 0
    %450 = vmatpush1.bf16.msra.mxu0 0
    %451 = vmatprep.subr.bf16.mxu0 0
    %452 = vmatpush1.bf16.msra.mxu0 0
    %453 = vmatprep.subr.bf16.mxu0 0
    %454 = vmatpush1.bf16.msra.mxu0 0
    %455 = vmatprep.subr.bf16.mxu0 0
    %456 = vmatpush1.bf16.msra.mxu0 0
    %457 = vmatprep.subr.bf16.mxu0 0
    %458 = vmatpush1.bf16.msra.mxu0 0
    %459 = vmatprep.subr.bf16.mxu0 0
    %460 = vmatpush1.bf16.msra.mxu0 0
    %461 = vmatprep.subr.bf16.mxu0 0
    %462 = vmatpush1.bf16.msra.mxu0 0
    %463 = vmatprep.subr.bf16.mxu0 0
    %464 = vmatpush1.bf16.msra.mxu0 0
    %465 = vmatprep.mubr.bf16.mxu0 0
    %466 = vmatmul.mubr.bf16.gmra.mrb[0].mxu0 %v358
    %v467 = vpop.f32.mrb[0].mxu0
    %v468 = vadd.f32 0.0, %v467
    %v469 = vpop.f32.mrb[0].mxu0
    %v470 = vpop.f32.mrb[0].mxu0
    %v471 = vadd.f32 0.0, %v470
    %v472 = vpop.f32.mrb[0].mxu0
    %473 = vdwg.mxu0
    %v474 = vpack.c.bf16 %v398, %v395
    %v475 = vpack.c.bf16 %v471, %v468
    %v476 = vld [vmem:[%s11] sm:$0xf]
    %v477 = vld [vmem:[%s12] sm:$0x1]
    %479 = vset.pattern.permute.xlu0 0
    %480 = vperm.xlu0 %479, %v319
    %v481 = vpop.permute.xlu0 %480
    %484 = vset.pattern.permute.xlu0 0
    %485 = vperm.xlu0 %484, %v320
    %v486 = vpop.permute.xlu0 %485
    %489 = vset.pattern.permute.xlu0 0
    %490 = vperm.xlu0 %489, %v321
    %v491 = vpop.permute.xlu0 %490
    %494 = vset.pattern.permute.xlu0 0
    %495 = vperm.xlu0 %494, %v322
    %v496 = vpop.permute.xlu0 %495
    %v498 = vlaneseq
    %v499 = vshrl.u32 %v498, 7
    %v500 = vsub.s32 0, %v499
    %v501 = vrot.slane %v476, %v500
    %v502 = vmul.f32 %v481, %v501
    %v503 = vmul.f32 %v486, %v501
    %v504 = vmul.f32 %v491, %v501
    %v505 = vmul.f32 %v496, %v501
    %v507 = vlaneseq
    %v508 = vshrl.u32 %v507, 7
    %v509 = vsub.s32 0, %v508
    %v510 = vrot.slane %v477, %v509
    %v512 = vadd.f32 %v510, %v502
    %v513 = vadd.f32 %v510, %v503
    %v514 = vadd.f32 %v510, %v504
    %v515 = vadd.f32 %v510, %v505
    %516 = vset.pattern.permute.xlu0 1
    %517 = vperm.xlu0 %516, %v319
    %v518 = vpop.permute.xlu0 %517
    %520 = vset.pattern.permute.xlu0 1
    %521 = vperm.xlu0 %520, %v320
    %v522 = vpop.permute.xlu0 %521
    %524 = vset.pattern.permute.xlu0 1
    %525 = vperm.xlu0 %524, %v321
    %v526 = vpop.permute.xlu0 %525
    %528 = vset.pattern.permute.xlu0 1
    %529 = vperm.xlu0 %528, %v322
    %v530 = vpop.permute.xlu0 %529
    %v532 = vlaneseq
    %v533 = vshrl.u32 %v532, 7
    %v534 = vsub.s32 1, %v533
    %v535 = vrot.slane %v476, %v534
    %v536 = vmul.f32 %v518, %v535
    %v537 = vmul.f32 %v522, %v535
    %v538 = vmul.f32 %v526, %v535
    %v539 = vmul.f32 %v530, %v535
    %v540 = vadd.f32 %v512, %v536
    %v541 = vadd.f32 %v513, %v537
    %v542 = vadd.f32 %v514, %v538
    %v543 = vadd.f32 %v515, %v539
    %544 = vset.pattern.permute.xlu0 2
    %545 = vperm.xlu0 %544, %v319
    %v546 = vpop.permute.xlu0 %545
    %548 = vset.pattern.permute.xlu0 2
    %549 = vperm.xlu0 %548, %v320
    %v550 = vpop.permute.xlu0 %549
    %552 = vset.pattern.permute.xlu0 2
    %553 = vperm.xlu0 %552, %v321
    %v554 = vpop.permute.xlu0 %553
    %556 = vset.pattern.permute.xlu0 2
    %557 = vperm.xlu0 %556, %v322
    %v558 = vpop.permute.xlu0 %557
    %v560 = vlaneseq
    %v561 = vshrl.u32 %v560, 7
    %v562 = vsub.s32 2, %v561
    %v563 = vrot.slane %v476, %v562
    %v564 = vmul.f32 %v546, %v563
    %v565 = vmul.f32 %v550, %v563
    %v566 = vmul.f32 %v554, %v563
    %v567 = vmul.f32 %v558, %v563
    %v568 = vadd.f32 %v540, %v564
    %v569 = vadd.f32 %v541, %v565
    %v570 = vadd.f32 %v542, %v566
    %v571 = vadd.f32 %v543, %v567
    %572 = vset.pattern.permute.xlu0 3
    %573 = vperm.xlu0 %572, %v319
    %v574 = vpop.permute.xlu0 %573
    %576 = vset.pattern.permute.xlu0 3
    %577 = vperm.xlu0 %576, %v320
    %v578 = vpop.permute.xlu0 %577
    %580 = vset.pattern.permute.xlu0 3
    %581 = vperm.xlu0 %580, %v321
    %v582 = vpop.permute.xlu0 %581
    %584 = vset.pattern.permute.xlu0 3
    %585 = vperm.xlu0 %584, %v322
    %v586 = vpop.permute.xlu0 %585
    %v588 = vlaneseq
    %v589 = vshrl.u32 %v588, 7
    %v590 = vsub.s32 3, %v589
    %v591 = vrot.slane %v476, %v590
    %v592 = vmul.f32 %v574, %v591
    %v593 = vmul.f32 %v578, %v591
    %v594 = vmul.f32 %v582, %v591
    %v595 = vmul.f32 %v586, %v591
    %v596 = vadd.f32 %v568, %v592
    %v597 = vadd.f32 %v569, %v593
    %v598 = vadd.f32 %v570, %v594
    %v599 = vadd.f32 %v571, %v595
    %vm600 = vcmask 261120
    %v602 = vsel %vm600, %v293, 0
    %v605 = vsel %vm600, %v294, 0
    %607 = vmatprep.subr.bf16.mxu0 0
    %608 = vmatpush1.bf16.msra.mxu0 %v474
    %609 = vmatprep.subr.bf16.mxu0 0
    %610 = vmatpush1.bf16.msra.mxu0 %v475
    %611 = vmatprep.subr.bf16.mxu0 0
    %612 = vmatpush1.bf16.msra.mxu0 0
    %613 = vmatprep.subr.bf16.mxu0 0
    %614 = vmatpush1.bf16.msra.mxu0 0
    %615 = vmatprep.subr.bf16.mxu0 0
    %616 = vmatpush1.bf16.msra.mxu0 0
    %617 = vmatprep.subr.bf16.mxu0 0
    %618 = vmatpush1.bf16.msra.mxu0 0
    %619 = vmatprep.subr.bf16.mxu0 0
    %620 = vmatpush1.bf16.msra.mxu0 0
    %621 = vmatprep.subr.bf16.mxu0 0
    %622 = vmatpush1.bf16.msra.mxu0 0
    %623 = vmatprep.subr.bf16.mxu0 0
    %624 = vmatpush1.bf16.msra.mxu0 0
    %625 = vmatprep.subr.bf16.mxu0 0
    %626 = vmatpush1.bf16.msra.mxu0 0
    %627 = vmatprep.subr.bf16.mxu0 0
    %628 = vmatpush1.bf16.msra.mxu0 0
    %629 = vmatprep.subr.bf16.mxu0 0
    %630 = vmatpush1.bf16.msra.mxu0 0
    %631 = vmatprep.subr.bf16.mxu0 0
    %632 = vmatpush1.bf16.msra.mxu0 0
    %633 = vmatprep.subr.bf16.mxu0 0
    %634 = vmatpush1.bf16.msra.mxu0 0
    %635 = vmatprep.subr.bf16.mxu0 0
    %636 = vmatpush1.bf16.msra.mxu0 0
    %637 = vmatprep.subr.bf16.mxu0 0
    %638 = vmatpush1.bf16.msra.mxu0 0
    %639 = vmatprep.mubr.bf16.mxu0 0
    %640 = vmatmul.mubr.bf16.gmra.mrb[0].mxu0 %v602
    %v641 = vpop.f32.mrb[0].mxu0
    %v642 = vadd.f32 %v596, %v641
    %v643 = vpop.f32.mrb[0].mxu0
    %v644 = vpop.f32.mrb[0].mxu0
    %v645 = vadd.f32 %v597, %v644
    %v646 = vpop.f32.mrb[0].mxu0
    %647 = vmatprep.mubr.bf16.mxu0 0
    %648 = vmatmul.mubr.bf16.gmra.mrb[0].mxu0 %v605
    %v649 = vpop.f32.mrb[0].mxu0
    %v650 = vadd.f32 %v598, %v649
    %v651 = vpop.f32.mrb[0].mxu0
    %v652 = vpop.f32.mrb[0].mxu0
    %v653 = vadd.f32 %v599, %v652
    %v654 = vpop.f32.mrb[0].mxu0
    %655 = vdwg.mxu0
    %v656 = vmax.f32 %v642, 0.0
    %v657 = vmax.f32 %v645, 0.0
    %v658 = vmax.f32 %v650, 0.0
    %v659 = vmax.f32 %v653, 0.0
    %v660 = vpack.c.bf16 %v657, %v656
    %v661 = vpack.c.bf16 %v659, %v658
    %v662 = vld [vmem:[#allocation5] sm:$0xf]
    %v663 = vld [vmem:[#allocation5 + $0x4] sm:$0xf]
    %v664 = vld [vmem:[#allocation5 + $0x8] sm:$0xf]
    %v665 = vld [vmem:[#allocation5 + $0xc] sm:$0xf]
    %v666 = vld [vmem:[#allocation5 + $0x10] sm:$0xf]
    %v667 = vld [vmem:[#allocation5 + $0x14] sm:$0xf]
    %v668 = vld [vmem:[#allocation5 + $0x18] sm:$0xf]
    %v669 = vld [vmem:[#allocation5 + $0x1c] sm:$0xf]
    %v670 = vld [vmem:[%s14] sm:$0x1]
    %v672 = vlaneseq
    %v673 = vshrl.u32 %v672, 7
    %v674 = vsub.s32 0, %v673
    %v675 = vrot.slane %v670, %v674
    %v685 = vunpack.c.l.b16 %v662
    %v686 = vunpack.c.l.b16 %v663
    %v687 = vunpack.c.l.b16 %v664
    %v688 = vunpack.c.l.b16 %v665
    %v689 = vunpack.c.l.b16 %v666
    %v690 = vunpack.c.l.b16 %v667
    %v691 = vunpack.c.l.b16 %v668
    %v692 = vunpack.c.l.b16 %v669
    %v693 = vpack.c.b16 %v686, %v685
    %v694 = vpack.c.b16 %v688, %v687
    %v695 = vpack.c.b16 %v690, %v689
    %v696 = vpack.c.b16 %v692, %v691
    %v702 = vsel %vm356, %v660, 0
    %v705 = vsel %vm356, %v661, 0
    %707 = vmatprep.subr.bf16.mxu0 0
    %708 = vmatpush1.bf16.msra.mxu0 %v693
    %709 = vmatprep.subr.bf16.mxu0 0
    %710 = vmatpush1.bf16.msra.mxu0 %v694
    %711 = vmatprep.subr.bf16.mxu0 0
    %712 = vmatpush1.bf16.msra.mxu0 %v695
    %713 = vmatprep.subr.bf16.mxu0 0
    %714 = vmatpush1.bf16.msra.mxu0 %v696
    %715 = vmatprep.subr.bf16.mxu0 0
    %716 = vmatpush1.bf16.msra.mxu0 0
    %717 = vmatprep.subr.bf16.mxu0 0
    %718 = vmatpush1.bf16.msra.mxu0 0
    %719 = vmatprep.subr.bf16.mxu0 0
    %720 = vmatpush1.bf16.msra.mxu0 0
    %721 = vmatprep.subr.bf16.mxu0 0
    %722 = vmatpush1.bf16.msra.mxu0 0
    %723 = vmatprep.subr.bf16.mxu0 0
    %724 = vmatpush1.bf16.msra.mxu0 0
    %725 = vmatprep.subr.bf16.mxu0 0
    %726 = vmatpush1.bf16.msra.mxu0 0
    %727 = vmatprep.subr.bf16.mxu0 0
    %728 = vmatpush1.bf16.msra.mxu0 0
    %729 = vmatprep.subr.bf16.mxu0 0
    %730 = vmatpush1.bf16.msra.mxu0 0
    %731 = vmatprep.subr.bf16.mxu0 0
    %732 = vmatpush1.bf16.msra.mxu0 0
    %733 = vmatprep.subr.bf16.mxu0 0
    %734 = vmatpush1.bf16.msra.mxu0 0
    %735 = vmatprep.subr.bf16.mxu0 0
    %736 = vmatpush1.bf16.msra.mxu0 0
    %737 = vmatprep.subr.bf16.mxu0 0
    %738 = vmatpush1.bf16.msra.mxu0 0
    %739 = vmatprep.mubr.bf16.mxu0 0
    %740 = vmatmul.mubr.bf16.gmra.mrb[0].mxu0 %v702
    %v741 = vpop.f32.mrb[0].mxu0
    %v742 = vadd.f32 %v675, %v741
    %v743 = vpop.f32.mrb[0].mxu0
    %v744 = vpop.f32.mrb[0].mxu0
    %v745 = vadd.f32 %v675, %v744
    %v746 = vpop.f32.mrb[0].mxu0
    %747 = vmatprep.mubr.bf16.mxu0 0
    %748 = vmatmul.mubr.bf16.gmra.mrb[0].mxu0 %v705
    %v749 = vpop.f32.mrb[0].mxu0
    %v750 = vadd.f32 %v675, %v749
    %v751 = vpop.f32.mrb[0].mxu0
    %v752 = vpop.f32.mrb[0].mxu0
    %v753 = vadd.f32 %v675, %v752
    %v754 = vpop.f32.mrb[0].mxu0
    %755 = vdwg.mxu0
    %v756 = vmax.f32 %v742, 0.0
    %v757 = vmax.f32 %v745, 0.0
    %v758 = vmax.f32 %v750, 0.0
    %v759 = vmax.f32 %v753, 0.0
    %v760 = vpack.c.bf16 %v757, %v756
    %v761 = vpack.c.bf16 %v759, %v758
    %v763 = vsel %vm600, %v309, 0
    %765 = vmatprep.subr.bf16.mxu0 0
    %766 = vmatpush1.bf16.msra.mxu0 %v760
    %767 = vmatprep.subr.bf16.mxu0 0
    %768 = vmatpush1.bf16.msra.mxu0 %v761
    %769 = vmatprep.subr.bf16.mxu0 0
    %770 = vmatpush1.bf16.msra.mxu0 0
    %771 = vmatprep.subr.bf16.mxu0 0
    %772 = vmatpush1.bf16.msra.mxu0 0
    %773 = vmatprep.subr.bf16.mxu0 0
    %774 = vmatpush1.bf16.msra.mxu0 0
    %775 = vmatprep.subr.bf16.mxu0 0
    %776 = vmatpush1.bf16.msra.mxu0 0
    %777 = vmatprep.subr.bf16.mxu0 0
    %778 = vmatpush1.bf16.msra.mxu0 0
    %779 = vmatprep.subr.bf16.mxu0 0
    %780 = vmatpush1.bf16.msra.mxu0 0
    %781 = vmatprep.subr.bf16.mxu0 0
    %782 = vmatpush1.bf16.msra.mxu0 0
    %783 = vmatprep.subr.bf16.mxu0 0
    %784 = vmatpush1.bf16.msra.mxu0 0
    %785 = vmatprep.subr.bf16.mxu0 0
    %786 = vmatpush1.bf16.msra.mxu0 0
    %787 = vmatprep.subr.bf16.mxu0 0
    %788 = vmatpush1.bf16.msra.mxu0 0
    %789 = vmatprep.subr.bf16.mxu0 0
    %790 = vmatpush1.bf16.msra.mxu0 0
    %791 = vmatprep.subr.bf16.mxu0 0
    %792 = vmatpush1.bf16.msra.mxu0 0
    %793 = vmatprep.subr.bf16.mxu0 0
    %794 = vmatpush1.bf16.msra.mxu0 0
    %795 = vmatprep.subr.bf16.mxu0 0
    %796 = vmatpush1.bf16.msra.mxu0 0
    %797 = vmatprep.mubr.bf16.mxu0 0
    %798 = vmatmul.mubr.bf16.gmra.mrb[0].mxu0 %v763
    %v799 = vpop.f32.mrb[0].mxu0
    %v800 = vadd.f32 0.0, %v799
    %v801 = vpop.f32.mrb[0].mxu0
    %v802 = vpop.f32.mrb[0].mxu0
    %v803 = vadd.f32 0.0, %v802
    %v804 = vpop.f32.mrb[0].mxu0
    %805 = vdwg.mxu0
    %v806 = vld [vmem:[#allocation7] sm:$0xf]
    %v807 = vld [vmem:[#allocation7 + $0x4] sm:$0xf]
    %v808 = vld [vmem:[#allocation7 + $0x8] sm:$0xf]
    %v809 = vld [vmem:[#allocation7 + $0xc] sm:$0xf]
    %v810 = vld [vmem:[#allocation7 + $0x10] sm:$0xf]
    %v811 = vld [vmem:[#allocation7 + $0x14] sm:$0xf]
    %v812 = vld [vmem:[#allocation7 + $0x18] sm:$0xf]
    %v813 = vld [vmem:[#allocation7 + $0x1c] sm:$0xf]
    %v814 = vpack.c.bf16 %v803, %v800
    %v815 = vld [vmem:[#allocation8] sm:$0xf]
    %v816 = vld [vmem:[#allocation8 + $0x4] sm:$0xf]
    %v817 = vld [vmem:[#allocation8 + $0x8] sm:$0xf]
    %v818 = vld [vmem:[#allocation8 + $0xc] sm:$0xf]
    %v819 = vld [vmem:[#allocation8 + $0x10] sm:$0xf]
    %v820 = vld [vmem:[#allocation8 + $0x14] sm:$0xf]
    %v821 = vld [vmem:[#allocation8 + $0x18] sm:$0xf]
    %v822 = vld [vmem:[#allocation8 + $0x1c] sm:$0xf]
    %v831 = vunpack.c.l.b16 %v815
    %v832 = vunpack.c.l.b16 %v816
    %v833 = vunpack.c.l.b16 %v817
    %v834 = vunpack.c.l.b16 %v818
    %v835 = vunpack.c.l.b16 %v819
    %v836 = vunpack.c.l.b16 %v820
    %v837 = vunpack.c.l.b16 %v821
    %v838 = vunpack.c.l.b16 %v822
    %v839 = vpack.c.b16 %v832, %v831
    %v840 = vpack.c.b16 %v834, %v833
    %v841 = vpack.c.b16 %v836, %v835
    %v842 = vpack.c.b16 %v838, %v837
    %v848 = vsel %vm356, %v814, 0
    %850 = vmatprep.subr.bf16.mxu0 0
    %851 = vmatpush1.bf16.msra.mxu0 %v839
    %852 = vmatprep.subr.bf16.mxu0 0
    %853 = vmatpush1.bf16.msra.mxu0 %v840
    %854 = vmatprep.subr.bf16.mxu0 0
    %855 = vmatpush1.bf16.msra.mxu0 %v841
    %856 = vmatprep.subr.bf16.mxu0 0
    %857 = vmatpush1.bf16.msra.mxu0 %v842
    %858 = vmatprep.subr.bf16.mxu0 0
    %859 = vmatpush1.bf16.msra.mxu0 0
    %860 = vmatprep.subr.bf16.mxu0 0
    %861 = vmatpush1.bf16.msra.mxu0 0
    %862 = vmatprep.subr.bf16.mxu0 0
    %863 = vmatpush1.bf16.msra.mxu0 0
    %864 = vmatprep.subr.bf16.mxu0 0
    %865 = vmatpush1.bf16.msra.mxu0 0
    %866 = vmatprep.subr.bf16.mxu0 0
    %867 = vmatpush1.bf16.msra.mxu0 0
    %868 = vmatprep.subr.bf16.mxu0 0
    %869 = vmatpush1.bf16.msra.mxu0 0
    %870 = vmatprep.subr.bf16.mxu0 0
    %871 = vmatpush1.bf16.msra.mxu0 0
    %872 = vmatprep.subr.bf16.mxu0 0
    %873 = vmatpush1.bf16.msra.mxu0 0
    %874 = vmatprep.subr.bf16.mxu0 0
    %875 = vmatpush1.bf16.msra.mxu0 0
    %876 = vmatprep.subr.bf16.mxu0 0
    %877 = vmatpush1.bf16.msra.mxu0 0
    %878 = vmatprep.subr.bf16.mxu0 0
    %879 = vmatpush1.bf16.msra.mxu0 0
    %880 = vmatprep.subr.bf16.mxu0 0
    %881 = vmatpush1.bf16.msra.mxu0 0
    %882 = vmatprep.mubr.bf16.mxu0 0
    %883 = vmatmul.mubr.bf16.gmra.mrb[0].mxu0 %v848
    %v884 = vpop.f32.mrb[0].mxu0
    %v885 = vadd.f32 0.0, %v884
    %v886 = vpop.f32.mrb[0].mxu0
    %v887 = vpop.f32.mrb[0].mxu0
    %v888 = vadd.f32 0.0, %v887
    %v889 = vpop.f32.mrb[0].mxu0
    %890 = vdwg.mxu0
    %v899 = vunpack.c.l.b16 %v806
    %v900 = vunpack.c.l.b16 %v807
    %v901 = vunpack.c.l.b16 %v808
    %v902 = vunpack.c.l.b16 %v809
    %v903 = vunpack.c.l.b16 %v810
    %v904 = vunpack.c.l.b16 %v811
    %v905 = vunpack.c.l.b16 %v812
    %v906 = vunpack.c.l.b16 %v813
    %v907 = vpack.c.b16 %v900, %v899
    %v908 = vpack.c.b16 %v902, %v901
    %v909 = vpack.c.b16 %v904, %v903
    %v910 = vpack.c.b16 %v906, %v905
    %915 = vmatprep.subr.bf16.mxu0 0
    %916 = vmatpush1.bf16.msra.mxu0 %v907
    %917 = vmatprep.subr.bf16.mxu0 0
    %918 = vmatpush1.bf16.msra.mxu0 %v908
    %919 = vmatprep.subr.bf16.mxu0 0
    %920 = vmatpush1.bf16.msra.mxu0 %v909
    %921 = vmatprep.subr.bf16.mxu0 0
    %922 = vmatpush1.bf16.msra.mxu0 %v910
    %923 = vmatprep.subr.bf16.mxu0 0
    %924 = vmatpush1.bf16.msra.mxu0 0
    %925 = vmatprep.subr.bf16.mxu0 0
    %926 = vmatpush1.bf16.msra.mxu0 0
    %927 = vmatprep.subr.bf16.mxu0 0
    %928 = vmatpush1.bf16.msra.mxu0 0
    %929 = vmatprep.subr.bf16.mxu0 0
    %930 = vmatpush1.bf16.msra.mxu0 0
    %931 = vmatprep.subr.bf16.mxu0 0
    %932 = vmatpush1.bf16.msra.mxu0 0
    %933 = vmatprep.subr.bf16.mxu0 0
    %934 = vmatpush1.bf16.msra.mxu0 0
    %935 = vmatprep.subr.bf16.mxu0 0
    %936 = vmatpush1.bf16.msra.mxu0 0
    %937 = vmatprep.subr.bf16.mxu0 0
    %938 = vmatpush1.bf16.msra.mxu0 0
    %939 = vmatprep.subr.bf16.mxu0 0
    %940 = vmatpush1.bf16.msra.mxu0 0
    %941 = vmatprep.subr.bf16.mxu0 0
    %942 = vmatpush1.bf16.msra.mxu0 0
    %943 = vmatprep.subr.bf16.mxu0 0
    %944 = vmatpush1.bf16.msra.mxu0 0
    %945 = vmatprep.subr.bf16.mxu0 0
    %946 = vmatpush1.bf16.msra.mxu0 0
    %947 = vmatprep.mubr.bf16.mxu0 0
    %948 = vmatmul.mubr.bf16.gmra.mrb[0].mxu0 %v358
    %v949 = vpop.f32.mrb[0].mxu0
    %v950 = vadd.f32 %v885, %v949
    %v951 = vpop.f32.mrb[0].mxu0
    %v952 = vpop.f32.mrb[0].mxu0
    %v953 = vadd.f32 %v888, %v952
    %v954 = vpop.f32.mrb[0].mxu0
    %955 = vdwg.mxu0
    %v956 = vld [vmem:[%s17] sm:$0x1]
    %v958 = vlaneseq
    %v959 = vshrl.u32 %v958, 7
    %v960 = vsub.s32 0, %v959
    %v961 = vrot.slane %v956, %v960
    %v963 = vadd.f32 %v950, %v961
    %v964 = vadd.f32 %v953, %v961
    %v965 = vmax.f32 %v963, 0.0
    %v966 = vmax.f32 %v964, 0.0
    %v967 = vpack.c.bf16 %v966, %v965
    %v968 = vld [vmem:[#allocation10] sm:$0xf]
    %v969 = vld [vmem:[#allocation10 + $0x4] sm:$0xf]
    %v970 = vld [vmem:[#allocation10 + $0x8] sm:$0xf]
    %v971 = vld [vmem:[#allocation10 + $0xc] sm:$0xf]
    %v972 = vld [vmem:[#allocation10 + $0x10] sm:$0xf]
    %v973 = vld [vmem:[#allocation10 + $0x14] sm:$0xf]
    %v974 = vld [vmem:[#allocation10 + $0x18] sm:$0xf]
    %v975 = vld [vmem:[#allocation10 + $0x1c] sm:$0xf]
    %v976 = vld [vmem:[%s19] sm:$0x1]
    %v978 = vlaneseq
    %v979 = vshrl.u32 %v978, 7
    %v980 = vsub.s32 0, %v979
    %v981 = vrot.slane %v976, %v980
    %v991 = vunpack.c.l.b16 %v968
    %v992 = vunpack.c.l.b16 %v969
    %v993 = vunpack.c.l.b16 %v970
    %v994 = vunpack.c.l.b16 %v971
    %v995 = vunpack.c.l.b16 %v972
    %v996 = vunpack.c.l.b16 %v973
    %v997 = vunpack.c.l.b16 %v974
    %v998 = vunpack.c.l.b16 %v975
    %v999 = vpack.c.b16 %v992, %v991
    %v1000 = vpack.c.b16 %v994, %v993
    %v1001 = vpack.c.b16 %v996, %v995
    %v1002 = vpack.c.b16 %v998, %v997
    %v1008 = vsel %vm356, %v967, 0
    %1010 = vmatprep.subr.bf16.mxu0 0
    %1011 = vmatpush1.bf16.msra.mxu0 %v999
    %1012 = vmatprep.subr.bf16.mxu0 0
    %1013 = vmatpush1.bf16.msra.mxu0 %v1000
    %1014 = vmatprep.subr.bf16.mxu0 0
    %1015 = vmatpush1.bf16.msra.mxu0 %v1001
    %1016 = vmatprep.subr.bf16.mxu0 0
    %1017 = vmatpush1.bf16.msra.mxu0 %v1002
    %1018 = vmatprep.subr.bf16.mxu0 0
    %1019 = vmatpush1.bf16.msra.mxu0 0
    %1020 = vmatprep.subr.bf16.mxu0 0
    %1021 = vmatpush1.bf16.msra.mxu0 0
    %1022 = vmatprep.subr.bf16.mxu0 0
    %1023 = vmatpush1.bf16.msra.mxu0 0
    %1024 = vmatprep.subr.bf16.mxu0 0
    %1025 = vmatpush1.bf16.msra.mxu0 0
    %1026 = vmatprep.subr.bf16.mxu0 0
    %1027 = vmatpush1.bf16.msra.mxu0 0
    %1028 = vmatprep.subr.bf16.mxu0 0
    %1029 = vmatpush1.bf16.msra.mxu0 0
    %1030 = vmatprep.subr.bf16.mxu0 0
    %1031 = vmatpush1.bf16.msra.mxu0 0
    %1032 = vmatprep.subr.bf16.mxu0 0
    %1033 = vmatpush1.bf16.msra.mxu0 0
    %1034 = vmatprep.subr.bf16.mxu0 0
    %1035 = vmatpush1.bf16.msra.mxu0 0
    %1036 = vmatprep.subr.bf16.mxu0 0
    %1037 = vmatpush1.bf16.msra.mxu0 0
    %1038 = vmatprep.subr.bf16.mxu0 0
    %1039 = vmatpush1.bf16.msra.mxu0 0
    %1040 = vmatprep.subr.bf16.mxu0 0
    %1041 = vmatpush1.bf16.msra.mxu0 0
    %1042 = vmatprep.mubr.bf16.mxu0 0
    %1043 = vmatmul.mubr.bf16.gmra.mrb[0].mxu0 %v1008
    %v1044 = vpop.f32.mrb[0].mxu0
    %v1045 = vadd.f32 %v981, %v1044
    %v1046 = vpop.f32.mrb[0].mxu0
    %v1047 = vpop.f32.mrb[0].mxu0
    %v1048 = vadd.f32 %v981, %v1047
    %v1049 = vpop.f32.mrb[0].mxu0
    %1050 = vdwg.mxu0
    %v1051 = vmax.f32 %v1045, 0.0
    %v1052 = vmax.f32 %v1048, 0.0
    %v1053 = vadd.f32 %v231, %v1051
    %v1054 = vadd.f32 %v236, %v1052
    %v1055 = vpack.c.bf16 %v1054, %v1053
    %s1056 = scalar_lea.vmem %s9, 32
    %v1057 = vld [vmem:[%s1056] sm:$0xf]
    %v1058 = vld [vmem:[%s1056 + $0x4] sm:$0xf]
    %v1059 = vld [vmem:[%s1056 + $0x8] sm:$0xf]
    %v1060 = vld [vmem:[%s1056 + $0xc] sm:$0xf]
    %v1061 = vld [vmem:[%s1056 + $0x10] sm:$0xf]
    %v1062 = vld [vmem:[%s1056 + $0x14] sm:$0xf]
    %v1063 = vld [vmem:[%s1056 + $0x18] sm:$0xf]
    %v1064 = vld [vmem:[%s1056 + $0x1c] sm:$0xf]
    %v1073 = vunpack.c.l.b16 %v1057
    %v1074 = vunpack.c.l.b16 %v1058
    %v1075 = vunpack.c.l.b16 %v1059
    %v1076 = vunpack.c.l.b16 %v1060
    %v1077 = vunpack.c.l.b16 %v1061
    %v1078 = vunpack.c.l.b16 %v1062
    %v1079 = vunpack.c.l.b16 %v1063
    %v1080 = vunpack.c.l.b16 %v1064
    %v1081 = vpack.c.b16 %v1074, %v1073
    %v1082 = vpack.c.b16 %v1076, %v1075
    %v1083 = vpack.c.b16 %v1078, %v1077
    %v1084 = vpack.c.b16 %v1080, %v1079
    %v1090 = vsel %vm356, %v1055, 0
    %1092 = vmatprep.subr.bf16.mxu0 0
    %1093 = vmatpush1.bf16.msra.mxu0 %v1081
    %1094 = vmatprep.subr.bf16.mxu0 0
    %1095 = vmatpush1.bf16.msra.mxu0 %v1082
    %1096 = vmatprep.subr.bf16.mxu0 0
    %1097 = vmatpush1.bf16.msra.mxu0 %v1083
    %1098 = vmatprep.subr.bf16.mxu0 0
    %1099 = vmatpush1.bf16.msra.mxu0 %v1084
    %1100 = vmatprep.subr.bf16.mxu0 0
    %1101 = vmatpush1.bf16.msra.mxu0 0
    %1102 = vmatprep.subr.bf16.mxu0 0
    %1103 = vmatpush1.bf16.msra.mxu0 0
    %1104 = vmatprep.subr.bf16.mxu0 0
    %1105 = vmatpush1.bf16.msra.mxu0 0
    %1106 = vmatprep.subr.bf16.mxu0 0
    %1107 = vmatpush1.bf16.msra.mxu0 0
    %1108 = vmatprep.subr.bf16.mxu0 0
    %1109 = vmatpush1.bf16.msra.mxu0 0
    %1110 = vmatprep.subr.bf16.mxu0 0
    %1111 = vmatpush1.bf16.msra.mxu0 0
    %1112 = vmatprep.subr.bf16.mxu0 0
    %1113 = vmatpush1.bf16.msra.mxu0 0
    %1114 = vmatprep.subr.bf16.mxu0 0
    %1115 = vmatpush1.bf16.msra.mxu0 0
    %1116 = vmatprep.subr.bf16.mxu0 0
    %1117 = vmatpush1.bf16.msra.mxu0 0
    %1118 = vmatprep.subr.bf16.mxu0 0
    %1119 = vmatpush1.bf16.msra.mxu0 0
    %1120 = vmatprep.subr.bf16.mxu0 0
    %1121 = vmatpush1.bf16.msra.mxu0 0
    %1122 = vmatprep.subr.bf16.mxu0 0
    %1123 = vmatpush1.bf16.msra.mxu0 0
    %1124 = vmatprep.mubr.bf16.mxu0 0
    %1125 = vmatmul.mubr.bf16.gmra.mrb[0].mxu0 %v1090
    %v1126 = vpop.f32.mrb[0].mxu0
    %v1127 = vadd.f32 0.0, %v1126
    %v1128 = vpop.f32.mrb[0].mxu0
    %v1129 = vpop.f32.mrb[0].mxu0
    %v1130 = vadd.f32 0.0, %v1129
    %v1131 = vpop.f32.mrb[0].mxu0
    %1132 = vdwg.mxu0
    %s1133 = scalar_lea.vmem [#allocation3], 32
    %v1134 = vld [vmem:[%s1133] sm:$0xf]
    %v1135 = vld [vmem:[%s1133 + $0x4] sm:$0xf]
    %v1136 = vld [vmem:[%s1133 + $0x8] sm:$0xf]
    %v1137 = vld [vmem:[%s1133 + $0xc] sm:$0xf]
    %v1138 = vld [vmem:[%s1133 + $0x10] sm:$0xf]
    %v1139 = vld [vmem:[%s1133 + $0x14] sm:$0xf]
    %v1140 = vld [vmem:[%s1133 + $0x18] sm:$0xf]
    %v1141 = vld [vmem:[%s1133 + $0x1c] sm:$0xf]
    %v1150 = vunpack.c.l.b16 %v1134
    %v1151 = vunpack.c.l.b16 %v1135
    %v1152 = vunpack.c.l.b16 %v1136
    %v1153 = vunpack.c.l.b16 %v1137
    %v1154 = vunpack.c.l.b16 %v1138
    %v1155 = vunpack.c.l.b16 %v1139
    %v1156 = vunpack.c.l.b16 %v1140
    %v1157 = vunpack.c.l.b16 %v1141
    %v1158 = vpack.c.b16 %v1151, %v1150
    %v1159 = vpack.c.b16 %v1153, %v1152
    %v1160 = vpack.c.b16 %v1155, %v1154
    %v1161 = vpack.c.b16 %v1157, %v1156
    %1166 = vmatprep.subr.bf16.mxu0 0
    %1167 = vmatpush1.bf16.msra.mxu0 %v1158
    %1168 = vmatprep.subr.bf16.mxu0 0
    %1169 = vmatpush1.bf16.msra.mxu0 %v1159
    %1170 = vmatprep.subr.bf16.mxu0 0
    %1171 = vmatpush1.bf16.msra.mxu0 %v1160
    %1172 = vmatprep.subr.bf16.mxu0 0
    %1173 = vmatpush1.bf16.msra.mxu0 %v1161
    %1174 = vmatprep.subr.bf16.mxu0 0
    %1175 = vmatpush1.bf16.msra.mxu0 0
    %1176 = vmatprep.subr.bf16.mxu0 0
    %1177 = vmatpush1.bf16.msra.mxu0 0
    %1178 = vmatprep.subr.bf16.mxu0 0
    %1179 = vmatpush1.bf16.msra.mxu0 0
    %1180 = vmatprep.subr.bf16.mxu0 0
    %1181 = vmatpush1.bf16.msra.mxu0 0
    %1182 = vmatprep.subr.bf16.mxu0 0
    %1183 = vmatpush1.bf16.msra.mxu0 0
    %1184 = vmatprep.subr.bf16.mxu0 0
    %1185 = vmatpush1.bf16.msra.mxu0 0
    %1186 = vmatprep.subr.bf16.mxu0 0
    %1187 = vmatpush1.bf16.msra.mxu0 0
    %1188 = vmatprep.subr.bf16.mxu0 0
    %1189 = vmatpush1.bf16.msra.mxu0 0
    %1190 = vmatprep.subr.bf16.mxu0 0
    %1191 = vmatpush1.bf16.msra.mxu0 0
    %1192 = vmatprep.subr.bf16.mxu0 0
    %1193 = vmatpush1.bf16.msra.mxu0 0
    %1194 = vmatprep.subr.bf16.mxu0 0
    %1195 = vmatpush1.bf16.msra.mxu0 0
    %1196 = vmatprep.subr.bf16.mxu0 0
    %1197 = vmatpush1.bf16.msra.mxu0 0
    %1198 = vmatprep.mubr.bf16.mxu0 0
    %1199 = vmatmul.mubr.bf16.gmra.mrb[0].mxu0 %v1090
    %v1200 = vpop.f32.mrb[0].mxu0
    %v1201 = vadd.f32 0.0, %v1200
    %v1202 = vpop.f32.mrb[0].mxu0
    %v1203 = vpop.f32.mrb[0].mxu0
    %v1204 = vadd.f32 0.0, %v1203
    %v1205 = vpop.f32.mrb[0].mxu0
    %1206 = vdwg.mxu0
    %v1207 = vpack.c.bf16 %v1130, %v1127
    %v1208 = vpack.c.bf16 %v1204, %v1201
    %s1209 = scalar_lea.vmem %s11, 4
    %v1210 = vld [vmem:[%s1209] sm:$0xf]
    %s1211 = scalar_lea.vmem %s12, 1
    %v1212 = vld [vmem:[%s1211] sm:$0x1]
    %v1213 = vlaneseq
    %v1214 = vshrl.u32 %v1213, 7
    %v1215 = vsub.s32 0, %v1214
    %v1216 = vrot.slane %v1210, %v1215
    %v1217 = vmul.f32 %v481, %v1216
    %v1218 = vmul.f32 %v486, %v1216
    %v1219 = vmul.f32 %v491, %v1216
    %v1220 = vmul.f32 %v496, %v1216
    %v1222 = vlaneseq
    %v1223 = vshrl.u32 %v1222, 7
    %v1224 = vsub.s32 0, %v1223
    %v1225 = vrot.slane %v1212, %v1224
    %v1227 = vadd.f32 %v1225, %v1217
    %v1228 = vadd.f32 %v1225, %v1218
    %v1229 = vadd.f32 %v1225, %v1219
    %v1230 = vadd.f32 %v1225, %v1220
    %v1231 = vlaneseq
    %v1232 = vshrl.u32 %v1231, 7
    %v1233 = vsub.s32 1, %v1232
    %v1234 = vrot.slane %v1210, %v1233
    %v1235 = vmul.f32 %v518, %v1234
    %v1236 = vmul.f32 %v522, %v1234
    %v1237 = vmul.f32 %v526, %v1234
    %v1238 = vmul.f32 %v530, %v1234
    %v1239 = vadd.f32 %v1227, %v1235
    %v1240 = vadd.f32 %v1228, %v1236
    %v1241 = vadd.f32 %v1229, %v1237
    %v1242 = vadd.f32 %v1230, %v1238
    %v1243 = vlaneseq
    %v1244 = vshrl.u32 %v1243, 7
    %v1245 = vsub.s32 2, %v1244
    %v1246 = vrot.slane %v1210, %v1245
    %v1247 = vmul.f32 %v546, %v1246
    %v1248 = vmul.f32 %v550, %v1246
    %v1249 = vmul.f32 %v554, %v1246
    %v1250 = vmul.f32 %v558, %v1246
    %v1251 = vadd.f32 %v1239, %v1247
    %v1252 = vadd.f32 %v1240, %v1248
    %v1253 = vadd.f32 %v1241, %v1249
    %v1254 = vadd.f32 %v1242, %v1250
    %v1255 = vlaneseq
    %v1256 = vshrl.u32 %v1255, 7
    %v1257 = vsub.s32 3, %v1256
    %v1258 = vrot.slane %v1210, %v1257
    %v1259 = vmul.f32 %v574, %v1258
    %v1260 = vmul.f32 %v578, %v1258
    %v1261 = vmul.f32 %v582, %v1258
    %v1262 = vmul.f32 %v586, %v1258
    %v1263 = vadd.f32 %v1251, %v1259
    %v1264 = vadd.f32 %v1252, %v1260
    %v1265 = vadd.f32 %v1253, %v1261
    %v1266 = vadd.f32 %v1254, %v1262
    %1267 = vmatprep.subr.bf16.mxu0 0
    %1268 = vmatpush1.bf16.msra.mxu0 %v1207
    %1269 = vmatprep.subr.bf16.mxu0 0
    %1270 = vmatpush1.bf16.msra.mxu0 %v1208
    %1271 = vmatprep.subr.bf16.mxu0 0
    %1272 = vmatpush1.bf16.msra.mxu0 0
    %1273 = vmatprep.subr.bf16.mxu0 0
    %1274 = vmatpush1.bf16.msra.mxu0 0
    %1275 = vmatprep.subr.bf16.mxu0 0
    %1276 = vmatpush1.bf16.msra.mxu0 0
    %1277 = vmatprep.subr.bf16.mxu0 0
    %1278 = vmatpush1.bf16.msra.mxu0 0
    %1279 = vmatprep.subr.bf16.mxu0 0
    %1280 = vmatpush1.bf16.msra.mxu0 0
    %1281 = vmatprep.subr.bf16.mxu0 0
    %1282 = vmatpush1.bf16.msra.mxu0 0
    %1283 = vmatprep.subr.bf16.mxu0 0
    %1284 = vmatpush1.bf16.msra.mxu0 0
    %1285 = vmatprep.subr.bf16.mxu0 0
    %1286 = vmatpush1.bf16.msra.mxu0 0
    %1287 = vmatprep.subr.bf16.mxu0 0
    %1288 = vmatpush1.bf16.msra.mxu0 0
    %1289 = vmatprep.subr.bf16.mxu0 0
    %1290 = vmatpush1.bf16.msra.mxu0 0
    %1291 = vmatprep.subr.bf16.mxu0 0
    %1292 = vmatpush1.bf16.msra.mxu0 0
    %1293 = vmatprep.subr.bf16.mxu0 0
    %1294 = vmatpush1.bf16.msra.mxu0 0
    %1295 = vmatprep.subr.bf16.mxu0 0
    %1296 = vmatpush1.bf16.msra.mxu0 0
    %1297 = vmatprep.subr.bf16.mxu0 0
    %1298 = vmatpush1.bf16.msra.mxu0 0
    %1299 = vmatprep.mubr.bf16.mxu0 0
    %1300 = vmatmul.mubr.bf16.gmra.mrb[0].mxu0 %v602
    %v1301 = vpop.f32.mrb[0].mxu0
    %v1302 = vadd.f32 %v1263, %v1301
    %v1303 = vpop.f32.mrb[0].mxu0
    %v1304 = vpop.f32.mrb[0].mxu0
    %v1305 = vadd.f32 %v1264, %v1304
    %v1306 = vpop.f32.mrb[0].mxu0
    %1307 = vmatprep.mubr.bf16.mxu0 0
    %1308 = vmatmul.mubr.bf16.gmra.mrb[0].mxu0 %v605
    %v1309 = vpop.f32.mrb[0].mxu0
    %v1310 = vadd.f32 %v1265, %v1309
    %v1311 = vpop.f32.mrb[0].mxu0
    %v1312 = vpop.f32.mrb[0].mxu0
    %v1313 = vadd.f32 %v1266, %v1312
    %v1314 = vpop.f32.mrb[0].mxu0
    %1315 = vdwg.mxu0
    %v1316 = vmax.f32 %v1302, 0.0
    %v1317 = vmax.f32 %v1305, 0.0
    %v1318 = vmax.f32 %v1310, 0.0
    %v1319 = vmax.f32 %v1313, 0.0
    %v1320 = vpack.c.bf16 %v1317, %v1316
    %v1321 = vpack.c.bf16 %v1319, %v1318
    %s1322 = scalar_lea.vmem [#allocation5], 32
    %v1323 = vld [vmem:[%s1322] sm:$0xf]
    %v1324 = vld [vmem:[%s1322 + $0x4] sm:$0xf]
    %v1325 = vld [vmem:[%s1322 + $0x8] sm:$0xf]
    %v1326 = vld [vmem:[%s1322 + $0xc] sm:$0xf]
    %v1327 = vld [vmem:[%s1322 + $0x10] sm:$0xf]
    %v1328 = vld [vmem:[%s1322 + $0x14] sm:$0xf]
    %v1329 = vld [vmem:[%s1322 + $0x18] sm:$0xf]
    %v1330 = vld [vmem:[%s1322 + $0x1c] sm:$0xf]
    %s1331 = scalar_lea.vmem %s14, 1
    %v1332 = vld [vmem:[%s1331] sm:$0x1]
    %v1334 = vlaneseq
    %v1335 = vshrl.u32 %v1334, 7
    %v1336 = vsub.s32 0, %v1335
    %v1337 = vrot.slane %v1332, %v1336
    %v1347 = vunpack.c.l.b16 %v1323
    %v1348 = vunpack.c.l.b16 %v1324
    %v1349 = vunpack.c.l.b16 %v1325
    %v1350 = vunpack.c.l.b16 %v1326
    %v1351 = vunpack.c.l.b16 %v1327
    %v1352 = vunpack.c.l.b16 %v1328
    %v1353 = vunpack.c.l.b16 %v1329
    %v1354 = vunpack.c.l.b16 %v1330
    %v1355 = vpack.c.b16 %v1348, %v1347
    %v1356 = vpack.c.b16 %v1350, %v1349
    %v1357 = vpack.c.b16 %v1352, %v1351
    %v1358 = vpack.c.b16 %v1354, %v1353
    %v1364 = vsel %vm356, %v1320, 0
    %v1367 = vsel %vm356, %v1321, 0
    %1369 = vmatprep.subr.bf16.mxu0 0
    %1370 = vmatpush1.bf16.msra.mxu0 %v1355
    %1371 = vmatprep.subr.bf16.mxu0 0
    %1372 = vmatpush1.bf16.msra.mxu0 %v1356
    %1373 = vmatprep.subr.bf16.mxu0 0
    %1374 = vmatpush1.bf16.msra.mxu0 %v1357
    %1375 = vmatprep.subr.bf16.mxu0 0
    %1376 = vmatpush1.bf16.msra.mxu0 %v1358
    %1377 = vmatprep.subr.bf16.mxu0 0
    %1378 = vmatpush1.bf16.msra.mxu0 0
    %1379 = vmatprep.subr.bf16.mxu0 0
    %1380 = vmatpush1.bf16.msra.mxu0 0
    %1381 = vmatprep.subr.bf16.mxu0 0
    %1382 = vmatpush1.bf16.msra.mxu0 0
    %1383 = vmatprep.subr.bf16.mxu0 0
    %1384 = vmatpush1.bf16.msra.mxu0 0
    %1385 = vmatprep.subr.bf16.mxu0 0
    %1386 = vmatpush1.bf16.msra.mxu0 0
    %1387 = vmatprep.subr.bf16.mxu0 0
    %1388 = vmatpush1.bf16.msra.mxu0 0
    %1389 = vmatprep.subr.bf16.mxu0 0
    %1390 = vmatpush1.bf16.msra.mxu0 0
    %1391 = vmatprep.subr.bf16.mxu0 0
    %1392 = vmatpush1.bf16.msra.mxu0 0
    %1393 = vmatprep.subr.bf16.mxu0 0
    %1394 = vmatpush1.bf16.msra.mxu0 0
    %1395 = vmatprep.subr.bf16.mxu0 0
    %1396 = vmatpush1.bf16.msra.mxu0 0
    %1397 = vmatprep.subr.bf16.mxu0 0
    %1398 = vmatpush1.bf16.msra.mxu0 0
    %1399 = vmatprep.subr.bf16.mxu0 0
    %1400 = vmatpush1.bf16.msra.mxu0 0
    %1401 = vmatprep.mubr.bf16.mxu0 0
    %1402 = vmatmul.mubr.bf16.gmra.mrb[0].mxu0 %v1364
    %v1403 = vpop.f32.mrb[0].mxu0
    %v1404 = vadd.f32 %v1337, %v1403
    %v1405 = vpop.f32.mrb[0].mxu0
    %v1406 = vpop.f32.mrb[0].mxu0
    %v1407 = vadd.f32 %v1337, %v1406
    %v1408 = vpop.f32.mrb[0].mxu0
    %1409 = vmatprep.mubr.bf16.mxu0 0
    %1410 = vmatmul.mubr.bf16.gmra.mrb[0].mxu0 %v1367
    %v1411 = vpop.f32.mrb[0].mxu0
    %v1412 = vadd.f32 %v1337, %v1411
    %v1413 = vpop.f32.mrb[0].mxu0
    %v1414 = vpop.f32.mrb[0].mxu0
    %v1415 = vadd.f32 %v1337, %v1414
    %v1416 = vpop.f32.mrb[0].mxu0
    %1417 = vdwg.mxu0
    %v1418 = vmax.f32 %v1404, 0.0
    %v1419 = vmax.f32 %v1407, 0.0
    %v1420 = vmax.f32 %v1412, 0.0
    %v1421 = vmax.f32 %v1415, 0.0
    %v1422 = vpack.c.bf16 %v1419, %v1418
    %v1423 = vpack.c.bf16 %v1421, %v1420
    %1424 = vmatprep.subr.bf16.mxu0 0
    %1425 = vmatpush1.bf16.msra.mxu0 %v1422
    %1426 = vmatprep.subr.bf16.mxu0 0
    %1427 = vmatpush1.bf16.msra.mxu0 %v1423
    %1428 = vmatprep.subr.bf16.mxu0 0
    %1429 = vmatpush1.bf16.msra.mxu0 0
    %1430 = vmatprep.subr.bf16.mxu0 0
    %1431 = vmatpush1.bf16.msra.mxu0 0
    %1432 = vmatprep.subr.bf16.mxu0 0
    %1433 = vmatpush1.bf16.msra.mxu0 0
    %1434 = vmatprep.subr.bf16.mxu0 0
    %1435 = vmatpush1.bf16.msra.mxu0 0
    %1436 = vmatprep.subr.bf16.mxu0 0
    %1437 = vmatpush1.bf16.msra.mxu0 0
    %1438 = vmatprep.subr.bf16.mxu0 0
    %1439 = vmatpush1.bf16.msra.mxu0 0
    %1440 = vmatprep.subr.bf16.mxu0 0
    %1441 = vmatpush1.bf16.msra.mxu0 0
    %1442 = vmatprep.subr.bf16.mxu0 0
    %1443 = vmatpush1.bf16.msra.mxu0 0
    %1444 = vmatprep.subr.bf16.mxu0 0
    %1445 = vmatpush1.bf16.msra.mxu0 0
    %1446 = vmatprep.subr.bf16.mxu0 0
    %1447 = vmatpush1.bf16.msra.mxu0 0
    %1448 = vmatprep.subr.bf16.mxu0 0
    %1449 = vmatpush1.bf16.msra.mxu0 0
    %1450 = vmatprep.subr.bf16.mxu0 0
    %1451 = vmatpush1.bf16.msra.mxu0 0
    %1452 = vmatprep.subr.bf16.mxu0 0
    %1453 = vmatpush1.bf16.msra.mxu0 0
    %1454 = vmatprep.subr.bf16.mxu0 0
    %1455 = vmatpush1.bf16.msra.mxu0 0
    %1456 = vmatprep.mubr.bf16.mxu0 0
    %1457 = vmatmul.mubr.bf16.gmra.mrb[0].mxu0 %v763
    %v1458 = vpop.f32.mrb[0].mxu0
    %v1459 = vadd.f32 0.0, %v1458
    %v1460 = vpop.f32.mrb[0].mxu0
    %v1461 = vpop.f32.mrb[0].mxu0
    %v1462 = vadd.f32 0.0, %v1461
    %v1463 = vpop.f32.mrb[0].mxu0
    %1464 = vdwg.mxu0
    %s1465 = scalar_lea.vmem [#allocation7], 32
    %v1466 = vld [vmem:[%s1465] sm:$0xf]
    %v1467 = vld [vmem:[%s1465 + $0x4] sm:$0xf]
    %v1468 = vld [vmem:[%s1465 + $0x8] sm:$0xf]
    %v1469 = vld [vmem:[%s1465 + $0xc] sm:$0xf]
    %v1470 = vld [vmem:[%s1465 + $0x10] sm:$0xf]
    %v1471 = vld [vmem:[%s1465 + $0x14] sm:$0xf]
    %v1472 = vld [vmem:[%s1465 + $0x18] sm:$0xf]
    %v1473 = vld [vmem:[%s1465 + $0x1c] sm:$0xf]
    %v1474 = vpack.c.bf16 %v1462, %v1459
    %s1475 = scalar_lea.vmem [#allocation8], 32
    %v1476 = vld [vmem:[%s1475] sm:$0xf]
    %v1477 = vld [vmem:[%s1475 + $0x4] sm:$0xf]
    %v1478 = vld [vmem:[%s1475 + $0x8] sm:$0xf]
    %v1479 = vld [vmem:[%s1475 + $0xc] sm:$0xf]
    %v1480 = vld [vmem:[%s1475 + $0x10] sm:$0xf]
    %v1481 = vld [vmem:[%s1475 + $0x14] sm:$0xf]
    %v1482 = vld [vmem:[%s1475 + $0x18] sm:$0xf]
    %v1483 = vld [vmem:[%s1475 + $0x1c] sm:$0xf]
    %v1492 = vunpack.c.l.b16 %v1476
    %v1493 = vunpack.c.l.b16 %v1477
    %v1494 = vunpack.c.l.b16 %v1478
    %v1495 = vunpack.c.l.b16 %v1479
    %v1496 = vunpack.c.l.b16 %v1480
    %v1497 = vunpack.c.l.b16 %v1481
    %v1498 = vunpack.c.l.b16 %v1482
    %v1499 = vunpack.c.l.b16 %v1483
    %v1500 = vpack.c.b16 %v1493, %v1492
    %v1501 = vpack.c.b16 %v1495, %v1494
    %v1502 = vpack.c.b16 %v1497, %v1496
    %v1503 = vpack.c.b16 %v1499, %v1498
    %v1509 = vsel %vm356, %v1474, 0
    %1511 = vmatprep.subr.bf16.mxu0 0
    %1512 = vmatpush1.bf16.msra.mxu0 %v1500
    %1513 = vmatprep.subr.bf16.mxu0 0
    %1514 = vmatpush1.bf16.msra.mxu0 %v1501
    %1515 = vmatprep.subr.bf16.mxu0 0
    %1516 = vmatpush1.bf16.msra.mxu0 %v1502
    %1517 = vmatprep.subr.bf16.mxu0 0
    %1518 = vmatpush1.bf16.msra.mxu0 %v1503
    %1519 = vmatprep.subr.bf16.mxu0 0
    %1520 = vmatpush1.bf16.msra.mxu0 0
    %1521 = vmatprep.subr.bf16.mxu0 0
    %1522 = vmatpush1.bf16.msra.mxu0 0
    %1523 = vmatprep.subr.bf16.mxu0 0
    %1524 = vmatpush1.bf16.msra.mxu0 0
    %1525 = vmatprep.subr.bf16.mxu0 0
    %1526 = vmatpush1.bf16.msra.mxu0 0
    %1527 = vmatprep.subr.bf16.mxu0 0
    %1528 = vmatpush1.bf16.msra.mxu0 0
    %1529 = vmatprep.subr.bf16.mxu0 0
    %1530 = vmatpush1.bf16.msra.mxu0 0
    %1531 = vmatprep.subr.bf16.mxu0 0
    %1532 = vmatpush1.bf16.msra.mxu0 0
    %1533 = vmatprep.subr.bf16.mxu0 0
    %1534 = vmatpush1.bf16.msra.mxu0 0
    %1535 = vmatprep.subr.bf16.mxu0 0
    %1536 = vmatpush1.bf16.msra.mxu0 0
    %1537 = vmatprep.subr.bf16.mxu0 0
    %1538 = vmatpush1.bf16.msra.mxu0 0
    %1539 = vmatprep.subr.bf16.mxu0 0
    %1540 = vmatpush1.bf16.msra.mxu0 0
    %1541 = vmatprep.subr.bf16.mxu0 0
    %1542 = vmatpush1.bf16.msra.mxu0 0
    %1543 = vmatprep.mubr.bf16.mxu0 0
    %1544 = vmatmul.mubr.bf16.gmra.mrb[0].mxu0 %v1509
    %v1545 = vpop.f32.mrb[0].mxu0
    %v1546 = vadd.f32 0.0, %v1545
    %v1547 = vpop.f32.mrb[0].mxu0
    %v1548 = vpop.f32.mrb[0].mxu0
    %v1549 = vadd.f32 0.0, %v1548
    %v1550 = vpop.f32.mrb[0].mxu0
    %1551 = vdwg.mxu0
    %v1560 = vunpack.c.l.b16 %v1466
    %v1561 = vunpack.c.l.b16 %v1467
    %v1562 = vunpack.c.l.b16 %v1468
    %v1563 = vunpack.c.l.b16 %v1469
    %v1564 = vunpack.c.l.b16 %v1470
    %v1565 = vunpack.c.l.b16 %v1471
    %v1566 = vunpack.c.l.b16 %v1472
    %v1567 = vunpack.c.l.b16 %v1473
    %v1568 = vpack.c.b16 %v1561, %v1560
    %v1569 = vpack.c.b16 %v1563, %v1562
    %v1570 = vpack.c.b16 %v1565, %v1564
    %v1571 = vpack.c.b16 %v1567, %v1566
    %1576 = vmatprep.subr.bf16.mxu0 0
    %1577 = vmatpush1.bf16.msra.mxu0 %v1568
    %1578 = vmatprep.subr.bf16.mxu0 0
    %1579 = vmatpush1.bf16.msra.mxu0 %v1569
    %1580 = vmatprep.subr.bf16.mxu0 0
    %1581 = vmatpush1.bf16.msra.mxu0 %v1570
    %1582 = vmatprep.subr.bf16.mxu0 0
    %1583 = vmatpush1.bf16.msra.mxu0 %v1571
    %1584 = vmatprep.subr.bf16.mxu0 0
    %1585 = vmatpush1.bf16.msra.mxu0 0
    %1586 = vmatprep.subr.bf16.mxu0 0
    %1587 = vmatpush1.bf16.msra.mxu0 0
    %1588 = vmatprep.subr.bf16.mxu0 0
    %1589 = vmatpush1.bf16.msra.mxu0 0
    %1590 = vmatprep.subr.bf16.mxu0 0
    %1591 = vmatpush1.bf16.msra.mxu0 0
    %1592 = vmatprep.subr.bf16.mxu0 0
    %1593 = vmatpush1.bf16.msra.mxu0 0
    %1594 = vmatprep.subr.bf16.mxu0 0
    %1595 = vmatpush1.bf16.msra.mxu0 0
    %1596 = vmatprep.subr.bf16.mxu0 0
    %1597 = vmatpush1.bf16.msra.mxu0 0
    %1598 = vmatprep.subr.bf16.mxu0 0
    %1599 = vmatpush1.bf16.msra.mxu0 0
    %1600 = vmatprep.subr.bf16.mxu0 0
    %1601 = vmatpush1.bf16.msra.mxu0 0
    %1602 = vmatprep.subr.bf16.mxu0 0
    %1603 = vmatpush1.bf16.msra.mxu0 0
    %1604 = vmatprep.subr.bf16.mxu0 0
    %1605 = vmatpush1.bf16.msra.mxu0 0
    %1606 = vmatprep.subr.bf16.mxu0 0
    %1607 = vmatpush1.bf16.msra.mxu0 0
    %1608 = vmatprep.mubr.bf16.mxu0 0
    %1609 = vmatmul.mubr.bf16.gmra.mrb[0].mxu0 %v1090
    %v1610 = vpop.f32.mrb[0].mxu0
    %v1611 = vadd.f32 %v1546, %v1610
    %v1612 = vpop.f32.mrb[0].mxu0
    %v1613 = vpop.f32.mrb[0].mxu0
    %v1614 = vadd.f32 %v1549, %v1613
    %v1615 = vpop.f32.mrb[0].mxu0
    %1616 = vdwg.mxu0
    %s1617 = scalar_lea.vmem %s17, 1
    %v1618 = vld [vmem:[%s1617] sm:$0x1]
    %v1620 = vlaneseq
    %v1621 = vshrl.u32 %v1620, 7
    %v1622 = vsub.s32 0, %v1621
    %v1623 = vrot.slane %v1618, %v1622
    %v1625 = vadd.f32 %v1611, %v1623
    %v1626 = vadd.f32 %v1614, %v1623
    %v1627 = vmax.f32 %v1625, 0.0
    %v1628 = vmax.f32 %v1626, 0.0
    %v1629 = vpack.c.bf16 %v1628, %v1627
    %s1630 = scalar_lea.vmem [#allocation10], 32
    %v1631 = vld [vmem:[%s1630] sm:$0xf]
    %v1632 = vld [vmem:[%s1630 + $0x4] sm:$0xf]
    %v1633 = vld [vmem:[%s1630 + $0x8] sm:$0xf]
    %v1634 = vld [vmem:[%s1630 + $0xc] sm:$0xf]
    %v1635 = vld [vmem:[%s1630 + $0x10] sm:$0xf]
    %v1636 = vld [vmem:[%s1630 + $0x14] sm:$0xf]
    %v1637 = vld [vmem:[%s1630 + $0x18] sm:$0xf]
    %v1638 = vld [vmem:[%s1630 + $0x1c] sm:$0xf]
    %s1639 = scalar_lea.vmem %s19, 1
    %v1640 = vld [vmem:[%s1639] sm:$0x1]
    %v1642 = vlaneseq
    %v1643 = vshrl.u32 %v1642, 7
    %v1644 = vsub.s32 0, %v1643
    %v1645 = vrot.slane %v1640, %v1644
    %v1655 = vunpack.c.l.b16 %v1631
    %v1656 = vunpack.c.l.b16 %v1632
    %v1657 = vunpack.c.l.b16 %v1633
    %v1658 = vunpack.c.l.b16 %v1634
    %v1659 = vunpack.c.l.b16 %v1635
    %v1660 = vunpack.c.l.b16 %v1636
    %v1661 = vunpack.c.l.b16 %v1637
    %v1662 = vunpack.c.l.b16 %v1638
    %v1663 = vpack.c.b16 %v1656, %v1655
    %v1664 = vpack.c.b16 %v1658, %v1657
    %v1665 = vpack.c.b16 %v1660, %v1659
    %v1666 = vpack.c.b16 %v1662, %v1661
    %v1672 = vsel %vm356, %v1629, 0
    %1674 = vmatprep.subr.bf16.mxu0 0
    %1675 = vmatpush1.bf16.msra.mxu0 %v1663
    %1676 = vmatprep.subr.bf16.mxu0 0
    %1677 = vmatpush1.bf16.msra.mxu0 %v1664
    %1678 = vmatprep.subr.bf16.mxu0 0
    %1679 = vmatpush1.bf16.msra.mxu0 %v1665
    %1680 = vmatprep.subr.bf16.mxu0 0
    %1681 = vmatpush1.bf16.msra.mxu0 %v1666
    %1682 = vmatprep.subr.bf16.mxu0 0
    %1683 = vmatpush1.bf16.msra.mxu0 0
    %1684 = vmatprep.subr.bf16.mxu0 0
    %1685 = vmatpush1.bf16.msra.mxu0 0
    %1686 = vmatprep.subr.bf16.mxu0 0
    %1687 = vmatpush1.bf16.msra.mxu0 0
    %1688 = vmatprep.subr.bf16.mxu0 0
    %1689 = vmatpush1.bf16.msra.mxu0 0
    %1690 = vmatprep.subr.bf16.mxu0 0
    %1691 = vmatpush1.bf16.msra.mxu0 0
    %1692 = vmatprep.subr.bf16.mxu0 0
    %1693 = vmatpush1.bf16.msra.mxu0 0
    %1694 = vmatprep.subr.bf16.mxu0 0
    %1695 = vmatpush1.bf16.msra.mxu0 0
    %1696 = vmatprep.subr.bf16.mxu0 0
    %1697 = vmatpush1.bf16.msra.mxu0 0
    %1698 = vmatprep.subr.bf16.mxu0 0
    %1699 = vmatpush1.bf16.msra.mxu0 0
    %1700 = vmatprep.subr.bf16.mxu0 0
    %1701 = vmatpush1.bf16.msra.mxu0 0
    %1702 = vmatprep.subr.bf16.mxu0 0
    %1703 = vmatpush1.bf16.msra.mxu0 0
    %1704 = vmatprep.subr.bf16.mxu0 0
    %1705 = vmatpush1.bf16.msra.mxu0 0
    %1706 = vmatprep.mubr.bf16.mxu0 0
    %1707 = vmatmul.mubr.bf16.gmra.mrb[0].mxu0 %v1672
    %v1708 = vpop.f32.mrb[0].mxu0
    %v1709 = vadd.f32 %v1645, %v1708
    %v1710 = vpop.f32.mrb[0].mxu0
    %v1711 = vpop.f32.mrb[0].mxu0
    %v1712 = vadd.f32 %v1645, %v1711
    %v1713 = vpop.f32.mrb[0].mxu0
    %1714 = vdwg.mxu0
    %v1715 = vmax.f32 %v1709, 0.0
    %v1716 = vmax.f32 %v1712, 0.0
    %v1717 = vadd.f32 %v1053, %v1715
    %v1718 = vadd.f32 %v1054, %v1716
    %v1719 = vpack.c.bf16 %v1718, %v1717
    %s1720 = scalar_lea.vmem %s9, 64
    %v1721 = vld [vmem:[%s1720] sm:$0xf]
    %v1722 = vld [vmem:[%s1720 + $0x4] sm:$0xf]
    %v1723 = vld [vmem:[%s1720 + $0x8] sm:$0xf]
    %v1724 = vld [vmem:[%s1720 + $0xc] sm:$0xf]
    %v1725 = vld [vmem:[%s1720 + $0x10] sm:$0xf]
    %v1726 = vld [vmem:[%s1720 + $0x14] sm:$0xf]
    %v1727 = vld [vmem:[%s1720 + $0x18] sm:$0xf]
    %v1728 = vld [vmem:[%s1720 + $0x1c] sm:$0xf]
    %v1737 = vunpack.c.l.b16 %v1721
    %v1738 = vunpack.c.l.b16 %v1722
    %v1739 = vunpack.c.l.b16 %v1723
    %v1740 = vunpack.c.l.b16 %v1724
    %v1741 = vunpack.c.l.b16 %v1725
    %v1742 = vunpack.c.l.b16 %v1726
    %v1743 = vunpack.c.l.b16 %v1727
    %v1744 = vunpack.c.l.b16 %v1728
    %v1745 = vpack.c.b16 %v1738, %v1737
    %v1746 = vpack.c.b16 %v1740, %v1739
    %v1747 = vpack.c.b16 %v1742, %v1741
    %v1748 = vpack.c.b16 %v1744, %v1743
    %v1754 = vsel %vm356, %v1719, 0
    %1756 = vmatprep.subr.bf16.mxu0 0
    %1757 = vmatpush1.bf16.msra.mxu0 %v1745
    %1758 = vmatprep.subr.bf16.mxu0 0
    %1759 = vmatpush1.bf16.msra.mxu0 %v1746
    %1760 = vmatprep.subr.bf16.mxu0 0
    %1761 = vmatpush1.bf16.msra.mxu0 %v1747
    %1762 = vmatprep.subr.bf16.mxu0 0
    %1763 = vmatpush1.bf16.msra.mxu0 %v1748
    %1764 = vmatprep.subr.bf16.mxu0 0
    %1765 = vmatpush1.bf16.msra.mxu0 0
    %1766 = vmatprep.subr.bf16.mxu0 0
    %1767 = vmatpush1.bf16.msra.mxu0 0
    %1768 = vmatprep.subr.bf16.mxu0 0
    %1769 = vmatpush1.bf16.msra.mxu0 0
    %1770 = vmatprep.subr.bf16.mxu0 0
    %1771 = vmatpush1.bf16.msra.mxu0 0
    %1772 = vmatprep.subr.bf16.mxu0 0
    %1773 = vmatpush1.bf16.msra.mxu0 0
    %1774 = vmatprep.subr.bf16.mxu0 0
    %1775 = vmatpush1.bf16.msra.mxu0 0
    %1776 = vmatprep.subr.bf16.mxu0 0
    %1777 = vmatpush1.bf16.msra.mxu0 0
    %1778 = vmatprep.subr.bf16.mxu0 0
    %1779 = vmatpush1.bf16.msra.mxu0 0
    %1780 = vmatprep.subr.bf16.mxu0 0
    %1781 = vmatpush1.bf16.msra.mxu0 0
    %1782 = vmatprep.subr.bf16.mxu0 0
    %1783 = vmatpush1.bf16.msra.mxu0 0
    %1784 = vmatprep.subr.bf16.mxu0 0
    %1785 = vmatpush1.bf16.msra.mxu0 0
    %1786 = vmatprep.subr.bf16.mxu0 0
    %1787 = vmatpush1.bf16.msra.mxu0 0
    %1788 = vmatprep.mubr.bf16.mxu0 0
    %1789 = vmatmul.mubr.bf16.gmra.mrb[0].mxu0 %v1754
    %v1790 = vpop.f32.mrb[0].mxu0
    %v1791 = vadd.f32 0.0, %v1790
    %v1792 = vpop.f32.mrb[0].mxu0
    %v1793 = vpop.f32.mrb[0].mxu0
    %v1794 = vadd.f32 0.0, %v1793
    %v1795 = vpop.f32.mrb[0].mxu0
    %1796 = vdwg.mxu0
    %s1797 = scalar_lea.vmem [#allocation3], 64
    %v1798 = vld [vmem:[%s1797] sm:$0xf]
    %v1799 = vld [vmem:[%s1797 + $0x4] sm:$0xf]
    %v1800 = vld [vmem:[%s1797 + $0x8] sm:$0xf]
    %v1801 = vld [vmem:[%s1797 + $0xc] sm:$0xf]
    %v1802 = vld [vmem:[%s1797 + $0x10] sm:$0xf]
    %v1803 = vld [vmem:[%s1797 + $0x14] sm:$0xf]
    %v1804 = vld [vmem:[%s1797 + $0x18] sm:$0xf]
    %v1805 = vld [vmem:[%s1797 + $0x1c] sm:$0xf]
    %v1814 = vunpack.c.l.b16 %v1798
    %v1815 = vunpack.c.l.b16 %v1799
    %v1816 = vunpack.c.l.b16 %v1800
    %v1817 = vunpack.c.l.b16 %v1801
    %v1818 = vunpack.c.l.b16 %v1802
    %v1819 = vunpack.c.l.b16 %v1803
    %v1820 = vunpack.c.l.b16 %v1804
    %v1821 = vunpack.c.l.b16 %v1805
    %v1822 = vpack.c.b16 %v1815, %v1814
    %v1823 = vpack.c.b16 %v1817, %v1816
    %v1824 = vpack.c.b16 %v1819, %v1818
    %v1825 = vpack.c.b16 %v1821, %v1820
    %1830 = vmatprep.subr.bf16.mxu0 0
    %1831 = vmatpush1.bf16.msra.mxu0 %v1822
    %1832 = vmatprep.subr.bf16.mxu0 0
    %1833 = vmatpush1.bf16.msra.mxu0 %v1823
    %1834 = vmatprep.subr.bf16.mxu0 0
    %1835 = vmatpush1.bf16.msra.mxu0 %v1824
    %1836 = vmatprep.subr.bf16.mxu0 0
    %1837 = vmatpush1.bf16.msra.mxu0 %v1825
    %1838 = vmatprep.subr.bf16.mxu0 0
    %1839 = vmatpush1.bf16.msra.mxu0 0
    %1840 = vmatprep.subr.bf16.mxu0 0
    %1841 = vmatpush1.bf16.msra.mxu0 0
    %1842 = vmatprep.subr.bf16.mxu0 0
    %1843 = vmatpush1.bf16.msra.mxu0 0
    %1844 = vmatprep.subr.bf16.mxu0 0
    %1845 = vmatpush1.bf16.msra.mxu0 0
    %1846 = vmatprep.subr.bf16.mxu0 0
    %1847 = vmatpush1.bf16.msra.mxu0 0
    %1848 = vmatprep.subr.bf16.mxu0 0
    %1849 = vmatpush1.bf16.msra.mxu0 0
    %1850 = vmatprep.subr.bf16.mxu0 0
    %1851 = vmatpush1.bf16.msra.mxu0 0
    %1852 = vmatprep.subr.bf16.mxu0 0
    %1853 = vmatpush1.bf16.msra.mxu0 0
    %1854 = vmatprep.subr.bf16.mxu0 0
    %1855 = vmatpush1.bf16.msra.mxu0 0
    %1856 = vmatprep.subr.bf16.mxu0 0
    %1857 = vmatpush1.bf16.msra.mxu0 0
    %1858 = vmatprep.subr.bf16.mxu0 0
    %1859 = vmatpush1.bf16.msra.mxu0 0
    %1860 = vmatprep.subr.bf16.mxu0 0
    %1861 = vmatpush1.bf16.msra.mxu0 0
    %1862 = vmatprep.mubr.bf16.mxu0 0
    %1863 = vmatmul.mubr.bf16.gmra.mrb[0].mxu0 %v1754
    %v1864 = vpop.f32.mrb[0].mxu0
    %v1865 = vadd.f32 0.0, %v1864
    %v1866 = vpop.f32.mrb[0].mxu0
    %v1867 = vpop.f32.mrb[0].mxu0
    %v1868 = vadd.f32 0.0, %v1867
    %v1869 = vpop.f32.mrb[0].mxu0
    %1870 = vdwg.mxu0
    %v1871 = vpack.c.bf16 %v1794, %v1791
    %v1872 = vpack.c.bf16 %v1868, %v1865
    %s1873 = scalar_lea.vmem %s11, 8
    %v1874 = vld [vmem:[%s1873] sm:$0xf]
    %s1875 = scalar_lea.vmem %s12, 2
    %v1876 = vld [vmem:[%s1875] sm:$0x1]
    %v1877 = vlaneseq
    %v1878 = vshrl.u32 %v1877, 7
    %v1879 = vsub.s32 0, %v1878
    %v1880 = vrot.slane %v1874, %v1879
    %v1881 = vmul.f32 %v481, %v1880
    %v1882 = vmul.f32 %v486, %v1880
    %v1883 = vmul.f32 %v491, %v1880
    %v1884 = vmul.f32 %v496, %v1880
    %v1886 = vlaneseq
    %v1887 = vshrl.u32 %v1886, 7
    %v1888 = vsub.s32 0, %v1887
    %v1889 = vrot.slane %v1876, %v1888
    %v1891 = vadd.f32 %v1889, %v1881
    %v1892 = vadd.f32 %v1889, %v1882
    %v1893 = vadd.f32 %v1889, %v1883
    %v1894 = vadd.f32 %v1889, %v1884
    %v1895 = vlaneseq
    %v1896 = vshrl.u32 %v1895, 7
    %v1897 = vsub.s32 1, %v1896
    %v1898 = vrot.slane %v1874, %v1897
    %v1899 = vmul.f32 %v518, %v1898
    %v1900 = vmul.f32 %v522, %v1898
    %v1901 = vmul.f32 %v526, %v1898
    %v1902 = vmul.f32 %v530, %v1898
    %v1903 = vadd.f32 %v1891, %v1899
    %v1904 = vadd.f32 %v1892, %v1900
    %v1905 = vadd.f32 %v1893, %v1901
    %v1906 = vadd.f32 %v1894, %v1902
    %v1907 = vlaneseq
    %v1908 = vshrl.u32 %v1907, 7
    %v1909 = vsub.s32 2, %v1908
    %v1910 = vrot.slane %v1874, %v1909
    %v1911 = vmul.f32 %v546, %v1910
    %v1912 = vmul.f32 %v550, %v1910
    %v1913 = vmul.f32 %v554, %v1910
    %v1914 = vmul.f32 %v558, %v1910
    %v1915 = vadd.f32 %v1903, %v1911
    %v1916 = vadd.f32 %v1904, %v1912
    %v1917 = vadd.f32 %v1905, %v1913
    %v1918 = vadd.f32 %v1906, %v1914
    %v1919 = vlaneseq
    %v1920 = vshrl.u32 %v1919, 7
    %v1921 = vsub.s32 3, %v1920
    %v1922 = vrot.slane %v1874, %v1921
    %v1923 = vmul.f32 %v574, %v1922
    %v1924 = vmul.f32 %v578, %v1922
    %v1925 = vmul.f32 %v582, %v1922
    %v1926 = vmul.f32 %v586, %v1922
    %v1927 = vadd.f32 %v1915, %v1923
    %v1928 = vadd.f32 %v1916, %v1924
    %v1929 = vadd.f32 %v1917, %v1925
    %v1930 = vadd.f32 %v1918, %v1926
    %1931 = vmatprep.subr.bf16.mxu0 0
    %1932 = vmatpush1.bf16.msra.mxu0 %v1871
    %1933 = vmatprep.subr.bf16.mxu0 0
    %1934 = vmatpush1.bf16.msra.mxu0 %v1872
    %1935 = vmatprep.subr.bf16.mxu0 0
    %1936 = vmatpush1.bf16.msra.mxu0 0
    %1937 = vmatprep.subr.bf16.mxu0 0
    %1938 = vmatpush1.bf16.msra.mxu0 0
    %1939 = vmatprep.subr.bf16.mxu0 0
    %1940 = vmatpush1.bf16.msra.mxu0 0
    %1941 = vmatprep.subr.bf16.mxu0 0
    %1942 = vmatpush1.bf16.msra.mxu0 0
    %1943 = vmatprep.subr.bf16.mxu0 0
    %1944 = vmatpush1.bf16.msra.mxu0 0
    %1945 = vmatprep.subr.bf16.mxu0 0
    %1946 = vmatpush1.bf16.msra.mxu0 0
    %1947 = vmatprep.subr.bf16.mxu0 0
    %1948 = vmatpush1.bf16.msra.mxu0 0
    %1949 = vmatprep.subr.bf16.mxu0 0
    %1950 = vmatpush1.bf16.msra.mxu0 0
    %1951 = vmatprep.subr.bf16.mxu0 0
    %1952 = vmatpush1.bf16.msra.mxu0 0
    %1953 = vmatprep.subr.bf16.mxu0 0
    %1954 = vmatpush1.bf16.msra.mxu0 0
    %1955 = vmatprep.subr.bf16.mxu0 0
    %1956 = vmatpush1.bf16.msra.mxu0 0
    %1957 = vmatprep.subr.bf16.mxu0 0
    %1958 = vmatpush1.bf16.msra.mxu0 0
    %1959 = vmatprep.subr.bf16.mxu0 0
    %1960 = vmatpush1.bf16.msra.mxu0 0
    %1961 = vmatprep.subr.bf16.mxu0 0
    %1962 = vmatpush1.bf16.msra.mxu0 0
    %1963 = vmatprep.mubr.bf16.mxu0 0
    %1964 = vmatmul.mubr.bf16.gmra.mrb[0].mxu0 %v602
    %v1965 = vpop.f32.mrb[0].mxu0
    %v1966 = vadd.f32 %v1927, %v1965
    %v1967 = vpop.f32.mrb[0].mxu0
    %v1968 = vpop.f32.mrb[0].mxu0
    %v1969 = vadd.f32 %v1928, %v1968
    %v1970 = vpop.f32.mrb[0].mxu0
    %1971 = vmatprep.mubr.bf16.mxu0 0
    %1972 = vmatmul.mubr.bf16.gmra.mrb[0].mxu0 %v605
    %v1973 = vpop.f32.mrb[0].mxu0
    %v1974 = vadd.f32 %v1929, %v1973
    %v1975 = vpop.f32.mrb[0].mxu0
    %v1976 = vpop.f32.mrb[0].mxu0
    %v1977 = vadd.f32 %v1930, %v1976
    %v1978 = vpop.f32.mrb[0].mxu0
    %1979 = vdwg.mxu0
    %v1980 = vmax.f32 %v1966, 0.0
    %v1981 = vmax.f32 %v1969, 0.0
    %v1982 = vmax.f32 %v1974, 0.0
    %v1983 = vmax.f32 %v1977, 0.0
    %v1984 = vpack.c.bf16 %v1981, %v1980
    %v1985 = vpack.c.bf16 %v1983, %v1982
    %s1986 = scalar_lea.vmem [#allocation5], 64
    %v1987 = vld [vmem:[%s1986] sm:$0xf]
    %v1988 = vld [vmem:[%s1986 + $0x4] sm:$0xf]
    %v1989 = vld [vmem:[%s1986 + $0x8] sm:$0xf]
    %v1990 = vld [vmem:[%s1986 + $0xc] sm:$0xf]
    %v1991 = vld [vmem:[%s1986 + $0x10] sm:$0xf]
    %v1992 = vld [vmem:[%s1986 + $0x14] sm:$0xf]
    %v1993 = vld [vmem:[%s1986 + $0x18] sm:$0xf]
    %v1994 = vld [vmem:[%s1986 + $0x1c] sm:$0xf]
    %s1995 = scalar_lea.vmem %s14, 2
    %v1996 = vld [vmem:[%s1995] sm:$0x1]
    %v1998 = vlaneseq
    %v1999 = vshrl.u32 %v1998, 7
    %v2000 = vsub.s32 0, %v1999
    %v2001 = vrot.slane %v1996, %v2000
    %v2011 = vunpack.c.l.b16 %v1987
    %v2012 = vunpack.c.l.b16 %v1988
    %v2013 = vunpack.c.l.b16 %v1989
    %v2014 = vunpack.c.l.b16 %v1990
    %v2015 = vunpack.c.l.b16 %v1991
    %v2016 = vunpack.c.l.b16 %v1992
    %v2017 = vunpack.c.l.b16 %v1993
    %v2018 = vunpack.c.l.b16 %v1994
    %v2019 = vpack.c.b16 %v2012, %v2011
    %v2020 = vpack.c.b16 %v2014, %v2013
    %v2021 = vpack.c.b16 %v2016, %v2015
    %v2022 = vpack.c.b16 %v2018, %v2017
    %v2028 = vsel %vm356, %v1984, 0
    %v2031 = vsel %vm356, %v1985, 0
    %2033 = vmatprep.subr.bf16.mxu0 0
    %2034 = vmatpush1.bf16.msra.mxu0 %v2019
    %2035 = vmatprep.subr.bf16.mxu0 0
    %2036 = vmatpush1.bf16.msra.mxu0 %v2020
    %2037 = vmatprep.subr.bf16.mxu0 0
    %2038 = vmatpush1.bf16.msra.mxu0 %v2021
    %2039 = vmatprep.subr.bf16.mxu0 0
    %2040 = vmatpush1.bf16.msra.mxu0 %v2022
    %2041 = vmatprep.subr.bf16.mxu0 0
    %2042 = vmatpush1.bf16.msra.mxu0 0
    %2043 = vmatprep.subr.bf16.mxu0 0
    %2044 = vmatpush1.bf16.msra.mxu0 0
    %2045 = vmatprep.subr.bf16.mxu0 0
    %2046 = vmatpush1.bf16.msra.mxu0 0
    %2047 = vmatprep.subr.bf16.mxu0 0
    %2048 = vmatpush1.bf16.msra.mxu0 0
    %2049 = vmatprep.subr.bf16.mxu0 0
    %2050 = vmatpush1.bf16.msra.mxu0 0
    %2051 = vmatprep.subr.bf16.mxu0 0
    %2052 = vmatpush1.bf16.msra.mxu0 0
    %2053 = vmatprep.subr.bf16.mxu0 0
    %2054 = vmatpush1.bf16.msra.mxu0 0
    %2055 = vmatprep.subr.bf16.mxu0 0
    %2056 = vmatpush1.bf16.msra.mxu0 0
    %2057 = vmatprep.subr.bf16.mxu0 0
    %2058 = vmatpush1.bf16.msra.mxu0 0
    %2059 = vmatprep.subr.bf16.mxu0 0
    %2060 = vmatpush1.bf16.msra.mxu0 0
    %2061 = vmatprep.subr.bf16.mxu0 0
    %2062 = vmatpush1.bf16.msra.mxu0 0
    %2063 = vmatprep.subr.bf16.mxu0 0
    %2064 = vmatpush1.bf16.msra.mxu0 0
    %2065 = vmatprep.mubr.bf16.mxu0 0
    %2066 = vmatmul.mubr.bf16.gmra.mrb[0].mxu0 %v2028
    %v2067 = vpop.f32.mrb[0].mxu0
    %v2068 = vadd.f32 %v2001, %v2067
    %v2069 = vpop.f32.mrb[0].mxu0
    %v2070 = vpop.f32.mrb[0].mxu0
    %v2071 = vadd.f32 %v2001, %v2070
    %v2072 = vpop.f32.mrb[0].mxu0
    %2073 = vmatprep.mubr.bf16.mxu0 0
    %2074 = vmatmul.mubr.bf16.gmra.mrb[0].mxu0 %v2031
    %v2075 = vpop.f32.mrb[0].mxu0
    %v2076 = vadd.f32 %v2001, %v2075
    %v2077 = vpop.f32.mrb[0].mxu0
    %v2078 = vpop.f32.mrb[0].mxu0
    %v2079 = vadd.f32 %v2001, %v2078
    %v2080 = vpop.f32.mrb[0].mxu0
    %2081 = vdwg.mxu0
    %v2082 = vmax.f32 %v2068, 0.0
    %v2083 = vmax.f32 %v2071, 0.0
    %v2084 = vmax.f32 %v2076, 0.0
    %v2085 = vmax.f32 %v2079, 0.0
    %v2086 = vpack.c.bf16 %v2083, %v2082
    %v2087 = vpack.c.bf16 %v2085, %v2084
    %2088 = vmatprep.subr.bf16.mxu0 0
    %2089 = vmatpush1.bf16.msra.mxu0 %v2086
    %2090 = vmatprep.subr.bf16.mxu0 0
    %2091 = vmatpush1.bf16.msra.mxu0 %v2087
    %2092 = vmatprep.subr.bf16.mxu0 0
    %2093 = vmatpush1.bf16.msra.mxu0 0
    %2094 = vmatprep.subr.bf16.mxu0 0
    %2095 = vmatpush1.bf16.msra.mxu0 0
    %2096 = vmatprep.subr.bf16.mxu0 0
    %2097 = vmatpush1.bf16.msra.mxu0 0
    %2098 = vmatprep.subr.bf16.mxu0 0
    %2099 = vmatpush1.bf16.msra.mxu0 0
    %2100 = vmatprep.subr.bf16.mxu0 0
    %2101 = vmatpush1.bf16.msra.mxu0 0
    %2102 = vmatprep.subr.bf16.mxu0 0
    %2103 = vmatpush1.bf16.msra.mxu0 0
    %2104 = vmatprep.subr.bf16.mxu0 0
    %2105 = vmatpush1.bf16.msra.mxu0 0
    %2106 = vmatprep.subr.bf16.mxu0 0
    %2107 = vmatpush1.bf16.msra.mxu0 0
    %2108 = vmatprep.subr.bf16.mxu0 0
    %2109 = vmatpush1.bf16.msra.mxu0 0
    %2110 = vmatprep.subr.bf16.mxu0 0
    %2111 = vmatpush1.bf16.msra.mxu0 0
    %2112 = vmatprep.subr.bf16.mxu0 0
    %2113 = vmatpush1.bf16.msra.mxu0 0
    %2114 = vmatprep.subr.bf16.mxu0 0
    %2115 = vmatpush1.bf16.msra.mxu0 0
    %2116 = vmatprep.subr.bf16.mxu0 0
    %2117 = vmatpush1.bf16.msra.mxu0 0
    %2118 = vmatprep.subr.bf16.mxu0 0
    %2119 = vmatpush1.bf16.msra.mxu0 0
    %2120 = vmatprep.mubr.bf16.mxu0 0
    %2121 = vmatmul.mubr.bf16.gmra.mrb[0].mxu0 %v763
    %v2122 = vpop.f32.mrb[0].mxu0
    %v2123 = vadd.f32 0.0, %v2122
    %v2124 = vpop.f32.mrb[0].mxu0
    %v2125 = vpop.f32.mrb[0].mxu0
    %v2126 = vadd.f32 0.0, %v2125
    %v2127 = vpop.f32.mrb[0].mxu0
    %2128 = vdwg.mxu0
    %s2129 = scalar_lea.vmem [#allocation7], 64
    %v2130 = vld [vmem:[%s2129] sm:$0xf]
    %v2131 = vld [vmem:[%s2129 + $0x4] sm:$0xf]
    %v2132 = vld [vmem:[%s2129 + $0x8] sm:$0xf]
    %v2133 = vld [vmem:[%s2129 + $0xc] sm:$0xf]
    %v2134 = vld [vmem:[%s2129 + $0x10] sm:$0xf]
    %v2135 = vld [vmem:[%s2129 + $0x14] sm:$0xf]
    %v2136 = vld [vmem:[%s2129 + $0x18] sm:$0xf]
    %v2137 = vld [vmem:[%s2129 + $0x1c] sm:$0xf]
    %v2138 = vpack.c.bf16 %v2126, %v2123
    %s2139 = scalar_lea.vmem [#allocation8], 64
    %v2140 = vld [vmem:[%s2139] sm:$0xf]
    %v2141 = vld [vmem:[%s2139 + $0x4] sm:$0xf]
    %v2142 = vld [vmem:[%s2139 + $0x8] sm:$0xf]
    %v2143 = vld [vmem:[%s2139 + $0xc] sm:$0xf]
    %v2144 = vld [vmem:[%s2139 + $0x10] sm:$0xf]
    %v2145 = vld [vmem:[%s2139 + $0x14] sm:$0xf]
    %v2146 = vld [vmem:[%s2139 + $0x18] sm:$0xf]
    %v2147 = vld [vmem:[%s2139 + $0x1c] sm:$0xf]
    %v2156 = vunpack.c.l.b16 %v2140
    %v2157 = vunpack.c.l.b16 %v2141
    %v2158 = vunpack.c.l.b16 %v2142
    %v2159 = vunpack.c.l.b16 %v2143
    %v2160 = vunpack.c.l.b16 %v2144
    %v2161 = vunpack.c.l.b16 %v2145
    %v2162 = vunpack.c.l.b16 %v2146
    %v2163 = vunpack.c.l.b16 %v2147
    %v2164 = vpack.c.b16 %v2157, %v2156
    %v2165 = vpack.c.b16 %v2159, %v2158
    %v2166 = vpack.c.b16 %v2161, %v2160
    %v2167 = vpack.c.b16 %v2163, %v2162
    %v2173 = vsel %vm356, %v2138, 0
    %2175 = vmatprep.subr.bf16.mxu0 0
    %2176 = vmatpush1.bf16.msra.mxu0 %v2164
    %2177 = vmatprep.subr.bf16.mxu0 0
    %2178 = vmatpush1.bf16.msra.mxu0 %v2165
    %2179 = vmatprep.subr.bf16.mxu0 0
    %2180 = vmatpush1.bf16.msra.mxu0 %v2166
    %2181 = vmatprep.subr.bf16.mxu0 0
    %2182 = vmatpush1.bf16.msra.mxu0 %v2167
    %2183 = vmatprep.subr.bf16.mxu0 0
    %2184 = vmatpush1.bf16.msra.mxu0 0
    %2185 = vmatprep.subr.bf16.mxu0 0
    %2186 = vmatpush1.bf16.msra.mxu0 0
    %2187 = vmatprep.subr.bf16.mxu0 0
    %2188 = vmatpush1.bf16.msra.mxu0 0
    %2189 = vmatprep.subr.bf16.mxu0 0
    %2190 = vmatpush1.bf16.msra.mxu0 0
    %2191 = vmatprep.subr.bf16.mxu0 0
    %2192 = vmatpush1.bf16.msra.mxu0 0
    %2193 = vmatprep.subr.bf16.mxu0 0
    %2194 = vmatpush1.bf16.msra.mxu0 0
    %2195 = vmatprep.subr.bf16.mxu0 0
    %2196 = vmatpush1.bf16.msra.mxu0 0
    %2197 = vmatprep.subr.bf16.mxu0 0
    %2198 = vmatpush1.bf16.msra.mxu0 0
    %2199 = vmatprep.subr.bf16.mxu0 0
    %2200 = vmatpush1.bf16.msra.mxu0 0
    %2201 = vmatprep.subr.bf16.mxu0 0
    %2202 = vmatpush1.bf16.msra.mxu0 0
    %2203 = vmatprep.subr.bf16.mxu0 0
    %2204 = vmatpush1.bf16.msra.mxu0 0
    %2205 = vmatprep.subr.bf16.mxu0 0
    %2206 = vmatpush1.bf16.msra.mxu0 0
    %2207 = vmatprep.mubr.bf16.mxu0 0
    %2208 = vmatmul.mubr.bf16.gmra.mrb[0].mxu0 %v2173
    %v2209 = vpop.f32.mrb[0].mxu0
    %v2210 = vadd.f32 0.0, %v2209
    %v2211 = vpop.f32.mrb[0].mxu0
    %v2212 = vpop.f32.mrb[0].mxu0
    %v2213 = vadd.f32 0.0, %v2212
    %v2214 = vpop.f32.mrb[0].mxu0
    %2215 = vdwg.mxu0
    %v2224 = vunpack.c.l.b16 %v2130
    %v2225 = vunpack.c.l.b16 %v2131
    %v2226 = vunpack.c.l.b16 %v2132
    %v2227 = vunpack.c.l.b16 %v2133
    %v2228 = vunpack.c.l.b16 %v2134
    %v2229 = vunpack.c.l.b16 %v2135
    %v2230 = vunpack.c.l.b16 %v2136
    %v2231 = vunpack.c.l.b16 %v2137
    %v2232 = vpack.c.b16 %v2225, %v2224
    %v2233 = vpack.c.b16 %v2227, %v2226
    %v2234 = vpack.c.b16 %v2229, %v2228
    %v2235 = vpack.c.b16 %v2231, %v2230
    %2240 = vmatprep.subr.bf16.mxu0 0
    %2241 = vmatpush1.bf16.msra.mxu0 %v2232
    %2242 = vmatprep.subr.bf16.mxu0 0
    %2243 = vmatpush1.bf16.msra.mxu0 %v2233
    %2244 = vmatprep.subr.bf16.mxu0 0
    %2245 = vmatpush1.bf16.msra.mxu0 %v2234
    %2246 = vmatprep.subr.bf16.mxu0 0
    %2247 = vmatpush1.bf16.msra.mxu0 %v2235
    %2248 = vmatprep.subr.bf16.mxu0 0
    %2249 = vmatpush1.bf16.msra.mxu0 0
    %2250 = vmatprep.subr.bf16.mxu0 0
    %2251 = vmatpush1.bf16.msra.mxu0 0
    %2252 = vmatprep.subr.bf16.mxu0 0
    %2253 = vmatpush1.bf16.msra.mxu0 0
    %2254 = vmatprep.subr.bf16.mxu0 0
    %2255 = vmatpush1.bf16.msra.mxu0 0
    %2256 = vmatprep.subr.bf16.mxu0 0
    %2257 = vmatpush1.bf16.msra.mxu0 0
    %2258 = vmatprep.subr.bf16.mxu0 0
    %2259 = vmatpush1.bf16.msra.mxu0 0
    %2260 = vmatprep.subr.bf16.mxu0 0
    %2261 = vmatpush1.bf16.msra.mxu0 0
    %2262 = vmatprep.subr.bf16.mxu0 0
    %2263 = vmatpush1.bf16.msra.mxu0 0
    %2264 = vmatprep.subr.bf16.mxu0 0
    %2265 = vmatpush1.bf16.msra.mxu0 0
    %2266 = vmatprep.subr.bf16.mxu0 0
    %2267 = vmatpush1.bf16.msra.mxu0 0
    %2268 = vmatprep.subr.bf16.mxu0 0
    %2269 = vmatpush1.bf16.msra.mxu0 0
    %2270 = vmatprep.subr.bf16.mxu0 0
    %2271 = vmatpush1.bf16.msra.mxu0 0
    %2272 = vmatprep.mubr.bf16.mxu0 0
    %2273 = vmatmul.mubr.bf16.gmra.mrb[0].mxu0 %v1754
    %v2274 = vpop.f32.mrb[0].mxu0
    %v2275 = vadd.f32 %v2210, %v2274
    %v2276 = vpop.f32.mrb[0].mxu0
    %v2277 = vpop.f32.mrb[0].mxu0
    %v2278 = vadd.f32 %v2213, %v2277
    %v2279 = vpop.f32.mrb[0].mxu0
    %2280 = vdwg.mxu0
    %s2281 = scalar_lea.vmem %s17, 2
    %v2282 = vld [vmem:[%s2281] sm:$0x1]
    %v2284 = vlaneseq
    %v2285 = vshrl.u32 %v2284, 7
    %v2286 = vsub.s32 0, %v2285
    %v2287 = vrot.slane %v2282, %v2286
    %v2289 = vadd.f32 %v2275, %v2287
    %v2290 = vadd.f32 %v2278, %v2287
    %v2291 = vmax.f32 %v2289, 0.0
    %v2292 = vmax.f32 %v2290, 0.0
    %v2293 = vpack.c.bf16 %v2292, %v2291
    %s2294 = scalar_lea.vmem [#allocation10], 64
    %v2295 = vld [vmem:[%s2294] sm:$0xf]
    %v2296 = vld [vmem:[%s2294 + $0x4] sm:$0xf]
    %v2297 = vld [vmem:[%s2294 + $0x8] sm:$0xf]
    %v2298 = vld [vmem:[%s2294 + $0xc] sm:$0xf]
    %v2299 = vld [vmem:[%s2294 + $0x10] sm:$0xf]
    %v2300 = vld [vmem:[%s2294 + $0x14] sm:$0xf]
    %v2301 = vld [vmem:[%s2294 + $0x18] sm:$0xf]
    %v2302 = vld [vmem:[%s2294 + $0x1c] sm:$0xf]
    %s2303 = scalar_lea.vmem %s19, 2
    %v2304 = vld [vmem:[%s2303] sm:$0x1]
    %v2306 = vlaneseq
    %v2307 = vshrl.u32 %v2306, 7
    %v2308 = vsub.s32 0, %v2307
    %v2309 = vrot.slane %v2304, %v2308
    %v2319 = vunpack.c.l.b16 %v2295
    %v2320 = vunpack.c.l.b16 %v2296
    %v2321 = vunpack.c.l.b16 %v2297
    %v2322 = vunpack.c.l.b16 %v2298
    %v2323 = vunpack.c.l.b16 %v2299
    %v2324 = vunpack.c.l.b16 %v2300
    %v2325 = vunpack.c.l.b16 %v2301
    %v2326 = vunpack.c.l.b16 %v2302
    %v2327 = vpack.c.b16 %v2320, %v2319
    %v2328 = vpack.c.b16 %v2322, %v2321
    %v2329 = vpack.c.b16 %v2324, %v2323
    %v2330 = vpack.c.b16 %v2326, %v2325
    %v2336 = vsel %vm356, %v2293, 0
    %2338 = vmatprep.subr.bf16.mxu0 0
    %2339 = vmatpush1.bf16.msra.mxu0 %v2327
    %2340 = vmatprep.subr.bf16.mxu0 0
    %2341 = vmatpush1.bf16.msra.mxu0 %v2328
    %2342 = vmatprep.subr.bf16.mxu0 0
    %2343 = vmatpush1.bf16.msra.mxu0 %v2329
    %2344 = vmatprep.subr.bf16.mxu0 0
    %2345 = vmatpush1.bf16.msra.mxu0 %v2330
    %2346 = vmatprep.subr.bf16.mxu0 0
    %2347 = vmatpush1.bf16.msra.mxu0 0
    %2348 = vmatprep.subr.bf16.mxu0 0
    %2349 = vmatpush1.bf16.msra.mxu0 0
    %2350 = vmatprep.subr.bf16.mxu0 0
    %2351 = vmatpush1.bf16.msra.mxu0 0
    %2352 = vmatprep.subr.bf16.mxu0 0
    %2353 = vmatpush1.bf16.msra.mxu0 0
    %2354 = vmatprep.subr.bf16.mxu0 0
    %2355 = vmatpush1.bf16.msra.mxu0 0
    %2356 = vmatprep.subr.bf16.mxu0 0
    %2357 = vmatpush1.bf16.msra.mxu0 0
    %2358 = vmatprep.subr.bf16.mxu0 0
    %2359 = vmatpush1.bf16.msra.mxu0 0
    %2360 = vmatprep.subr.bf16.mxu0 0
    %2361 = vmatpush1.bf16.msra.mxu0 0
    %2362 = vmatprep.subr.bf16.mxu0 0
    %2363 = vmatpush1.bf16.msra.mxu0 0
    %2364 = vmatprep.subr.bf16.mxu0 0
    %2365 = vmatpush1.bf16.msra.mxu0 0
    %2366 = vmatprep.subr.bf16.mxu0 0
    %2367 = vmatpush1.bf16.msra.mxu0 0
    %2368 = vmatprep.subr.bf16.mxu0 0
    %2369 = vmatpush1.bf16.msra.mxu0 0
    %2370 = vmatprep.mubr.bf16.mxu0 0
    %2371 = vmatmul.mubr.bf16.gmra.mrb[0].mxu0 %v2336
    %v2372 = vpop.f32.mrb[0].mxu0
    %v2373 = vadd.f32 %v2309, %v2372
    %v2374 = vpop.f32.mrb[0].mxu0
    %v2375 = vpop.f32.mrb[0].mxu0
    %v2376 = vadd.f32 %v2309, %v2375
    %v2377 = vpop.f32.mrb[0].mxu0
    %2378 = vdwg.mxu0
    %v2379 = vmax.f32 %v2373, 0.0
    %v2380 = vmax.f32 %v2376, 0.0
    %v2381 = vadd.f32 %v1717, %v2379
    %v2382 = vadd.f32 %v1718, %v2380
    %v2383 = vpack.c.bf16 %v2382, %v2381
    %s2384 = scalar_lea.vmem %s9, 96
    %v2385 = vld [vmem:[%s2384] sm:$0xf]
    %v2386 = vld [vmem:[%s2384 + $0x4] sm:$0xf]
    %v2387 = vld [vmem:[%s2384 + $0x8] sm:$0xf]
    %v2388 = vld [vmem:[%s2384 + $0xc] sm:$0xf]
    %v2389 = vld [vmem:[%s2384 + $0x10] sm:$0xf]
    %v2390 = vld [vmem:[%s2384 + $0x14] sm:$0xf]
    %v2391 = vld [vmem:[%s2384 + $0x18] sm:$0xf]
    %v2392 = vld [vmem:[%s2384 + $0x1c] sm:$0xf]
    %v2401 = vunpack.c.l.b16 %v2385
    %v2402 = vunpack.c.l.b16 %v2386
    %v2403 = vunpack.c.l.b16 %v2387
    %v2404 = vunpack.c.l.b16 %v2388
    %v2405 = vunpack.c.l.b16 %v2389
    %v2406 = vunpack.c.l.b16 %v2390
    %v2407 = vunpack.c.l.b16 %v2391
    %v2408 = vunpack.c.l.b16 %v2392
    %v2409 = vpack.c.b16 %v2402, %v2401
    %v2410 = vpack.c.b16 %v2404, %v2403
    %v2411 = vpack.c.b16 %v2406, %v2405
    %v2412 = vpack.c.b16 %v2408, %v2407
    %v2418 = vsel %vm356, %v2383, 0
    %2420 = vmatprep.subr.bf16.mxu0 0
    %2421 = vmatpush1.bf16.msra.mxu0 %v2409
    %2422 = vmatprep.subr.bf16.mxu0 0
    %2423 = vmatpush1.bf16.msra.mxu0 %v2410
    %2424 = vmatprep.subr.bf16.mxu0 0
    %2425 = vmatpush1.bf16.msra.mxu0 %v2411
    %2426 = vmatprep.subr.bf16.mxu0 0
    %2427 = vmatpush1.bf16.msra.mxu0 %v2412
    %2428 = vmatprep.subr.bf16.mxu0 0
    %2429 = vmatpush1.bf16.msra.mxu0 0
    %2430 = vmatprep.subr.bf16.mxu0 0
    %2431 = vmatpush1.bf16.msra.mxu0 0
    %2432 = vmatprep.subr.bf16.mxu0 0
    %2433 = vmatpush1.bf16.msra.mxu0 0
    %2434 = vmatprep.subr.bf16.mxu0 0
    %2435 = vmatpush1.bf16.msra.mxu0 0
    %2436 = vmatprep.subr.bf16.mxu0 0
    %2437 = vmatpush1.bf16.msra.mxu0 0
    %2438 = vmatprep.subr.bf16.mxu0 0
    %2439 = vmatpush1.bf16.msra.mxu0 0
    %2440 = vmatprep.subr.bf16.mxu0 0
    %2441 = vmatpush1.bf16.msra.mxu0 0
    %2442 = vmatprep.subr.bf16.mxu0 0
    %2443 = vmatpush1.bf16.msra.mxu0 0
    %2444 = vmatprep.subr.bf16.mxu0 0
    %2445 = vmatpush1.bf16.msra.mxu0 0
    %2446 = vmatprep.subr.bf16.mxu0 0
    %2447 = vmatpush1.bf16.msra.mxu0 0
    %2448 = vmatprep.subr.bf16.mxu0 0
    %2449 = vmatpush1.bf16.msra.mxu0 0
    %2450 = vmatprep.subr.bf16.mxu0 0
    %2451 = vmatpush1.bf16.msra.mxu0 0
    %2452 = vmatprep.mubr.bf16.mxu0 0
    %2453 = vmatmul.mubr.bf16.gmra.mrb[0].mxu0 %v2418
    %v2454 = vpop.f32.mrb[0].mxu0
    %v2455 = vadd.f32 0.0, %v2454
    %v2456 = vpop.f32.mrb[0].mxu0
    %v2457 = vpop.f32.mrb[0].mxu0
    %v2458 = vadd.f32 0.0, %v2457
    %v2459 = vpop.f32.mrb[0].mxu0
    %2460 = vdwg.mxu0
    %s2461 = scalar_lea.vmem [#allocation3], 96
    %v2462 = vld [vmem:[%s2461] sm:$0xf]
    %v2463 = vld [vmem:[%s2461 + $0x4] sm:$0xf]
    %v2464 = vld [vmem:[%s2461 + $0x8] sm:$0xf]
    %v2465 = vld [vmem:[%s2461 + $0xc] sm:$0xf]
    %v2466 = vld [vmem:[%s2461 + $0x10] sm:$0xf]
    %v2467 = vld [vmem:[%s2461 + $0x14] sm:$0xf]
    %v2468 = vld [vmem:[%s2461 + $0x18] sm:$0xf]
    %v2469 = vld [vmem:[%s2461 + $0x1c] sm:$0xf]
    %v2478 = vunpack.c.l.b16 %v2462
    %v2479 = vunpack.c.l.b16 %v2463
    %v2480 = vunpack.c.l.b16 %v2464
    %v2481 = vunpack.c.l.b16 %v2465
    %v2482 = vunpack.c.l.b16 %v2466
    %v2483 = vunpack.c.l.b16 %v2467
    %v2484 = vunpack.c.l.b16 %v2468
    %v2485 = vunpack.c.l.b16 %v2469
    %v2486 = vpack.c.b16 %v2479, %v2478
    %v2487 = vpack.c.b16 %v2481, %v2480
    %v2488 = vpack.c.b16 %v2483, %v2482
    %v2489 = vpack.c.b16 %v2485, %v2484
    %2494 = vmatprep.subr.bf16.mxu0 0
    %2495 = vmatpush1.bf16.msra.mxu0 %v2486
    %2496 = vmatprep.subr.bf16.mxu0 0
    %2497 = vmatpush1.bf16.msra.mxu0 %v2487
    %2498 = vmatprep.subr.bf16.mxu0 0
    %2499 = vmatpush1.bf16.msra.mxu0 %v2488
    %2500 = vmatprep.subr.bf16.mxu0 0
    %2501 = vmatpush1.bf16.msra.mxu0 %v2489
    %2502 = vmatprep.subr.bf16.mxu0 0
    %2503 = vmatpush1.bf16.msra.mxu0 0
    %2504 = vmatprep.subr.bf16.mxu0 0
    %2505 = vmatpush1.bf16.msra.mxu0 0
    %2506 = vmatprep.subr.bf16.mxu0 0
    %2507 = vmatpush1.bf16.msra.mxu0 0
    %2508 = vmatprep.subr.bf16.mxu0 0
    %2509 = vmatpush1.bf16.msra.mxu0 0
    %2510 = vmatprep.subr.bf16.mxu0 0
    %2511 = vmatpush1.bf16.msra.mxu0 0
    %2512 = vmatprep.subr.bf16.mxu0 0
    %2513 = vmatpush1.bf16.msra.mxu0 0
    %2514 = vmatprep.subr.bf16.mxu0 0
    %2515 = vmatpush1.bf16.msra.mxu0 0
    %2516 = vmatprep.subr.bf16.mxu0 0
    %2517 = vmatpush1.bf16.msra.mxu0 0
    %2518 = vmatprep.subr.bf16.mxu0 0
    %2519 = vmatpush1.bf16.msra.mxu0 0
    %2520 = vmatprep.subr.bf16.mxu0 0
    %2521 = vmatpush1.bf16.msra.mxu0 0
    %2522 = vmatprep.subr.bf16.mxu0 0
    %2523 = vmatpush1.bf16.msra.mxu0 0
    %2524 = vmatprep.subr.bf16.mxu0 0
    %2525 = vmatpush1.bf16.msra.mxu0 0
    %2526 = vmatprep.mubr.bf16.mxu0 0
    %2527 = vmatmul.mubr.bf16.gmra.mrb[0].mxu0 %v2418
    %v2528 = vpop.f32.mrb[0].mxu0
    %v2529 = vadd.f32 0.0, %v2528
    %v2530 = vpop.f32.mrb[0].mxu0
    %v2531 = vpop.f32.mrb[0].mxu0
    %v2532 = vadd.f32 0.0, %v2531
    %v2533 = vpop.f32.mrb[0].mxu0
    %2534 = vdwg.mxu0
    %v2535 = vpack.c.bf16 %v2458, %v2455
    %v2536 = vpack.c.bf16 %v2532, %v2529
    %s2537 = scalar_lea.vmem %s11, 12
    %v2538 = vld [vmem:[%s2537] sm:$0xf]
    %s2539 = scalar_lea.vmem %s12, 3
    %v2540 = vld [vmem:[%s2539] sm:$0x1]
    %v2541 = vlaneseq
    %v2542 = vshrl.u32 %v2541, 7
    %v2543 = vsub.s32 0, %v2542
    %v2544 = vrot.slane %v2538, %v2543
    %v2545 = vmul.f32 %v481, %v2544
    %v2546 = vmul.f32 %v486, %v2544
    %v2547 = vmul.f32 %v491, %v2544
    %v2548 = vmul.f32 %v496, %v2544
    %v2550 = vlaneseq
    %v2551 = vshrl.u32 %v2550, 7
    %v2552 = vsub.s32 0, %v2551
    %v2553 = vrot.slane %v2540, %v2552
    %v2555 = vadd.f32 %v2553, %v2545
    %v2556 = vadd.f32 %v2553, %v2546
    %v2557 = vadd.f32 %v2553, %v2547
    %v2558 = vadd.f32 %v2553, %v2548
    %v2559 = vlaneseq
    %v2560 = vshrl.u32 %v2559, 7
    %v2561 = vsub.s32 1, %v2560
    %v2562 = vrot.slane %v2538, %v2561
    %v2563 = vmul.f32 %v518, %v2562
    %v2564 = vmul.f32 %v522, %v2562
    %v2565 = vmul.f32 %v526, %v2562
    %v2566 = vmul.f32 %v530, %v2562
    %v2567 = vadd.f32 %v2555, %v2563
    %v2568 = vadd.f32 %v2556, %v2564
    %v2569 = vadd.f32 %v2557, %v2565
    %v2570 = vadd.f32 %v2558, %v2566
    %v2571 = vlaneseq
    %v2572 = vshrl.u32 %v2571, 7
    %v2573 = vsub.s32 2, %v2572
    %v2574 = vrot.slane %v2538, %v2573
    %v2575 = vmul.f32 %v546, %v2574
    %v2576 = vmul.f32 %v550, %v2574
    %v2577 = vmul.f32 %v554, %v2574
    %v2578 = vmul.f32 %v558, %v2574
    %v2579 = vadd.f32 %v2567, %v2575
    %v2580 = vadd.f32 %v2568, %v2576
    %v2581 = vadd.f32 %v2569, %v2577
    %v2582 = vadd.f32 %v2570, %v2578
    %v2583 = vlaneseq
    %v2584 = vshrl.u32 %v2583, 7
    %v2585 = vsub.s32 3, %v2584
    %v2586 = vrot.slane %v2538, %v2585
    %v2587 = vmul.f32 %v574, %v2586
    %v2588 = vmul.f32 %v578, %v2586
    %v2589 = vmul.f32 %v582, %v2586
    %v2590 = vmul.f32 %v586, %v2586
    %v2591 = vadd.f32 %v2579, %v2587
    %v2592 = vadd.f32 %v2580, %v2588
    %v2593 = vadd.f32 %v2581, %v2589
    %v2594 = vadd.f32 %v2582, %v2590
    %2595 = vmatprep.subr.bf16.mxu0 0
    %2596 = vmatpush1.bf16.msra.mxu0 %v2535
    %2597 = vmatprep.subr.bf16.mxu0 0
    %2598 = vmatpush1.bf16.msra.mxu0 %v2536
    %2599 = vmatprep.subr.bf16.mxu0 0
    %2600 = vmatpush1.bf16.msra.mxu0 0
    %2601 = vmatprep.subr.bf16.mxu0 0
    %2602 = vmatpush1.bf16.msra.mxu0 0
    %2603 = vmatprep.subr.bf16.mxu0 0
    %2604 = vmatpush1.bf16.msra.mxu0 0
    %2605 = vmatprep.subr.bf16.mxu0 0
    %2606 = vmatpush1.bf16.msra.mxu0 0
    %2607 = vmatprep.subr.bf16.mxu0 0
    %2608 = vmatpush1.bf16.msra.mxu0 0
    %2609 = vmatprep.subr.bf16.mxu0 0
    %2610 = vmatpush1.bf16.msra.mxu0 0
    %2611 = vmatprep.subr.bf16.mxu0 0
    %2612 = vmatpush1.bf16.msra.mxu0 0
    %2613 = vmatprep.subr.bf16.mxu0 0
    %2614 = vmatpush1.bf16.msra.mxu0 0
    %2615 = vmatprep.subr.bf16.mxu0 0
    %2616 = vmatpush1.bf16.msra.mxu0 0
    %2617 = vmatprep.subr.bf16.mxu0 0
    %2618 = vmatpush1.bf16.msra.mxu0 0
    %2619 = vmatprep.subr.bf16.mxu0 0
    %2620 = vmatpush1.bf16.msra.mxu0 0
    %2621 = vmatprep.subr.bf16.mxu0 0
    %2622 = vmatpush1.bf16.msra.mxu0 0
    %2623 = vmatprep.subr.bf16.mxu0 0
    %2624 = vmatpush1.bf16.msra.mxu0 0
    %2625 = vmatprep.subr.bf16.mxu0 0
    %2626 = vmatpush1.bf16.msra.mxu0 0
    %2627 = vmatprep.mubr.bf16.mxu0 0
    %2628 = vmatmul.mubr.bf16.gmra.mrb[0].mxu0 %v602
    %v2629 = vpop.f32.mrb[0].mxu0
    %v2630 = vadd.f32 %v2591, %v2629
    %v2631 = vpop.f32.mrb[0].mxu0
    %v2632 = vpop.f32.mrb[0].mxu0
    %v2633 = vadd.f32 %v2592, %v2632
    %v2634 = vpop.f32.mrb[0].mxu0
    %2635 = vmatprep.mubr.bf16.mxu0 0
    %2636 = vmatmul.mubr.bf16.gmra.mrb[0].mxu0 %v605
    %v2637 = vpop.f32.mrb[0].mxu0
    %v2638 = vadd.f32 %v2593, %v2637
    %v2639 = vpop.f32.mrb[0].mxu0
    %v2640 = vpop.f32.mrb[0].mxu0
    %v2641 = vadd.f32 %v2594, %v2640
    %v2642 = vpop.f32.mrb[0].mxu0
    %2643 = vdwg.mxu0
    %v2644 = vmax.f32 %v2630, 0.0
    %v2645 = vmax.f32 %v2633, 0.0
    %v2646 = vmax.f32 %v2638, 0.0
    %v2647 = vmax.f32 %v2641, 0.0
    %v2648 = vpack.c.bf16 %v2645, %v2644
    %v2649 = vpack.c.bf16 %v2647, %v2646
    %s2650 = scalar_lea.vmem [#allocation5], 96
    %v2651 = vld [vmem:[%s2650] sm:$0xf]
    %v2652 = vld [vmem:[%s2650 + $0x4] sm:$0xf]
    %v2653 = vld [vmem:[%s2650 + $0x8] sm:$0xf]
    %v2654 = vld [vmem:[%s2650 + $0xc] sm:$0xf]
    %v2655 = vld [vmem:[%s2650 + $0x10] sm:$0xf]
    %v2656 = vld [vmem:[%s2650 + $0x14] sm:$0xf]
    %v2657 = vld [vmem:[%s2650 + $0x18] sm:$0xf]
    %v2658 = vld [vmem:[%s2650 + $0x1c] sm:$0xf]
    %s2659 = scalar_lea.vmem %s14, 3
    %v2660 = vld [vmem:[%s2659] sm:$0x1]
    %v2662 = vlaneseq
    %v2663 = vshrl.u32 %v2662, 7
    %v2664 = vsub.s32 0, %v2663
    %v2665 = vrot.slane %v2660, %v2664
    %v2675 = vunpack.c.l.b16 %v2651
    %v2676 = vunpack.c.l.b16 %v2652
    %v2677 = vunpack.c.l.b16 %v2653
    %v2678 = vunpack.c.l.b16 %v2654
    %v2679 = vunpack.c.l.b16 %v2655
    %v2680 = vunpack.c.l.b16 %v2656
    %v2681 = vunpack.c.l.b16 %v2657
    %v2682 = vunpack.c.l.b16 %v2658
    %v2683 = vpack.c.b16 %v2676, %v2675
    %v2684 = vpack.c.b16 %v2678, %v2677
    %v2685 = vpack.c.b16 %v2680, %v2679
    %v2686 = vpack.c.b16 %v2682, %v2681
    %v2692 = vsel %vm356, %v2648, 0
    %v2695 = vsel %vm356, %v2649, 0
    %2697 = vmatprep.subr.bf16.mxu0 0
    %2698 = vmatpush1.bf16.msra.mxu0 %v2683
    %2699 = vmatprep.subr.bf16.mxu0 0
    %2700 = vmatpush1.bf16.msra.mxu0 %v2684
    %2701 = vmatprep.subr.bf16.mxu0 0
    %2702 = vmatpush1.bf16.msra.mxu0 %v2685
    %2703 = vmatprep.subr.bf16.mxu0 0
    %2704 = vmatpush1.bf16.msra.mxu0 %v2686
    %2705 = vmatprep.subr.bf16.mxu0 0
    %2706 = vmatpush1.bf16.msra.mxu0 0
    %2707 = vmatprep.subr.bf16.mxu0 0
    %2708 = vmatpush1.bf16.msra.mxu0 0
    %2709 = vmatprep.subr.bf16.mxu0 0
    %2710 = vmatpush1.bf16.msra.mxu0 0
    %2711 = vmatprep.subr.bf16.mxu0 0
    %2712 = vmatpush1.bf16.msra.mxu0 0
    %2713 = vmatprep.subr.bf16.mxu0 0
    %2714 = vmatpush1.bf16.msra.mxu0 0
    %2715 = vmatprep.subr.bf16.mxu0 0
    %2716 = vmatpush1.bf16.msra.mxu0 0
    %2717 = vmatprep.subr.bf16.mxu0 0
    %2718 = vmatpush1.bf16.msra.mxu0 0
    %2719 = vmatprep.subr.bf16.mxu0 0
    %2720 = vmatpush1.bf16.msra.mxu0 0
    %2721 = vmatprep.subr.bf16.mxu0 0
    %2722 = vmatpush1.bf16.msra.mxu0 0
    %2723 = vmatprep.subr.bf16.mxu0 0
    %2724 = vmatpush1.bf16.msra.mxu0 0
    %2725 = vmatprep.subr.bf16.mxu0 0
    %2726 = vmatpush1.bf16.msra.mxu0 0
    %2727 = vmatprep.subr.bf16.mxu0 0
    %2728 = vmatpush1.bf16.msra.mxu0 0
    %2729 = vmatprep.mubr.bf16.mxu0 0
    %2730 = vmatmul.mubr.bf16.gmra.mrb[0].mxu0 %v2692
    %v2731 = vpop.f32.mrb[0].mxu0
    %v2732 = vadd.f32 %v2665, %v2731
    %v2733 = vpop.f32.mrb[0].mxu0
    %v2734 = vpop.f32.mrb[0].mxu0
    %v2735 = vadd.f32 %v2665, %v2734
    %v2736 = vpop.f32.mrb[0].mxu0
    %2737 = vmatprep.mubr.bf16.mxu0 0
    %2738 = vmatmul.mubr.bf16.gmra.mrb[0].mxu0 %v2695
    %v2739 = vpop.f32.mrb[0].mxu0
    %v2740 = vadd.f32 %v2665, %v2739
    %v2741 = vpop.f32.mrb[0].mxu0
    %v2742 = vpop.f32.mrb[0].mxu0
    %v2743 = vadd.f32 %v2665, %v2742
    %v2744 = vpop.f32.mrb[0].mxu0
    %2745 = vdwg.mxu0
    %v2746 = vmax.f32 %v2732, 0.0
    %v2747 = vmax.f32 %v2735, 0.0
    %v2748 = vmax.f32 %v2740, 0.0
    %v2749 = vmax.f32 %v2743, 0.0
    %v2750 = vpack.c.bf16 %v2747, %v2746
    %v2751 = vpack.c.bf16 %v2749, %v2748
    %2752 = vmatprep.subr.bf16.mxu0 0
    %2753 = vmatpush1.bf16.msra.mxu0 %v2750
    %2754 = vmatprep.subr.bf16.mxu0 0
    %2755 = vmatpush1.bf16.msra.mxu0 %v2751
    %2756 = vmatprep.subr.bf16.mxu0 0
    %2757 = vmatpush1.bf16.msra.mxu0 0
    %2758 = vmatprep.subr.bf16.mxu0 0
    %2759 = vmatpush1.bf16.msra.mxu0 0
    %2760 = vmatprep.subr.bf16.mxu0 0
    %2761 = vmatpush1.bf16.msra.mxu0 0
    %2762 = vmatprep.subr.bf16.mxu0 0
    %2763 = vmatpush1.bf16.msra.mxu0 0
    %2764 = vmatprep.subr.bf16.mxu0 0
    %2765 = vmatpush1.bf16.msra.mxu0 0
    %2766 = vmatprep.subr.bf16.mxu0 0
    %2767 = vmatpush1.bf16.msra.mxu0 0
    %2768 = vmatprep.subr.bf16.mxu0 0
    %2769 = vmatpush1.bf16.msra.mxu0 0
    %2770 = vmatprep.subr.bf16.mxu0 0
    %2771 = vmatpush1.bf16.msra.mxu0 0
    %2772 = vmatprep.subr.bf16.mxu0 0
    %2773 = vmatpush1.bf16.msra.mxu0 0
    %2774 = vmatprep.subr.bf16.mxu0 0
    %2775 = vmatpush1.bf16.msra.mxu0 0
    %2776 = vmatprep.subr.bf16.mxu0 0
    %2777 = vmatpush1.bf16.msra.mxu0 0
    %2778 = vmatprep.subr.bf16.mxu0 0
    %2779 = vmatpush1.bf16.msra.mxu0 0
    %2780 = vmatprep.subr.bf16.mxu0 0
    %2781 = vmatpush1.bf16.msra.mxu0 0
    %2782 = vmatprep.subr.bf16.mxu0 0
    %2783 = vmatpush1.bf16.msra.mxu0 0
    %2784 = vmatprep.mubr.bf16.mxu0 0
    %2785 = vmatmul.mubr.bf16.gmra.mrb[0].mxu0 %v763
    %v2786 = vpop.f32.mrb[0].mxu0
    %v2787 = vadd.f32 0.0, %v2786
    %v2788 = vpop.f32.mrb[0].mxu0
    %v2789 = vpop.f32.mrb[0].mxu0
    %v2790 = vadd.f32 0.0, %v2789
    %v2791 = vpop.f32.mrb[0].mxu0
    %2792 = vdwg.mxu0
    %s2793 = scalar_lea.vmem [#allocation7], 96
    %v2794 = vld [vmem:[%s2793] sm:$0xf]
    %v2795 = vld [vmem:[%s2793 + $0x4] sm:$0xf]
    %v2796 = vld [vmem:[%s2793 + $0x8] sm:$0xf]
    %v2797 = vld [vmem:[%s2793 + $0xc] sm:$0xf]
    %v2798 = vld [vmem:[%s2793 + $0x10] sm:$0xf]
    %v2799 = vld [vmem:[%s2793 + $0x14] sm:$0xf]
    %v2800 = vld [vmem:[%s2793 + $0x18] sm:$0xf]
    %v2801 = vld [vmem:[%s2793 + $0x1c] sm:$0xf]
    %v2802 = vpack.c.bf16 %v2790, %v2787
    %s2803 = scalar_lea.vmem [#allocation8], 96
    %v2804 = vld [vmem:[%s2803] sm:$0xf]
    %v2805 = vld [vmem:[%s2803 + $0x4] sm:$0xf]
    %v2806 = vld [vmem:[%s2803 + $0x8] sm:$0xf]
    %v2807 = vld [vmem:[%s2803 + $0xc] sm:$0xf]
    %v2808 = vld [vmem:[%s2803 + $0x10] sm:$0xf]
    %v2809 = vld [vmem:[%s2803 + $0x14] sm:$0xf]
    %v2810 = vld [vmem:[%s2803 + $0x18] sm:$0xf]
    %v2811 = vld [vmem:[%s2803 + $0x1c] sm:$0xf]
    %v2820 = vunpack.c.l.b16 %v2804
    %v2821 = vunpack.c.l.b16 %v2805
    %v2822 = vunpack.c.l.b16 %v2806
    %v2823 = vunpack.c.l.b16 %v2807
    %v2824 = vunpack.c.l.b16 %v2808
    %v2825 = vunpack.c.l.b16 %v2809
    %v2826 = vunpack.c.l.b16 %v2810
    %v2827 = vunpack.c.l.b16 %v2811
    %v2828 = vpack.c.b16 %v2821, %v2820
    %v2829 = vpack.c.b16 %v2823, %v2822
    %v2830 = vpack.c.b16 %v2825, %v2824
    %v2831 = vpack.c.b16 %v2827, %v2826
    %v2837 = vsel %vm356, %v2802, 0
    %2839 = vmatprep.subr.bf16.mxu0 0
    %2840 = vmatpush1.bf16.msra.mxu0 %v2828
    %2841 = vmatprep.subr.bf16.mxu0 0
    %2842 = vmatpush1.bf16.msra.mxu0 %v2829
    %2843 = vmatprep.subr.bf16.mxu0 0
    %2844 = vmatpush1.bf16.msra.mxu0 %v2830
    %2845 = vmatprep.subr.bf16.mxu0 0
    %2846 = vmatpush1.bf16.msra.mxu0 %v2831
    %2847 = vmatprep.subr.bf16.mxu0 0
    %2848 = vmatpush1.bf16.msra.mxu0 0
    %2849 = vmatprep.subr.bf16.mxu0 0
    %2850 = vmatpush1.bf16.msra.mxu0 0
    %2851 = vmatprep.subr.bf16.mxu0 0
    %2852 = vmatpush1.bf16.msra.mxu0 0
    %2853 = vmatprep.subr.bf16.mxu0 0
    %2854 = vmatpush1.bf16.msra.mxu0 0
    %2855 = vmatprep.subr.bf16.mxu0 0
    %2856 = vmatpush1.bf16.msra.mxu0 0
    %2857 = vmatprep.subr.bf16.mxu0 0
    %2858 = vmatpush1.bf16.msra.mxu0 0
    %2859 = vmatprep.subr.bf16.mxu0 0
    %2860 = vmatpush1.bf16.msra.mxu0 0
    %2861 = vmatprep.subr.bf16.mxu0 0
    %2862 = vmatpush1.bf16.msra.mxu0 0
    %2863 = vmatprep.subr.bf16.mxu0 0
    %2864 = vmatpush1.bf16.msra.mxu0 0
    %2865 = vmatprep.subr.bf16.mxu0 0
    %2866 = vmatpush1.bf16.msra.mxu0 0
    %2867 = vmatprep.subr.bf16.mxu0 0
    %2868 = vmatpush1.bf16.msra.mxu0 0
    %2869 = vmatprep.subr.bf16.mxu0 0
    %2870 = vmatpush1.bf16.msra.mxu0 0
    %2871 = vmatprep.mubr.bf16.mxu0 0
    %2872 = vmatmul.mubr.bf16.gmra.mrb[0].mxu0 %v2837
    %v2873 = vpop.f32.mrb[0].mxu0
    %v2874 = vadd.f32 0.0, %v2873
    %v2875 = vpop.f32.mrb[0].mxu0
    %v2876 = vpop.f32.mrb[0].mxu0
    %v2877 = vadd.f32 0.0, %v2876
    %v2878 = vpop.f32.mrb[0].mxu0
    %2879 = vdwg.mxu0
    %v2888 = vunpack.c.l.b16 %v2794
    %v2889 = vunpack.c.l.b16 %v2795
    %v2890 = vunpack.c.l.b16 %v2796
    %v2891 = vunpack.c.l.b16 %v2797
    %v2892 = vunpack.c.l.b16 %v2798
    %v2893 = vunpack.c.l.b16 %v2799
    %v2894 = vunpack.c.l.b16 %v2800
    %v2895 = vunpack.c.l.b16 %v2801
    %v2896 = vpack.c.b16 %v2889, %v2888
    %v2897 = vpack.c.b16 %v2891, %v2890
    %v2898 = vpack.c.b16 %v2893, %v2892
    %v2899 = vpack.c.b16 %v2895, %v2894
    %2904 = vmatprep.subr.bf16.mxu0 0
    %2905 = vmatpush1.bf16.msra.mxu0 %v2896
    %2906 = vmatprep.subr.bf16.mxu0 0
    %2907 = vmatpush1.bf16.msra.mxu0 %v2897
    %2908 = vmatprep.subr.bf16.mxu0 0
    %2909 = vmatpush1.bf16.msra.mxu0 %v2898
    %2910 = vmatprep.subr.bf16.mxu0 0
    %2911 = vmatpush1.bf16.msra.mxu0 %v2899
    %2912 = vmatprep.subr.bf16.mxu0 0
    %2913 = vmatpush1.bf16.msra.mxu0 0
    %2914 = vmatprep.subr.bf16.mxu0 0
    %2915 = vmatpush1.bf16.msra.mxu0 0
    %2916 = vmatprep.subr.bf16.mxu0 0
    %2917 = vmatpush1.bf16.msra.mxu0 0
    %2918 = vmatprep.subr.bf16.mxu0 0
    %2919 = vmatpush1.bf16.msra.mxu0 0
    %2920 = vmatprep.subr.bf16.mxu0 0
    %2921 = vmatpush1.bf16.msra.mxu0 0
    %2922 = vmatprep.subr.bf16.mxu0 0
    %2923 = vmatpush1.bf16.msra.mxu0 0
    %2924 = vmatprep.subr.bf16.mxu0 0
    %2925 = vmatpush1.bf16.msra.mxu0 0
    %2926 = vmatprep.subr.bf16.mxu0 0
    %2927 = vmatpush1.bf16.msra.mxu0 0
    %2928 = vmatprep.subr.bf16.mxu0 0
    %2929 = vmatpush1.bf16.msra.mxu0 0
    %2930 = vmatprep.subr.bf16.mxu0 0
    %2931 = vmatpush1.bf16.msra.mxu0 0
    %2932 = vmatprep.subr.bf16.mxu0 0
    %2933 = vmatpush1.bf16.msra.mxu0 0
    %2934 = vmatprep.subr.bf16.mxu0 0
    %2935 = vmatpush1.bf16.msra.mxu0 0
    %2936 = vmatprep.mubr.bf16.mxu0 0
    %2937 = vmatmul.mubr.bf16.gmra.mrb[0].mxu0 %v2418
    %v2938 = vpop.f32.mrb[0].mxu0
    %v2939 = vadd.f32 %v2874, %v2938
    %v2940 = vpop.f32.mrb[0].mxu0
    %v2941 = vpop.f32.mrb[0].mxu0
    %v2942 = vadd.f32 %v2877, %v2941
    %v2943 = vpop.f32.mrb[0].mxu0
    %2944 = vdwg.mxu0
    %s2945 = scalar_lea.vmem %s17, 3
    %v2946 = vld [vmem:[%s2945] sm:$0x1]
    %v2948 = vlaneseq
    %v2949 = vshrl.u32 %v2948, 7
    %v2950 = vsub.s32 0, %v2949
    %v2951 = vrot.slane %v2946, %v2950
    %v2953 = vadd.f32 %v2939, %v2951
    %v2954 = vadd.f32 %v2942, %v2951
    %v2955 = vmax.f32 %v2953, 0.0
    %v2956 = vmax.f32 %v2954, 0.0
    %v2957 = vpack.c.bf16 %v2956, %v2955
    %s2958 = scalar_lea.vmem [#allocation10], 96
    %v2959 = vld [vmem:[%s2958] sm:$0xf]
    %v2960 = vld [vmem:[%s2958 + $0x4] sm:$0xf]
    %v2961 = vld [vmem:[%s2958 + $0x8] sm:$0xf]
    %v2962 = vld [vmem:[%s2958 + $0xc] sm:$0xf]
    %v2963 = vld [vmem:[%s2958 + $0x10] sm:$0xf]
    %v2964 = vld [vmem:[%s2958 + $0x14] sm:$0xf]
    %v2965 = vld [vmem:[%s2958 + $0x18] sm:$0xf]
    %v2966 = vld [vmem:[%s2958 + $0x1c] sm:$0xf]
    %s2967 = scalar_lea.vmem %s19, 3
    %v2968 = vld [vmem:[%s2967] sm:$0x1]
    %v2970 = vlaneseq
    %v2971 = vshrl.u32 %v2970, 7
    %v2972 = vsub.s32 0, %v2971
    %v2973 = vrot.slane %v2968, %v2972
    %v2983 = vunpack.c.l.b16 %v2959
    %v2984 = vunpack.c.l.b16 %v2960
    %v2985 = vunpack.c.l.b16 %v2961
    %v2986 = vunpack.c.l.b16 %v2962
    %v2987 = vunpack.c.l.b16 %v2963
    %v2988 = vunpack.c.l.b16 %v2964
    %v2989 = vunpack.c.l.b16 %v2965
    %v2990 = vunpack.c.l.b16 %v2966
    %v2991 = vpack.c.b16 %v2984, %v2983
    %v2992 = vpack.c.b16 %v2986, %v2985
    %v2993 = vpack.c.b16 %v2988, %v2987
    %v2994 = vpack.c.b16 %v2990, %v2989
    %v3000 = vsel %vm356, %v2957, 0
    %3002 = vmatprep.subr.bf16.mxu0 0
    %3003 = vmatpush1.bf16.msra.mxu0 %v2991
    %3004 = vmatprep.subr.bf16.mxu0 0
    %3005 = vmatpush1.bf16.msra.mxu0 %v2992
    %3006 = vmatprep.subr.bf16.mxu0 0
    %3007 = vmatpush1.bf16.msra.mxu0 %v2993
    %3008 = vmatprep.subr.bf16.mxu0 0
    %3009 = vmatpush1.bf16.msra.mxu0 %v2994
    %3010 = vmatprep.subr.bf16.mxu0 0
    %3011 = vmatpush1.bf16.msra.mxu0 0
    %3012 = vmatprep.subr.bf16.mxu0 0
    %3013 = vmatpush1.bf16.msra.mxu0 0
    %3014 = vmatprep.subr.bf16.mxu0 0
    %3015 = vmatpush1.bf16.msra.mxu0 0
    %3016 = vmatprep.subr.bf16.mxu0 0
    %3017 = vmatpush1.bf16.msra.mxu0 0
    %3018 = vmatprep.subr.bf16.mxu0 0
    %3019 = vmatpush1.bf16.msra.mxu0 0
    %3020 = vmatprep.subr.bf16.mxu0 0
    %3021 = vmatpush1.bf16.msra.mxu0 0
    %3022 = vmatprep.subr.bf16.mxu0 0
    %3023 = vmatpush1.bf16.msra.mxu0 0
    %3024 = vmatprep.subr.bf16.mxu0 0
    %3025 = vmatpush1.bf16.msra.mxu0 0
    %3026 = vmatprep.subr.bf16.mxu0 0
    %3027 = vmatpush1.bf16.msra.mxu0 0
    %3028 = vmatprep.subr.bf16.mxu0 0
    %3029 = vmatpush1.bf16.msra.mxu0 0
    %3030 = vmatprep.subr.bf16.mxu0 0
    %3031 = vmatpush1.bf16.msra.mxu0 0
    %3032 = vmatprep.subr.bf16.mxu0 0
    %3033 = vmatpush1.bf16.msra.mxu0 0
    %3034 = vmatprep.mubr.bf16.mxu0 0
    %3035 = vmatmul.mubr.bf16.gmra.mrb[0].mxu0 %v3000
    %v3036 = vpop.f32.mrb[0].mxu0
    %v3037 = vadd.f32 %v2973, %v3036
    %v3038 = vpop.f32.mrb[0].mxu0
    %v3039 = vpop.f32.mrb[0].mxu0
    %v3040 = vadd.f32 %v2973, %v3039
    %v3041 = vpop.f32.mrb[0].mxu0
    %3042 = vdwg.mxu0
    %v3043 = vmax.f32 %v3037, 0.0
    %v3044 = vmax.f32 %v3040, 0.0
    %v3045 = vadd.f32 %v2381, %v3043
    %v3046 = vadd.f32 %v2382, %v3044
    %v3047 = vpack.c.bf16 %v3046, %v3045
    %vm3048 = vcmask 130048
    %v3050 = vsel %vm3048, %v318, 0
    %3052 = vmatprep.subr.bf16.mxu0 0
    %3053 = vmatpush1.bf16.msra.mxu0 %v3047
    %3054 = vmatprep.subr.bf16.mxu0 0
    %3055 = vmatpush1.bf16.msra.mxu0 0
    %3056 = vmatprep.subr.bf16.mxu0 0
    %3057 = vmatpush1.bf16.msra.mxu0 0
    %3058 = vmatprep.subr.bf16.mxu0 0
    %3059 = vmatpush1.bf16.msra.mxu0 0
    %3060 = vmatprep.subr.bf16.mxu0 0
    %3061 = vmatpush1.bf16.msra.mxu0 0
    %3062 = vmatprep.subr.bf16.mxu0 0
    %3063 = vmatpush1.bf16.msra.mxu0 0
    %3064 = vmatprep.subr.bf16.mxu0 0
    %3065 = vmatpush1.bf16.msra.mxu0 0
    %3066 = vmatprep.subr.bf16.mxu0 0
    %3067 = vmatpush1.bf16.msra.mxu0 0
    %3068 = vmatprep.subr.bf16.mxu0 0
    %3069 = vmatpush1.bf16.msra.mxu0 0
    %3070 = vmatprep.subr.bf16.mxu0 0
    %3071 = vmatpush1.bf16.msra.mxu0 0
    %3072 = vmatprep.subr.bf16.mxu0 0
    %3073 = vmatpush1.bf16.msra.mxu0 0
    %3074 = vmatprep.subr.bf16.mxu0 0
    %3075 = vmatpush1.bf16.msra.mxu0 0
    %3076 = vmatprep.subr.bf16.mxu0 0
    %3077 = vmatpush1.bf16.msra.mxu0 0
    %3078 = vmatprep.subr.bf16.mxu0 0
    %3079 = vmatpush1.bf16.msra.mxu0 0
    %3080 = vmatprep.subr.bf16.mxu0 0
    %3081 = vmatpush1.bf16.msra.mxu0 0
    %3082 = vmatprep.subr.bf16.mxu0 0
    %3083 = vmatpush1.bf16.msra.mxu0 0
    %3084 = vmatprep.mubr.bf16.mxu0 0
    %3085 = vmatmul.mubr.bf16.gmra.mrb[0].mxu0 %v3050
    %v3086 = vpop.f32.mrb[0].mxu0
    %v3087 = vadd.f32 0.0, %v3086
    %v3088 = vpop.f32.mrb[0].mxu0
    %v3089 = vpop.f32.mrb[0].mxu0
    %v3090 = vpop.f32.mrb[0].mxu0
    %3091 = vdwg.mxu0
    %v3092 = vld [vmem:[%s6] sm:$0x3]
    %3094 = vset.pattern.permute.xlu0 0
    %3095 = vperm.xlu0 %3094, %v3092
    %v3096 = vpop.permute.xlu0 %3095
    %v3098 = vmul.f32 %v3087, %v3096
    %v3099 = vld [vmem:[%s20] sm:$0xff]
    %v3100 = vld [vmem:[%s20 + $0x8] sm:$0xff]
    %v3101 = vld [vmem:[%s20 + $0x10] sm:$0xff]
    %v3102 = vld [vmem:[%s20 + $0x18] sm:$0xff]
    %v3103 = vld [vmem:[%s20 + $0x20] sm:$0xff]
    %v3104 = vld [vmem:[%s20 + $0x28] sm:$0xff]
    %v3105 = vld [vmem:[%s20 + $0x30] sm:$0xff]
    %v3106 = vld [vmem:[%s20 + $0x38] sm:$0xff]
    %v3107 = vld [vmem:[#allocation2] sm:$0x1]
    %v3109 = vlaneseq
    %v3110 = vshrl.u32 %v3109, 7
    %v3111 = vsub.s32 0, %v3110
    %v3112 = vrot.slane %v3107, %v3111
    %v3115 = vsel %vm356, %v3098, 0
    %3117 = vmatprep.subr.mxu0 0.0
    %3118 = vmatpush1.msra.mxu0 %v3099
    %3119 = vmatprep.subr.mxu0 0.0
    %3120 = vmatpush1.msra.mxu0 %v3100
    %3121 = vmatprep.subr.mxu0 0.0
    %3122 = vmatpush1.msra.mxu0 %v3101
    %3123 = vmatprep.subr.mxu0 0.0
    %3124 = vmatpush1.msra.mxu0 %v3102
    %3125 = vmatprep.subr.mxu0 0.0
    %3126 = vmatpush1.msra.mxu0 %v3103
    %3127 = vmatprep.subr.mxu0 0.0
    %3128 = vmatpush1.msra.mxu0 %v3104
    %3129 = vmatprep.subr.mxu0 0.0
    %3130 = vmatpush1.msra.mxu0 %v3105
    %3131 = vmatprep.subr.mxu0 0.0
    %3132 = vmatpush1.msra.mxu0 %v3106
    %3133 = vmatprep.subr.mxu0 0.0
    %3134 = vmatpush1.msra.mxu0 0.0
    %3135 = vmatprep.subr.mxu0 0.0
    %3136 = vmatpush1.msra.mxu0 0.0
    %3137 = vmatprep.subr.mxu0 0.0
    %3138 = vmatpush1.msra.mxu0 0.0
    %3139 = vmatprep.subr.mxu0 0.0
    %3140 = vmatpush1.msra.mxu0 0.0
    %3141 = vmatprep.subr.mxu0 0.0
    %3142 = vmatpush1.msra.mxu0 0.0
    %3143 = vmatprep.subr.mxu0 0.0
    %3144 = vmatpush1.msra.mxu0 0.0
    %3145 = vmatprep.subr.mxu0 0.0
    %3146 = vmatpush1.msra.mxu0 0.0
    %3147 = vmatprep.subr.mxu0 0.0
    %3148 = vmatpush1.msra.mxu0 0.0
    %3149 = vmatprep.subr.mxu0 0.0
    %3150 = vmatpush1.msra.mxu0 0.0
    %3151 = vmatprep.subr.mxu0 0.0
    %3152 = vmatpush1.msra.mxu0 0.0
    %3153 = vmatprep.subr.mxu0 0.0
    %3154 = vmatpush1.msra.mxu0 0.0
    %3155 = vmatprep.subr.mxu0 0.0
    %3156 = vmatpush1.msra.mxu0 0.0
    %3157 = vmatprep.subr.mxu0 0.0
    %3158 = vmatpush1.msra.mxu0 0.0
    %3159 = vmatprep.subr.mxu0 0.0
    %3160 = vmatpush1.msra.mxu0 0.0
    %3161 = vmatprep.subr.mxu0 0.0
    %3162 = vmatpush1.msra.mxu0 0.0
    %3163 = vmatprep.subr.mxu0 0.0
    %3164 = vmatpush1.msra.mxu0 0.0
    %3165 = vmatprep.subr.mxu0 0.0
    %3166 = vmatpush1.msra.mxu0 0.0
    %3167 = vmatprep.subr.mxu0 0.0
    %3168 = vmatpush1.msra.mxu0 0.0
    %3169 = vmatprep.subr.mxu0 0.0
    %3170 = vmatpush1.msra.mxu0 0.0
    %3171 = vmatprep.subr.mxu0 0.0
    %3172 = vmatpush1.msra.mxu0 0.0
    %3173 = vmatprep.subr.mxu0 0.0
    %3174 = vmatpush1.msra.mxu0 0.0
    %3175 = vmatprep.subr.mxu0 0.0
    %3176 = vmatpush1.msra.mxu0 0.0
    %3177 = vmatprep.subr.mxu0 0.0
    %3178 = vmatpush1.msra.mxu0 0.0
    %3179 = vmatprep.subr.mxu0 0.0
    %3180 = vmatpush1.msra.mxu0 0.0
    %3181 = vmatprep.mubr.f32.mxu0 0.0
    %3182 = vmatmul.mubr.f32.gmra.mrb[0].mxu0 %v3115
    %v3183 = vpop.f32.mrb[0].mxu0
    %v3184 = vadd.f32 %v3112, %v3183
    %v3185 = vpop.f32.mrb[0].mxu0
    %3186 = vdwg.mxu0
    %vm3187 = vcmask 1024
    %3188 = vst.msk [vmem:[%s22] sm:$0x3] %vm3187, %v3184
    // Predicated region
    $region110: #{tpu_custom_call.1} parent=1 // pred_check
      _
    $region111: #{tpu_custom_call.1} parent=1 // pred_check_branch
      %3190 = sbr.rel (0) target = $region113
    $region112: #{tpu_custom_call.1} parent=1 // pred_region
      _
    $region113: #{tpu_custom_call.1} parent=1 // pred_fallthru
      _
    // Predicated region
    $region114: #{tpu_custom_call.1} parent=1 // pred_check
      _
    $region115: #{tpu_custom_call.1} parent=1 // pred_check_branch
      %3192 = sbr.rel (0) target = $region117
    $region116: #{tpu_custom_call.1} parent=1 // pred_region
      _
    $region117: #{tpu_custom_call.1} parent=1 // pred_fallthru
      _
    %3193 = vsyncpa [#allocation4], 1
    %3194 = vsyncpa [#allocation6], 1
    %3195 = vsyncpa [#allocation9], 1

</llo_original>
